<compile_context>
chip_gen: v6e
topology: v6e:2x2x1
jax: 0.10.0
libtpu: 0.0.40
codegen_flags: <defaults>
</compile_context>

<pallas_src>
import functools

import jax
import jax.numpy as jnp
import numpy as np
from jax import lax
from jax.experimental import pallas as pl
from jax.experimental.pallas import tpu as pltpu

# --- "utils" constants (synthetic, consistent with a codon vocabulary) -------
CODON_VOCAB_MAX = 65          # 64 codons + specials -> vocab_size = 66
PADDING = 0
VOCAB_SIZE = CODON_VOCAB_MAX + 1

# --- hyperparameters ("args") ------------------------------------------------
CODON_HIDDEN = 32             # args.codon_hidden
CODON_LSTM_LAYERS = 2         # args.codon_lstm_layers
BATCH = 8                     # multiple of 8 -> full f32 sublane occupancy
SEQ = 8


# =============================================================================
# Fused Pallas kernel: all LSTM layers, full time recurrence, single launch
# =============================================================================
def fused_lstm_kernel(tok_ref, w_ih0_ref, w_ih_up_ref, w_hh_ref, b_ref,
                      out_ref, hn_ref, cn_ref,
                      gx_scratch, hs_scratch, *, T, B, H, L):
    """Fused multi-layer LSTM (gate order i, f, g, o; g-block pre-scaled by 2).

    Refs:
      tok_ref     : (B, T) int32 codon ids, scalar-prefetched into SMEM
      w_ih0_ref   : (V, 1, 4H) layer-0 W_ih^T gather table (PADDING row zeroed)
      w_ih_up_ref : (max(L-1,1), H, 4H) layers>=1 input weights
      w_hh_ref    : (L, H, 4H) recurrent weights
      b_ref       : (L, 1, 4H) combined biases (b_ih + b_hh)
      out_ref     : (B, T*H)   last-layer hidden states, row-major == (B, T, H)
      hn_ref      : (L, B, H)  final hidden states
      cn_ref      : (L, B, H)  final cell states
      gx_scratch  : (T*B, 4H)  layer-0 gathered input-gate rows
      hs_scratch  : (T*B, H)   intermediate-layer per-step outputs (GEMM input)
    """
    f32 = jnp.float32

    # ---- layer-0 input projection: one-hot @ W_ih == in-kernel row gather ----
    # PADDING row of the table is pre-zeroed, so no masking is needed here.
    for t in range(T):
        for b in range(B):
            tok = tok_ref[b, t]                         # scalar read from SMEM
            r = t * B + b
            gx_scratch[r:r + 1, :] = w_ih0_ref[tok]     # (1, 4H), dynamic row

    def run_layer(li, gx_of_t, last):
        w_hh = w_hh_ref[li]                             # (H, 4H), loaded once
        bias = b_ref[li]                                # (1, 4H)
        h = jnp.zeros((B, H), f32)
        c = jnp.zeros((B, H), f32)
        for t in range(T):                              # static unrolled recurrence
            gates = (gx_of_t(t)
                     + jnp.dot(h, w_hh, preferred_element_type=f32)
                     + bias)                            # (B, 4H)
            sig = jax.nn.sigmoid(gates)                 # ONE full-width EUP stream
            i_g = sig[:, 0 * H:1 * H]
            f_g = sig[:, 1 * H:2 * H]
            g_g = 2.0 * sig[:, 2 * H:3 * H] - 1.0       # tanh(x) = 2*sigmoid(2x)-1
            o_g = sig[:, 3 * H:4 * H]
            c = f_g * c + i_g * g_g
            h = o_g * jnp.tanh(c)
            if last:
                out_ref[:, t * H:(t + 1) * H] = h       # stream to output slab
            else:
                hs_scratch[t * B:(t + 1) * B, :] = h    # feed next layer's GEMM
        hn_ref[li] = h
        cn_ref[li] = c

    # ---- layer 0 ----
    run_layer(0, lambda t: gx_scratch[t * B:(t + 1) * B, :], last=(L == 1))

    # ---- layers 1..L-1: hoisted batched input projection, then recurrence ----
    for li in range(1, L):
        gx_flat = jnp.dot(hs_scratch[...], w_ih_up_ref[li - 1],
                          preferred_element_type=f32)   # (T*B, 4H)
        run_layer(li, lambda t, g=gx_flat: g[t * B:(t + 1) * B, :],
                  last=(li == L - 1))


# =============================================================================
# Parameter construction (deterministic, mirrors torch.nn.LSTM shapes)
# =============================================================================
def init_params(key, vocab_size, hidden, num_layers):
    # CodonOneHotEncoder: identity with PADDING row zeroed (frozen parameter).
    ident = jnp.eye(vocab_size, dtype=jnp.float32)
    ident = ident.at[PADDING].set(0.0)

    bound = 1.0 / np.sqrt(hidden)
    layers = []
    for layer_idx in range(num_layers):
        in_dim = vocab_size if layer_idx == 0 else hidden
        key, k1, k2, k3, k4 = jax.random.split(key, 5)
        # PyTorch shapes: w_ih (4H, in_dim), w_hh (4H, H), b_ih (4H,), b_hh (4H,)
        w_ih = jax.random.uniform(k1, (4 * hidden, in_dim), jnp.float32, -bound, bound)
        w_hh = jax.random.uniform(k2, (4 * hidden, hidden), jnp.float32, -bound, bound)
        b_ih = jax.random.uniform(k3, (4 * hidden,), jnp.float32, -bound, bound)
        b_hh = jax.random.uniform(k4, (4 * hidden,), jnp.float32, -bound, bound)
        layers.append({
            "w_ih_t": jnp.transpose(w_ih),                    # (in_dim, 4H)
            "w_hh_t": jnp.transpose(w_hh),                    # (H, 4H)
            "b": (b_ih + b_hh).reshape(1, 4 * hidden),        # (1, 4H)
        })
    return {"one_hot": ident, "lstm": layers}


def prepare_kernel_params(params, hidden):
    """One-time kernel-side parameter prep: stack layers, pre-scale the g-gate
    block by 2 (for the tanh->sigmoid identity), zero the PADDING gather row."""
    H = hidden
    L = len(params["lstm"])

    def scale_g(a):                                    # a: (..., 4H)
        return a.at[..., 2 * H:3 * H].multiply(2.0)

    lp0 = params["lstm"][0]
    gather = scale_g(lp0["w_ih_t"]).at[PADDING].set(0.0)          # (V, 4H)
    w_ih0_gather = gather.reshape(gather.shape[0], 1, 4 * H)      # (V, 1, 4H)

    w_hh_all = jnp.stack([scale_g(lp["w_hh_t"]) for lp in params["lstm"]])   # (L, H, 4H)
    b_all = jnp.stack([scale_g(lp["b"]) for lp in params["lstm"]])           # (L, 1, 4H)
    if L > 1:
        w_ih_up = jnp.stack([scale_g(lp["w_ih_t"]) for lp in params["lstm"][1:]])  # (L-1, H, 4H)
    else:
        w_ih_up = jnp.zeros((1, H, 4 * H), jnp.float32)           # unused dummy

    return {"w_ih0_gather": w_ih0_gather.astype(jnp.float32),
            "w_ih_up": w_ih_up.astype(jnp.float32),
            "w_hh_all": w_hh_all.astype(jnp.float32),
            "b_all": b_all.astype(jnp.float32),
            "hidden": H, "num_layers": L}


# =============================================================================
# LSTMCodon.forward
# =============================================================================
def lstm_codon_forward(kparams, x_tokens, state=None, return_full=False):
    """x_tokens: int32 (B, T) codon ids. Returns (B, T, H) [batch_first]."""
    if state is not None:
        # TODO(synk): external initial (h0, c0) state not plumbed into the fused
        #             kernel (zero-init fast path only, per the perf review).
        raise NotImplementedError("fused kernel zero-initializes (h0, c0)")

    B, T = x_tokens.shape
    H = kparams["hidden"]
    L = kparams["num_layers"]

    kernel = functools.partial(fused_lstm_kernel, T=T, B=B, H=H, L=L)
    grid_spec = pltpu.PrefetchScalarGridSpec(
        num_scalar_prefetch=1,                               # x_tokens -> SMEM
        grid=(),
        in_specs=[pl.BlockSpec(memory_space=pltpu.MemorySpace.VMEM)] * 4,
        out_specs=(pl.BlockSpec(memory_space=pltpu.MemorySpace.VMEM),) * 3,
        scratch_shapes=[pltpu.VMEM((T * B, 4 * H), jnp.float32),   # layer-0 gates
                        pltpu.VMEM((T * B, H), jnp.float32)],      # inter-layer hs
    )
    out_shapes = (
        jax.ShapeDtypeStruct((B, T * H), jnp.float32),       # lane-dense output slab
        jax.ShapeDtypeStruct((L, B, H), jnp.float32),        # hn
        jax.ShapeDtypeStruct((L, B, H), jnp.float32),        # cn
    )
    out_flat, hn, cn = pl.pallas_call(
        kernel, grid_spec=grid_spec, out_shape=out_shapes,
    )(x_tokens.astype(jnp.int32),
      kparams["w_ih0_gather"], kparams["w_ih_up"],
      kparams["w_hh_all"], kparams["b_all"])

    output = out_flat.reshape(B, T, H)                       # batch_first, no transpose
    if not return_full:
        return output
    return output, (hn, cn)


# =============================================================================
# Pure-JAX reference (explicit one-hot path, unscaled params, like PyTorch)
# =============================================================================
def lstm_codon_reference(params, x_tokens):
    H = CODON_HIDDEN
    x = params["one_hot"][x_tokens].astype(jnp.float32)      # (B, T, V)
    B = x.shape[0]
    layer_in = x
    for lp in params["lstm"]:
        w_ih_t, w_hh_t, b = lp["w_ih_t"], lp["w_hh_t"], lp["b"]

        def step(carry, x_t):
            h, c = carry
            gates = x_t @ w_ih_t + h @ w_hh_t + b
            i_g = jax.nn.sigmoid(gates[:, 0 * H:1 * H])
            f_g = jax.nn.sigmoid(gates[:, 1 * H:2 * H])
            g_g = jnp.tanh(gates[:, 2 * H:3 * H])
            o_g = jax.nn.sigmoid(gates[:, 3 * H:4 * H])
            c_new = f_g * c + i_g * g_g
            h_new = o_g * jnp.tanh(c_new)
            return (h_new, c_new), h_new

        h0 = jnp.zeros((B, H), jnp.float32)
        c0 = jnp.zeros((B, H), jnp.float32)
        (_, _), outs = lax.scan(step, (h0, c0), jnp.transpose(layer_in, (1, 0, 2)))
        layer_in = jnp.transpose(outs, (1, 0, 2))
    return layer_in


if __name__ == "__main__":
    key = jax.random.PRNGKey(0)
    pkey, xkey = jax.random.split(key)

    params = init_params(pkey, VOCAB_SIZE, CODON_HIDDEN, CODON_LSTM_LAYERS)
    kparams = prepare_kernel_params(params, CODON_HIDDEN)

    # Codon token ids in [0, VOCAB_SIZE); include some PADDING (=0) positions.
    x_tokens = jax.random.randint(xkey, (BATCH, SEQ), 0, VOCAB_SIZE, dtype=jnp.int32)
    x_tokens = x_tokens.at[:, -1].set(PADDING)

    out, (hn, cn) = lstm_codon_forward(kparams, x_tokens, return_full=True)
    out = jax.block_until_ready(out)
    hn = jax.block_until_ready(hn)
    cn = jax.block_until_ready(cn)

    assert out.shape == (BATCH, SEQ, CODON_HIDDEN)
    assert hn.shape == (CODON_LSTM_LAYERS, BATCH, CODON_HIDDEN)
    assert cn.shape == (CODON_LSTM_LAYERS, BATCH, CODON_HIDDEN)

    ref = jax.block_until_ready(lstm_codon_reference(params, x_tokens))
    np.testing.assert_allclose(np.asarray(out), np.asarray(ref), rtol=1e-5, atol=2e-5)
    # last layer's final hidden state must equal the last timestep of the output
    np.testing.assert_allclose(np.asarray(hn[-1]), np.asarray(out[:, -1, :]),
                               rtol=1e-5, atol=2e-5)

    print("KERNEL_OK")
</pallas_src>

<mosaic_0001>
module attributes {stable_mosaic.version = 11 : i64} {
  func.func @fused_lstm_kernel(%arg0: memref<8x8xi32, #tpu.memory_space<smem>>, %arg1: memref<66x1x128xf32, #tpu.memory_space<vmem>>, %arg2: memref<1x32x128xf32, #tpu.memory_space<vmem>>, %arg3: memref<2x32x128xf32, #tpu.memory_space<vmem>>, %arg4: memref<2x1x128xf32, #tpu.memory_space<vmem>>, %arg5: memref<8x256xf32, #tpu.memory_space<vmem>>, %arg6: memref<2x8x32xf32, #tpu.memory_space<vmem>>, %arg7: memref<2x8x32xf32, #tpu.memory_space<vmem>>, %arg8: memref<64x128xf32, #tpu.memory_space<vmem>>, %arg9: memref<64x32xf32, #tpu.memory_space<vmem>>) attributes {dimension_semantics = [], scalar_prefetch = 1 : i64, scratch_operands = 2 : i64, tpu.core_type = #tpu.core_type<tc>} {
    %c0 = arith.constant 0 : index
    %c0_0 = arith.constant 0 : index
    %0 = memref.load %arg0[%c0, %c0_0] : memref<8x8xi32, #tpu.memory_space<smem>>
    %1 = arith.index_cast %0 : i32 to index
    %c0_1 = arith.constant 0 : index
    %c0_2 = arith.constant 0 : index
    %2 = vector.load %arg1[%1, %c0_1, %c0_2] : memref<66x1x128xf32, #tpu.memory_space<vmem>>, vector<1x1x128xf32>
    %3 = vector.shape_cast %2 : vector<1x1x128xf32> to vector<1x128xf32>
    %c0_3 = arith.constant 0 : index
    %c0_4 = arith.constant 0 : index
    %4 = vector.load %arg8[%c0_3, %c0_4] : memref<64x128xf32, #tpu.memory_space<vmem>>, vector<1x128xf32>
    tpu.vector_store %arg8[%c0_3, %c0_4], %3 {strides = array<i32>} : memref<64x128xf32, #tpu.memory_space<vmem>>, vector<1x128xf32>,
    %c1 = arith.constant 1 : index
    %c0_5 = arith.constant 0 : index
    %5 = memref.load %arg0[%c1, %c0_5] : memref<8x8xi32, #tpu.memory_space<smem>>
    %6 = arith.index_cast %5 : i32 to index
    %c0_6 = arith.constant 0 : index
    %c0_7 = arith.constant 0 : index
    %7 = vector.load %arg1[%6, %c0_6, %c0_7] : memref<66x1x128xf32, #tpu.memory_space<vmem>>, vector<1x1x128xf32>
    %8 = vector.shape_cast %7 : vector<1x1x128xf32> to vector<1x128xf32>
    %c1_8 = arith.constant 1 : index
    %c0_9 = arith.constant 0 : index
    %9 = vector.load %arg8[%c1_8, %c0_9] : memref<64x128xf32, #tpu.memory_space<vmem>>, vector<1x128xf32>
    tpu.vector_store %arg8[%c1_8, %c0_9], %8 {strides = array<i32>} : memref<64x128xf32, #tpu.memory_space<vmem>>, vector<1x128xf32>,
    %c2 = arith.constant 2 : index
    %c0_10 = arith.constant 0 : index
    %10 = memref.load %arg0[%c2, %c0_10] : memref<8x8xi32, #tpu.memory_space<smem>>
    %11 = arith.index_cast %10 : i32 to index
    %c0_11 = arith.constant 0 : index
    %c0_12 = arith.constant 0 : index
    %12 = vector.load %arg1[%11, %c0_11, %c0_12] : memref<66x1x128xf32, #tpu.memory_space<vmem>>, vector<1x1x128xf32>
    %13 = vector.shape_cast %12 : vector<1x1x128xf32> to vector<1x128xf32>
    %c2_13 = arith.constant 2 : index
    %c0_14 = arith.constant 0 : index
    %14 = vector.load %arg8[%c2_13, %c0_14] : memref<64x128xf32, #tpu.memory_space<vmem>>, vector<1x128xf32>
    tpu.vector_store %arg8[%c2_13, %c0_14], %13 {strides = array<i32>} : memref<64x128xf32, #tpu.memory_space<vmem>>, vector<1x128xf32>,
    %c3 = arith.constant 3 : index
    %c0_15 = arith.constant 0 : index
    %15 = memref.load %arg0[%c3, %c0_15] : memref<8x8xi32, #tpu.memory_space<smem>>
    %16 = arith.index_cast %15 : i32 to index
    %c0_16 = arith.constant 0 : index
    %c0_17 = arith.constant 0 : index
    %17 = vector.load %arg1[%16, %c0_16, %c0_17] : memref<66x1x128xf32, #tpu.memory_space<vmem>>, vector<1x1x128xf32>
    %18 = vector.shape_cast %17 : vector<1x1x128xf32> to vector<1x128xf32>
    %c3_18 = arith.constant 3 : index
    %c0_19 = arith.constant 0 : index
    %19 = vector.load %arg8[%c3_18, %c0_19] : memref<64x128xf32, #tpu.memory_space<vmem>>, vector<1x128xf32>
    tpu.vector_store %arg8[%c3_18, %c0_19], %18 {strides = array<i32>} : memref<64x128xf32, #tpu.memory_space<vmem>>, vector<1x128xf32>,
    %c4 = arith.constant 4 : index
    %c0_20 = arith.constant 0 : index
    %20 = memref.load %arg0[%c4, %c0_20] : memref<8x8xi32, #tpu.memory_space<smem>>
    %21 = arith.index_cast %20 : i32 to index
    %c0_21 = arith.constant 0 : index
    %c0_22 = arith.constant 0 : index
    %22 = vector.load %arg1[%21, %c0_21, %c0_22] : memref<66x1x128xf32, #tpu.memory_space<vmem>>, vector<1x1x128xf32>
    %23 = vector.shape_cast %22 : vector<1x1x128xf32> to vector<1x128xf32>
    %c4_23 = arith.constant 4 : index
    %c0_24 = arith.constant 0 : index
    %24 = vector.load %arg8[%c4_23, %c0_24] : memref<64x128xf32, #tpu.memory_space<vmem>>, vector<1x128xf32>
    tpu.vector_store %arg8[%c4_23, %c0_24], %23 {strides = array<i32>} : memref<64x128xf32, #tpu.memory_space<vmem>>, vector<1x128xf32>,
    %c5 = arith.constant 5 : index
    %c0_25 = arith.constant 0 : index
    %25 = memref.load %arg0[%c5, %c0_25] : memref<8x8xi32, #tpu.memory_space<smem>>
    %26 = arith.index_cast %25 : i32 to index
    %c0_26 = arith.constant 0 : index
    %c0_27 = arith.constant 0 : index
    %27 = vector.load %arg1[%26, %c0_26, %c0_27] : memref<66x1x128xf32, #tpu.memory_space<vmem>>, vector<1x1x128xf32>
    %28 = vector.shape_cast %27 : vector<1x1x128xf32> to vector<1x128xf32>
    %c5_28 = arith.constant 5 : index
    %c0_29 = arith.constant 0 : index
    %29 = vector.load %arg8[%c5_28, %c0_29] : memref<64x128xf32, #tpu.memory_space<vmem>>, vector<1x128xf32>
    tpu.vector_store %arg8[%c5_28, %c0_29], %28 {strides = array<i32>} : memref<64x128xf32, #tpu.memory_space<vmem>>, vector<1x128xf32>,
    %c6 = arith.constant 6 : index
    %c0_30 = arith.constant 0 : index
    %30 = memref.load %arg0[%c6, %c0_30] : memref<8x8xi32, #tpu.memory_space<smem>>
    %31 = arith.index_cast %30 : i32 to index
    %c0_31 = arith.constant 0 : index
    %c0_32 = arith.constant 0 : index
    %32 = vector.load %arg1[%31, %c0_31, %c0_32] : memref<66x1x128xf32, #tpu.memory_space<vmem>>, vector<1x1x128xf32>
    %33 = vector.shape_cast %32 : vector<1x1x128xf32> to vector<1x128xf32>
    %c6_33 = arith.constant 6 : index
    %c0_34 = arith.constant 0 : index
    %34 = vector.load %arg8[%c6_33, %c0_34] : memref<64x128xf32, #tpu.memory_space<vmem>>, vector<1x128xf32>
    tpu.vector_store %arg8[%c6_33, %c0_34], %33 {strides = array<i32>} : memref<64x128xf32, #tpu.memory_space<vmem>>, vector<1x128xf32>,
    %c7 = arith.constant 7 : index
    %c0_35 = arith.constant 0 : index
    %35 = memref.load %arg0[%c7, %c0_35] : memref<8x8xi32, #tpu.memory_space<smem>>
    %36 = arith.index_cast %35 : i32 to index
    %c0_36 = arith.constant 0 : index
    %c0_37 = arith.constant 0 : index
    %37 = vector.load %arg1[%36, %c0_36, %c0_37] : memref<66x1x128xf32, #tpu.memory_space<vmem>>, vector<1x1x128xf32>
    %38 = vector.shape_cast %37 : vector<1x1x128xf32> to vector<1x128xf32>
    %c7_38 = arith.constant 7 : index
    %c0_39 = arith.constant 0 : index
    %39 = vector.load %arg8[%c7_38, %c0_39] : memref<64x128xf32, #tpu.memory_space<vmem>>, vector<1x128xf32>
    tpu.vector_store %arg8[%c7_38, %c0_39], %38 {strides = array<i32>} : memref<64x128xf32, #tpu.memory_space<vmem>>, vector<1x128xf32>,
    %c0_40 = arith.constant 0 : index
    %c1_41 = arith.constant 1 : index
    %40 = memref.load %arg0[%c0_40, %c1_41] : memref<8x8xi32, #tpu.memory_space<smem>>
    %41 = arith.index_cast %40 : i32 to index
    %c0_42 = arith.constant 0 : index
    %c0_43 = arith.constant 0 : index
    %42 = vector.load %arg1[%41, %c0_42, %c0_43] : memref<66x1x128xf32, #tpu.memory_space<vmem>>, vector<1x1x128xf32>
    %43 = vector.shape_cast %42 : vector<1x1x128xf32> to vector<1x128xf32>
    %c8 = arith.constant 8 : index
    %c0_44 = arith.constant 0 : index
    %44 = vector.load %arg8[%c8, %c0_44] : memref<64x128xf32, #tpu.memory_space<vmem>>, vector<1x128xf32>
    tpu.vector_store %arg8[%c8, %c0_44], %43 {strides = array<i32>} : memref<64x128xf32, #tpu.memory_space<vmem>>, vector<1x128xf32>,
    %c1_45 = arith.constant 1 : index
    %c1_46 = arith.constant 1 : index
    %45 = memref.load %arg0[%c1_45, %c1_46] : memref<8x8xi32, #tpu.memory_space<smem>>
    %46 = arith.index_cast %45 : i32 to index
    %c0_47 = arith.constant 0 : index
    %c0_48 = arith.constant 0 : index
    %47 = vector.load %arg1[%46, %c0_47, %c0_48] : memref<66x1x128xf32, #tpu.memory_space<vmem>>, vector<1x1x128xf32>
    %48 = vector.shape_cast %47 : vector<1x1x128xf32> to vector<1x128xf32>
    %c9 = arith.constant 9 : index
    %c0_49 = arith.constant 0 : index
    %49 = vector.load %arg8[%c9, %c0_49] : memref<64x128xf32, #tpu.memory_space<vmem>>, vector<1x128xf32>
    tpu.vector_store %arg8[%c9, %c0_49], %48 {strides = array<i32>} : memref<64x128xf32, #tpu.memory_space<vmem>>, vector<1x128xf32>,
    %c2_50 = arith.constant 2 : index
    %c1_51 = arith.constant 1 : index
    %50 = memref.load %arg0[%c2_50, %c1_51] : memref<8x8xi32, #tpu.memory_space<smem>>
    %51 = arith.index_cast %50 : i32 to index
    %c0_52 = arith.constant 0 : index
    %c0_53 = arith.constant 0 : index
    %52 = vector.load %arg1[%51, %c0_52, %c0_53] : memref<66x1x128xf32, #tpu.memory_space<vmem>>, vector<1x1x128xf32>
    %53 = vector.shape_cast %52 : vector<1x1x128xf32> to vector<1x128xf32>
    %c10 = arith.constant 10 : index
    %c0_54 = arith.constant 0 : index
    %54 = vector.load %arg8[%c10, %c0_54] : memref<64x128xf32, #tpu.memory_space<vmem>>, vector<1x128xf32>
    tpu.vector_store %arg8[%c10, %c0_54], %53 {strides = array<i32>} : memref<64x128xf32, #tpu.memory_space<vmem>>, vector<1x128xf32>,
    %c3_55 = arith.constant 3 : index
    %c1_56 = arith.constant 1 : index
    %55 = memref.load %arg0[%c3_55, %c1_56] : memref<8x8xi32, #tpu.memory_space<smem>>
    %56 = arith.index_cast %55 : i32 to index
    %c0_57 = arith.constant 0 : index
    %c0_58 = arith.constant 0 : index
    %57 = vector.load %arg1[%56, %c0_57, %c0_58] : memref<66x1x128xf32, #tpu.memory_space<vmem>>, vector<1x1x128xf32>
    %58 = vector.shape_cast %57 : vector<1x1x128xf32> to vector<1x128xf32>
    %c11 = arith.constant 11 : index
    %c0_59 = arith.constant 0 : index
    %59 = vector.load %arg8[%c11, %c0_59] : memref<64x128xf32, #tpu.memory_space<vmem>>, vector<1x128xf32>
    tpu.vector_store %arg8[%c11, %c0_59], %58 {strides = array<i32>} : memref<64x128xf32, #tpu.memory_space<vmem>>, vector<1x128xf32>,
    %c4_60 = arith.constant 4 : index
    %c1_61 = arith.constant 1 : index
    %60 = memref.load %arg0[%c4_60, %c1_61] : memref<8x8xi32, #tpu.memory_space<smem>>
    %61 = arith.index_cast %60 : i32 to index
    %c0_62 = arith.constant 0 : index
    %c0_63 = arith.constant 0 : index
    %62 = vector.load %arg1[%61, %c0_62, %c0_63] : memref<66x1x128xf32, #tpu.memory_space<vmem>>, vector<1x1x128xf32>
    %63 = vector.shape_cast %62 : vector<1x1x128xf32> to vector<1x128xf32>
    %c12 = arith.constant 12 : index
    %c0_64 = arith.constant 0 : index
    %64 = vector.load %arg8[%c12, %c0_64] : memref<64x128xf32, #tpu.memory_space<vmem>>, vector<1x128xf32>
    tpu.vector_store %arg8[%c12, %c0_64], %63 {strides = array<i32>} : memref<64x128xf32, #tpu.memory_space<vmem>>, vector<1x128xf32>,
    %c5_65 = arith.constant 5 : index
    %c1_66 = arith.constant 1 : index
    %65 = memref.load %arg0[%c5_65, %c1_66] : memref<8x8xi32, #tpu.memory_space<smem>>
    %66 = arith.index_cast %65 : i32 to index
    %c0_67 = arith.constant 0 : index
    %c0_68 = arith.constant 0 : index
    %67 = vector.load %arg1[%66, %c0_67, %c0_68] : memref<66x1x128xf32, #tpu.memory_space<vmem>>, vector<1x1x128xf32>
    %68 = vector.shape_cast %67 : vector<1x1x128xf32> to vector<1x128xf32>
    %c13 = arith.constant 13 : index
    %c0_69 = arith.constant 0 : index
    %69 = vector.load %arg8[%c13, %c0_69] : memref<64x128xf32, #tpu.memory_space<vmem>>, vector<1x128xf32>
    tpu.vector_store %arg8[%c13, %c0_69], %68 {strides = array<i32>} : memref<64x128xf32, #tpu.memory_space<vmem>>, vector<1x128xf32>,
    %c6_70 = arith.constant 6 : index
    %c1_71 = arith.constant 1 : index
    %70 = memref.load %arg0[%c6_70, %c1_71] : memref<8x8xi32, #tpu.memory_space<smem>>
    %71 = arith.index_cast %70 : i32 to index
    %c0_72 = arith.constant 0 : index
    %c0_73 = arith.constant 0 : index
    %72 = vector.load %arg1[%71, %c0_72, %c0_73] : memref<66x1x128xf32, #tpu.memory_space<vmem>>, vector<1x1x128xf32>
    %73 = vector.shape_cast %72 : vector<1x1x128xf32> to vector<1x128xf32>
    %c14 = arith.constant 14 : index
    %c0_74 = arith.constant 0 : index
    %74 = vector.load %arg8[%c14, %c0_74] : memref<64x128xf32, #tpu.memory_space<vmem>>, vector<1x128xf32>
    tpu.vector_store %arg8[%c14, %c0_74], %73 {strides = array<i32>} : memref<64x128xf32, #tpu.memory_space<vmem>>, vector<1x128xf32>,
    %c7_75 = arith.constant 7 : index
    %c1_76 = arith.constant 1 : index
    %75 = memref.load %arg0[%c7_75, %c1_76] : memref<8x8xi32, #tpu.memory_space<smem>>
    %76 = arith.index_cast %75 : i32 to index
    %c0_77 = arith.constant 0 : index
    %c0_78 = arith.constant 0 : index
    %77 = vector.load %arg1[%76, %c0_77, %c0_78] : memref<66x1x128xf32, #tpu.memory_space<vmem>>, vector<1x1x128xf32>
    %78 = vector.shape_cast %77 : vector<1x1x128xf32> to vector<1x128xf32>
    %c15 = arith.constant 15 : index
    %c0_79 = arith.constant 0 : index
    %79 = vector.load %arg8[%c15, %c0_79] : memref<64x128xf32, #tpu.memory_space<vmem>>, vector<1x128xf32>
    tpu.vector_store %arg8[%c15, %c0_79], %78 {strides = array<i32>} : memref<64x128xf32, #tpu.memory_space<vmem>>, vector<1x128xf32>,
    %c0_80 = arith.constant 0 : index
    %c2_81 = arith.constant 2 : index
    %80 = memref.load %arg0[%c0_80, %c2_81] : memref<8x8xi32, #tpu.memory_space<smem>>
    %81 = arith.index_cast %80 : i32 to index
    %c0_82 = arith.constant 0 : index
    %c0_83 = arith.constant 0 : index
    %82 = vector.load %arg1[%81, %c0_82, %c0_83] : memref<66x1x128xf32, #tpu.memory_space<vmem>>, vector<1x1x128xf32>
    %83 = vector.shape_cast %82 : vector<1x1x128xf32> to vector<1x128xf32>
    %c16 = arith.constant 16 : index
    %c0_84 = arith.constant 0 : index
    %84 = vector.load %arg8[%c16, %c0_84] : memref<64x128xf32, #tpu.memory_space<vmem>>, vector<1x128xf32>
    tpu.vector_store %arg8[%c16, %c0_84], %83 {strides = array<i32>} : memref<64x128xf32, #tpu.memory_space<vmem>>, vector<1x128xf32>,
    %c1_85 = arith.constant 1 : index
    %c2_86 = arith.constant 2 : index
    %85 = memref.load %arg0[%c1_85, %c2_86] : memref<8x8xi32, #tpu.memory_space<smem>>
    %86 = arith.index_cast %85 : i32 to index
    %c0_87 = arith.constant 0 : index
    %c0_88 = arith.constant 0 : index
    %87 = vector.load %arg1[%86, %c0_87, %c0_88] : memref<66x1x128xf32, #tpu.memory_space<vmem>>, vector<1x1x128xf32>
    %88 = vector.shape_cast %87 : vector<1x1x128xf32> to vector<1x128xf32>
    %c17 = arith.constant 17 : index
    %c0_89 = arith.constant 0 : index
    %89 = vector.load %arg8[%c17, %c0_89] : memref<64x128xf32, #tpu.memory_space<vmem>>, vector<1x128xf32>
    tpu.vector_store %arg8[%c17, %c0_89], %88 {strides = array<i32>} : memref<64x128xf32, #tpu.memory_space<vmem>>, vector<1x128xf32>,
    %c2_90 = arith.constant 2 : index
    %c2_91 = arith.constant 2 : index
    %90 = memref.load %arg0[%c2_90, %c2_91] : memref<8x8xi32, #tpu.memory_space<smem>>
    %91 = arith.index_cast %90 : i32 to index
    %c0_92 = arith.constant 0 : index
    %c0_93 = arith.constant 0 : index
    %92 = vector.load %arg1[%91, %c0_92, %c0_93] : memref<66x1x128xf32, #tpu.memory_space<vmem>>, vector<1x1x128xf32>
    %93 = vector.shape_cast %92 : vector<1x1x128xf32> to vector<1x128xf32>
    %c18 = arith.constant 18 : index
    %c0_94 = arith.constant 0 : index
    %94 = vector.load %arg8[%c18, %c0_94] : memref<64x128xf32, #tpu.memory_space<vmem>>, vector<1x128xf32>
    tpu.vector_store %arg8[%c18, %c0_94], %93 {strides = array<i32>} : memref<64x128xf32, #tpu.memory_space<vmem>>, vector<1x128xf32>,
    %c3_95 = arith.constant 3 : index
    %c2_96 = arith.constant 2 : index
    %95 = memref.load %arg0[%c3_95, %c2_96] : memref<8x8xi32, #tpu.memory_space<smem>>
    %96 = arith.index_cast %95 : i32 to index
    %c0_97 = arith.constant 0 : index
    %c0_98 = arith.constant 0 : index
    %97 = vector.load %arg1[%96, %c0_97, %c0_98] : memref<66x1x128xf32, #tpu.memory_space<vmem>>, vector<1x1x128xf32>
    %98 = vector.shape_cast %97 : vector<1x1x128xf32> to vector<1x128xf32>
    %c19 = arith.constant 19 : index
    %c0_99 = arith.constant 0 : index
    %99 = vector.load %arg8[%c19, %c0_99] : memref<64x128xf32, #tpu.memory_space<vmem>>, vector<1x128xf32>
    tpu.vector_store %arg8[%c19, %c0_99], %98 {strides = array<i32>} : memref<64x128xf32, #tpu.memory_space<vmem>>, vector<1x128xf32>,
    %c4_100 = arith.constant 4 : index
    %c2_101 = arith.constant 2 : index
    %100 = memref.load %arg0[%c4_100, %c2_101] : memref<8x8xi32, #tpu.memory_space<smem>>
    %101 = arith.index_cast %100 : i32 to index
    %c0_102 = arith.constant 0 : index
    %c0_103 = arith.constant 0 : index
    %102 = vector.load %arg1[%101, %c0_102, %c0_103] : memref<66x1x128xf32, #tpu.memory_space<vmem>>, vector<1x1x128xf32>
    %103 = vector.shape_cast %102 : vector<1x1x128xf32> to vector<1x128xf32>
    %c20 = arith.constant 20 : index
    %c0_104 = arith.constant 0 : index
    %104 = vector.load %arg8[%c20, %c0_104] : memref<64x128xf32, #tpu.memory_space<vmem>>, vector<1x128xf32>
    tpu.vector_store %arg8[%c20, %c0_104], %103 {strides = array<i32>} : memref<64x128xf32, #tpu.memory_space<vmem>>, vector<1x128xf32>,
    %c5_105 = arith.constant 5 : index
    %c2_106 = arith.constant 2 : index
    %105 = memref.load %arg0[%c5_105, %c2_106] : memref<8x8xi32, #tpu.memory_space<smem>>
    %106 = arith.index_cast %105 : i32 to index
    %c0_107 = arith.constant 0 : index
    %c0_108 = arith.constant 0 : index
    %107 = vector.load %arg1[%106, %c0_107, %c0_108] : memref<66x1x128xf32, #tpu.memory_space<vmem>>, vector<1x1x128xf32>
    %108 = vector.shape_cast %107 : vector<1x1x128xf32> to vector<1x128xf32>
    %c21 = arith.constant 21 : index
    %c0_109 = arith.constant 0 : index
    %109 = vector.load %arg8[%c21, %c0_109] : memref<64x128xf32, #tpu.memory_space<vmem>>, vector<1x128xf32>
    tpu.vector_store %arg8[%c21, %c0_109], %108 {strides = array<i32>} : memref<64x128xf32, #tpu.memory_space<vmem>>, vector<1x128xf32>,
    %c6_110 = arith.constant 6 : index
    %c2_111 = arith.constant 2 : index
    %110 = memref.load %arg0[%c6_110, %c2_111] : memref<8x8xi32, #tpu.memory_space<smem>>
    %111 = arith.index_cast %110 : i32 to index
    %c0_112 = arith.constant 0 : index
    %c0_113 = arith.constant 0 : index
    %112 = vector.load %arg1[%111, %c0_112, %c0_113] : memref<66x1x128xf32, #tpu.memory_space<vmem>>, vector<1x1x128xf32>
    %113 = vector.shape_cast %112 : vector<1x1x128xf32> to vector<1x128xf32>
    %c22 = arith.constant 22 : index
    %c0_114 = arith.constant 0 : index
    %114 = vector.load %arg8[%c22, %c0_114] : memref<64x128xf32, #tpu.memory_space<vmem>>, vector<1x128xf32>
    tpu.vector_store %arg8[%c22, %c0_114], %113 {strides = array<i32>} : memref<64x128xf32, #tpu.memory_space<vmem>>, vector<1x128xf32>,
    %c7_115 = arith.constant 7 : index
    %c2_116 = arith.constant 2 : index
    %115 = memref.load %arg0[%c7_115, %c2_116] : memref<8x8xi32, #tpu.memory_space<smem>>
    %116 = arith.index_cast %115 : i32 to index
    %c0_117 = arith.constant 0 : index
    %c0_118 = arith.constant 0 : index
    %117 = vector.load %arg1[%116, %c0_117, %c0_118] : memref<66x1x128xf32, #tpu.memory_space<vmem>>, vector<1x1x128xf32>
    %118 = vector.shape_cast %117 : vector<1x1x128xf32> to vector<1x128xf32>
    %c23 = arith.constant 23 : index
    %c0_119 = arith.constant 0 : index
    %119 = vector.load %arg8[%c23, %c0_119] : memref<64x128xf32, #tpu.memory_space<vmem>>, vector<1x128xf32>
    tpu.vector_store %arg8[%c23, %c0_119], %118 {strides = array<i32>} : memref<64x128xf32, #tpu.memory_space<vmem>>, vector<1x128xf32>,
    %c0_120 = arith.constant 0 : index
    %c3_121 = arith.constant 3 : index
    %120 = memref.load %arg0[%c0_120, %c3_121] : memref<8x8xi32, #tpu.memory_space<smem>>
    %121 = arith.index_cast %120 : i32 to index
    %c0_122 = arith.constant 0 : index
    %c0_123 = arith.constant 0 : index
    %122 = vector.load %arg1[%121, %c0_122, %c0_123] : memref<66x1x128xf32, #tpu.memory_space<vmem>>, vector<1x1x128xf32>
    %123 = vector.shape_cast %122 : vector<1x1x128xf32> to vector<1x128xf32>
    %c24 = arith.constant 24 : index
    %c0_124 = arith.constant 0 : index
    %124 = vector.load %arg8[%c24, %c0_124] : memref<64x128xf32, #tpu.memory_space<vmem>>, vector<1x128xf32>
    tpu.vector_store %arg8[%c24, %c0_124], %123 {strides = array<i32>} : memref<64x128xf32, #tpu.memory_space<vmem>>, vector<1x128xf32>,
    %c1_125 = arith.constant 1 : index
    %c3_126 = arith.constant 3 : index
    %125 = memref.load %arg0[%c1_125, %c3_126] : memref<8x8xi32, #tpu.memory_space<smem>>
    %126 = arith.index_cast %125 : i32 to index
    %c0_127 = arith.constant 0 : index
    %c0_128 = arith.constant 0 : index
    %127 = vector.load %arg1[%126, %c0_127, %c0_128] : memref<66x1x128xf32, #tpu.memory_space<vmem>>, vector<1x1x128xf32>
    %128 = vector.shape_cast %127 : vector<1x1x128xf32> to vector<1x128xf32>
    %c25 = arith.constant 25 : index
    %c0_129 = arith.constant 0 : index
    %129 = vector.load %arg8[%c25, %c0_129] : memref<64x128xf32, #tpu.memory_space<vmem>>, vector<1x128xf32>
    tpu.vector_store %arg8[%c25, %c0_129], %128 {strides = array<i32>} : memref<64x128xf32, #tpu.memory_space<vmem>>, vector<1x128xf32>,
    %c2_130 = arith.constant 2 : index
    %c3_131 = arith.constant 3 : index
    %130 = memref.load %arg0[%c2_130, %c3_131] : memref<8x8xi32, #tpu.memory_space<smem>>
    %131 = arith.index_cast %130 : i32 to index
    %c0_132 = arith.constant 0 : index
    %c0_133 = arith.constant 0 : index
    %132 = vector.load %arg1[%131, %c0_132, %c0_133] : memref<66x1x128xf32, #tpu.memory_space<vmem>>, vector<1x1x128xf32>
    %133 = vector.shape_cast %132 : vector<1x1x128xf32> to vector<1x128xf32>
    %c26 = arith.constant 26 : index
    %c0_134 = arith.constant 0 : index
    %134 = vector.load %arg8[%c26, %c0_134] : memref<64x128xf32, #tpu.memory_space<vmem>>, vector<1x128xf32>
    tpu.vector_store %arg8[%c26, %c0_134], %133 {strides = array<i32>} : memref<64x128xf32, #tpu.memory_space<vmem>>, vector<1x128xf32>,
    %c3_135 = arith.constant 3 : index
    %c3_136 = arith.constant 3 : index
    %135 = memref.load %arg0[%c3_135, %c3_136] : memref<8x8xi32, #tpu.memory_space<smem>>
    %136 = arith.index_cast %135 : i32 to index
    %c0_137 = arith.constant 0 : index
    %c0_138 = arith.constant 0 : index
    %137 = vector.load %arg1[%136, %c0_137, %c0_138] : memref<66x1x128xf32, #tpu.memory_space<vmem>>, vector<1x1x128xf32>
    %138 = vector.shape_cast %137 : vector<1x1x128xf32> to vector<1x128xf32>
    %c27 = arith.constant 27 : index
    %c0_139 = arith.constant 0 : index
    %139 = vector.load %arg8[%c27, %c0_139] : memref<64x128xf32, #tpu.memory_space<vmem>>, vector<1x128xf32>
    tpu.vector_store %arg8[%c27, %c0_139], %138 {strides = array<i32>} : memref<64x128xf32, #tpu.memory_space<vmem>>, vector<1x128xf32>,
    %c4_140 = arith.constant 4 : index
    %c3_141 = arith.constant 3 : index
    %140 = memref.load %arg0[%c4_140, %c3_141] : memref<8x8xi32, #tpu.memory_space<smem>>
    %141 = arith.index_cast %140 : i32 to index
    %c0_142 = arith.constant 0 : index
    %c0_143 = arith.constant 0 : index
    %142 = vector.load %arg1[%141, %c0_142, %c0_143] : memref<66x1x128xf32, #tpu.memory_space<vmem>>, vector<1x1x128xf32>
    %143 = vector.shape_cast %142 : vector<1x1x128xf32> to vector<1x128xf32>
    %c28 = arith.constant 28 : index
    %c0_144 = arith.constant 0 : index
    %144 = vector.load %arg8[%c28, %c0_144] : memref<64x128xf32, #tpu.memory_space<vmem>>, vector<1x128xf32>
    tpu.vector_store %arg8[%c28, %c0_144], %143 {strides = array<i32>} : memref<64x128xf32, #tpu.memory_space<vmem>>, vector<1x128xf32>,
    %c5_145 = arith.constant 5 : index
    %c3_146 = arith.constant 3 : index
    %145 = memref.load %arg0[%c5_145, %c3_146] : memref<8x8xi32, #tpu.memory_space<smem>>
    %146 = arith.index_cast %145 : i32 to index
    %c0_147 = arith.constant 0 : index
    %c0_148 = arith.constant 0 : index
    %147 = vector.load %arg1[%146, %c0_147, %c0_148] : memref<66x1x128xf32, #tpu.memory_space<vmem>>, vector<1x1x128xf32>
    %148 = vector.shape_cast %147 : vector<1x1x128xf32> to vector<1x128xf32>
    %c29 = arith.constant 29 : index
    %c0_149 = arith.constant 0 : index
    %149 = vector.load %arg8[%c29, %c0_149] : memref<64x128xf32, #tpu.memory_space<vmem>>, vector<1x128xf32>
    tpu.vector_store %arg8[%c29, %c0_149], %148 {strides = array<i32>} : memref<64x128xf32, #tpu.memory_space<vmem>>, vector<1x128xf32>,
    %c6_150 = arith.constant 6 : index
    %c3_151 = arith.constant 3 : index
    %150 = memref.load %arg0[%c6_150, %c3_151] : memref<8x8xi32, #tpu.memory_space<smem>>
    %151 = arith.index_cast %150 : i32 to index
    %c0_152 = arith.constant 0 : index
    %c0_153 = arith.constant 0 : index
    %152 = vector.load %arg1[%151, %c0_152, %c0_153] : memref<66x1x128xf32, #tpu.memory_space<vmem>>, vector<1x1x128xf32>
    %153 = vector.shape_cast %152 : vector<1x1x128xf32> to vector<1x128xf32>
    %c30 = arith.constant 30 : index
    %c0_154 = arith.constant 0 : index
    %154 = vector.load %arg8[%c30, %c0_154] : memref<64x128xf32, #tpu.memory_space<vmem>>, vector<1x128xf32>
    tpu.vector_store %arg8[%c30, %c0_154], %153 {strides = array<i32>} : memref<64x128xf32, #tpu.memory_space<vmem>>, vector<1x128xf32>,
    %c7_155 = arith.constant 7 : index
    %c3_156 = arith.constant 3 : index
    %155 = memref.load %arg0[%c7_155, %c3_156] : memref<8x8xi32, #tpu.memory_space<smem>>
    %156 = arith.index_cast %155 : i32 to index
    %c0_157 = arith.constant 0 : index
    %c0_158 = arith.constant 0 : index
    %157 = vector.load %arg1[%156, %c0_157, %c0_158] : memref<66x1x128xf32, #tpu.memory_space<vmem>>, vector<1x1x128xf32>
    %158 = vector.shape_cast %157 : vector<1x1x128xf32> to vector<1x128xf32>
    %c31 = arith.constant 31 : index
    %c0_159 = arith.constant 0 : index
    %159 = vector.load %arg8[%c31, %c0_159] : memref<64x128xf32, #tpu.memory_space<vmem>>, vector<1x128xf32>
    tpu.vector_store %arg8[%c31, %c0_159], %158 {strides = array<i32>} : memref<64x128xf32, #tpu.memory_space<vmem>>, vector<1x128xf32>,
    %c0_160 = arith.constant 0 : index
    %c4_161 = arith.constant 4 : index
    %160 = memref.load %arg0[%c0_160, %c4_161] : memref<8x8xi32, #tpu.memory_space<smem>>
    %161 = arith.index_cast %160 : i32 to index
    %c0_162 = arith.constant 0 : index
    %c0_163 = arith.constant 0 : index
    %162 = vector.load %arg1[%161, %c0_162, %c0_163] : memref<66x1x128xf32, #tpu.memory_space<vmem>>, vector<1x1x128xf32>
    %163 = vector.shape_cast %162 : vector<1x1x128xf32> to vector<1x128xf32>
    %c32 = arith.constant 32 : index
    %c0_164 = arith.constant 0 : index
    %164 = vector.load %arg8[%c32, %c0_164] : memref<64x128xf32, #tpu.memory_space<vmem>>, vector<1x128xf32>
    tpu.vector_store %arg8[%c32, %c0_164], %163 {strides = array<i32>} : memref<64x128xf32, #tpu.memory_space<vmem>>, vector<1x128xf32>,
    %c1_165 = arith.constant 1 : index
    %c4_166 = arith.constant 4 : index
    %165 = memref.load %arg0[%c1_165, %c4_166] : memref<8x8xi32, #tpu.memory_space<smem>>
    %166 = arith.index_cast %165 : i32 to index
    %c0_167 = arith.constant 0 : index
    %c0_168 = arith.constant 0 : index
    %167 = vector.load %arg1[%166, %c0_167, %c0_168] : memref<66x1x128xf32, #tpu.memory_space<vmem>>, vector<1x1x128xf32>
    %168 = vector.shape_cast %167 : vector<1x1x128xf32> to vector<1x128xf32>
    %c33 = arith.constant 33 : index
    %c0_169 = arith.constant 0 : index
    %169 = vector.load %arg8[%c33, %c0_169] : memref<64x128xf32, #tpu.memory_space<vmem>>, vector<1x128xf32>
    tpu.vector_store %arg8[%c33, %c0_169], %168 {strides = array<i32>} : memref<64x128xf32, #tpu.memory_space<vmem>>, vector<1x128xf32>,
    %c2_170 = arith.constant 2 : index
    %c4_171 = arith.constant 4 : index
    %170 = memref.load %arg0[%c2_170, %c4_171] : memref<8x8xi32, #tpu.memory_space<smem>>
    %171 = arith.index_cast %170 : i32 to index
    %c0_172 = arith.constant 0 : index
    %c0_173 = arith.constant 0 : index
    %172 = vector.load %arg1[%171, %c0_172, %c0_173] : memref<66x1x128xf32, #tpu.memory_space<vmem>>, vector<1x1x128xf32>
    %173 = vector.shape_cast %172 : vector<1x1x128xf32> to vector<1x128xf32>
    %c34 = arith.constant 34 : index
    %c0_174 = arith.constant 0 : index
    %174 = vector.load %arg8[%c34, %c0_174] : memref<64x128xf32, #tpu.memory_space<vmem>>, vector<1x128xf32>
    tpu.vector_store %arg8[%c34, %c0_174], %173 {strides = array<i32>} : memref<64x128xf32, #tpu.memory_space<vmem>>, vector<1x128xf32>,
    %c3_175 = arith.constant 3 : index
    %c4_176 = arith.constant 4 : index
    %175 = memref.load %arg0[%c3_175, %c4_176] : memref<8x8xi32, #tpu.memory_space<smem>>
    %176 = arith.index_cast %175 : i32 to index
    %c0_177 = arith.constant 0 : index
    %c0_178 = arith.constant 0 : index
    %177 = vector.load %arg1[%176, %c0_177, %c0_178] : memref<66x1x128xf32, #tpu.memory_space<vmem>>, vector<1x1x128xf32>
    %178 = vector.shape_cast %177 : vector<1x1x128xf32> to vector<1x128xf32>
    %c35 = arith.constant 35 : index
    %c0_179 = arith.constant 0 : index
    %179 = vector.load %arg8[%c35, %c0_179] : memref<64x128xf32, #tpu.memory_space<vmem>>, vector<1x128xf32>
    tpu.vector_store %arg8[%c35, %c0_179], %178 {strides = array<i32>} : memref<64x128xf32, #tpu.memory_space<vmem>>, vector<1x128xf32>,
    %c4_180 = arith.constant 4 : index
    %c4_181 = arith.constant 4 : index
    %180 = memref.load %arg0[%c4_180, %c4_181] : memref<8x8xi32, #tpu.memory_space<smem>>
    %181 = arith.index_cast %180 : i32 to index
    %c0_182 = arith.constant 0 : index
    %c0_183 = arith.constant 0 : index
    %182 = vector.load %arg1[%181, %c0_182, %c0_183] : memref<66x1x128xf32, #tpu.memory_space<vmem>>, vector<1x1x128xf32>
    %183 = vector.shape_cast %182 : vector<1x1x128xf32> to vector<1x128xf32>
    %c36 = arith.constant 36 : index
    %c0_184 = arith.constant 0 : index
    %184 = vector.load %arg8[%c36, %c0_184] : memref<64x128xf32, #tpu.memory_space<vmem>>, vector<1x128xf32>
    tpu.vector_store %arg8[%c36, %c0_184], %183 {strides = array<i32>} : memref<64x128xf32, #tpu.memory_space<vmem>>, vector<1x128xf32>,
    %c5_185 = arith.constant 5 : index
    %c4_186 = arith.constant 4 : index
    %185 = memref.load %arg0[%c5_185, %c4_186] : memref<8x8xi32, #tpu.memory_space<smem>>
    %186 = arith.index_cast %185 : i32 to index
    %c0_187 = arith.constant 0 : index
    %c0_188 = arith.constant 0 : index
    %187 = vector.load %arg1[%186, %c0_187, %c0_188] : memref<66x1x128xf32, #tpu.memory_space<vmem>>, vector<1x1x128xf32>
    %188 = vector.shape_cast %187 : vector<1x1x128xf32> to vector<1x128xf32>
    %c37 = arith.constant 37 : index
    %c0_189 = arith.constant 0 : index
    %189 = vector.load %arg8[%c37, %c0_189] : memref<64x128xf32, #tpu.memory_space<vmem>>, vector<1x128xf32>
    tpu.vector_store %arg8[%c37, %c0_189], %188 {strides = array<i32>} : memref<64x128xf32, #tpu.memory_space<vmem>>, vector<1x128xf32>,
    %c6_190 = arith.constant 6 : index
    %c4_191 = arith.constant 4 : index
    %190 = memref.load %arg0[%c6_190, %c4_191] : memref<8x8xi32, #tpu.memory_space<smem>>
    %191 = arith.index_cast %190 : i32 to index
    %c0_192 = arith.constant 0 : index
    %c0_193 = arith.constant 0 : index
    %192 = vector.load %arg1[%191, %c0_192, %c0_193] : memref<66x1x128xf32, #tpu.memory_space<vmem>>, vector<1x1x128xf32>
    %193 = vector.shape_cast %192 : vector<1x1x128xf32> to vector<1x128xf32>
    %c38 = arith.constant 38 : index
    %c0_194 = arith.constant 0 : index
    %194 = vector.load %arg8[%c38, %c0_194] : memref<64x128xf32, #tpu.memory_space<vmem>>, vector<1x128xf32>
    tpu.vector_store %arg8[%c38, %c0_194], %193 {strides = array<i32>} : memref<64x128xf32, #tpu.memory_space<vmem>>, vector<1x128xf32>,
    %c7_195 = arith.constant 7 : index
    %c4_196 = arith.constant 4 : index
    %195 = memref.load %arg0[%c7_195, %c4_196] : memref<8x8xi32, #tpu.memory_space<smem>>
    %196 = arith.index_cast %195 : i32 to index
    %c0_197 = arith.constant 0 : index
    %c0_198 = arith.constant 0 : index
    %197 = vector.load %arg1[%196, %c0_197, %c0_198] : memref<66x1x128xf32, #tpu.memory_space<vmem>>, vector<1x1x128xf32>
    %198 = vector.shape_cast %197 : vector<1x1x128xf32> to vector<1x128xf32>
    %c39 = arith.constant 39 : index
    %c0_199 = arith.constant 0 : index
    %199 = vector.load %arg8[%c39, %c0_199] : memref<64x128xf32, #tpu.memory_space<vmem>>, vector<1x128xf32>
    tpu.vector_store %arg8[%c39, %c0_199], %198 {strides = array<i32>} : memref<64x128xf32, #tpu.memory_space<vmem>>, vector<1x128xf32>,
    %c0_200 = arith.constant 0 : index
    %c5_201 = arith.constant 5 : index
    %200 = memref.load %arg0[%c0_200, %c5_201] : memref<8x8xi32, #tpu.memory_space<smem>>
    %201 = arith.index_cast %200 : i32 to index
    %c0_202 = arith.constant 0 : index
    %c0_203 = arith.constant 0 : index
    %202 = vector.load %arg1[%201, %c0_202, %c0_203] : memref<66x1x128xf32, #tpu.memory_space<vmem>>, vector<1x1x128xf32>
    %203 = vector.shape_cast %202 : vector<1x1x128xf32> to vector<1x128xf32>
    %c40 = arith.constant 40 : index
    %c0_204 = arith.constant 0 : index
    %204 = vector.load %arg8[%c40, %c0_204] : memref<64x128xf32, #tpu.memory_space<vmem>>, vector<1x128xf32>
    tpu.vector_store %arg8[%c40, %c0_204], %203 {strides = array<i32>} : memref<64x128xf32, #tpu.memory_space<vmem>>, vector<1x128xf32>,
    %c1_205 = arith.constant 1 : index
    %c5_206 = arith.constant 5 : index
    %205 = memref.load %arg0[%c1_205, %c5_206] : memref<8x8xi32, #tpu.memory_space<smem>>
    %206 = arith.index_cast %205 : i32 to index
    %c0_207 = arith.constant 0 : index
    %c0_208 = arith.constant 0 : index
    %207 = vector.load %arg1[%206, %c0_207, %c0_208] : memref<66x1x128xf32, #tpu.memory_space<vmem>>, vector<1x1x128xf32>
    %208 = vector.shape_cast %207 : vector<1x1x128xf32> to vector<1x128xf32>
    %c41 = arith.constant 41 : index
    %c0_209 = arith.constant 0 : index
    %209 = vector.load %arg8[%c41, %c0_209] : memref<64x128xf32, #tpu.memory_space<vmem>>, vector<1x128xf32>
    tpu.vector_store %arg8[%c41, %c0_209], %208 {strides = array<i32>} : memref<64x128xf32, #tpu.memory_space<vmem>>, vector<1x128xf32>,
    %c2_210 = arith.constant 2 : index
    %c5_211 = arith.constant 5 : index
    %210 = memref.load %arg0[%c2_210, %c5_211] : memref<8x8xi32, #tpu.memory_space<smem>>
    %211 = arith.index_cast %210 : i32 to index
    %c0_212 = arith.constant 0 : index
    %c0_213 = arith.constant 0 : index
    %212 = vector.load %arg1[%211, %c0_212, %c0_213] : memref<66x1x128xf32, #tpu.memory_space<vmem>>, vector<1x1x128xf32>
    %213 = vector.shape_cast %212 : vector<1x1x128xf32> to vector<1x128xf32>
    %c42 = arith.constant 42 : index
    %c0_214 = arith.constant 0 : index
    %214 = vector.load %arg8[%c42, %c0_214] : memref<64x128xf32, #tpu.memory_space<vmem>>, vector<1x128xf32>
    tpu.vector_store %arg8[%c42, %c0_214], %213 {strides = array<i32>} : memref<64x128xf32, #tpu.memory_space<vmem>>, vector<1x128xf32>,
    %c3_215 = arith.constant 3 : index
    %c5_216 = arith.constant 5 : index
    %215 = memref.load %arg0[%c3_215, %c5_216] : memref<8x8xi32, #tpu.memory_space<smem>>
    %216 = arith.index_cast %215 : i32 to index
    %c0_217 = arith.constant 0 : index
    %c0_218 = arith.constant 0 : index
    %217 = vector.load %arg1[%216, %c0_217, %c0_218] : memref<66x1x128xf32, #tpu.memory_space<vmem>>, vector<1x1x128xf32>
    %218 = vector.shape_cast %217 : vector<1x1x128xf32> to vector<1x128xf32>
    %c43 = arith.constant 43 : index
    %c0_219 = arith.constant 0 : index
    %219 = vector.load %arg8[%c43, %c0_219] : memref<64x128xf32, #tpu.memory_space<vmem>>, vector<1x128xf32>
    tpu.vector_store %arg8[%c43, %c0_219], %218 {strides = array<i32>} : memref<64x128xf32, #tpu.memory_space<vmem>>, vector<1x128xf32>,
    %c4_220 = arith.constant 4 : index
    %c5_221 = arith.constant 5 : index
    %220 = memref.load %arg0[%c4_220, %c5_221] : memref<8x8xi32, #tpu.memory_space<smem>>
    %221 = arith.index_cast %220 : i32 to index
    %c0_222 = arith.constant 0 : index
    %c0_223 = arith.constant 0 : index
    %222 = vector.load %arg1[%221, %c0_222, %c0_223] : memref<66x1x128xf32, #tpu.memory_space<vmem>>, vector<1x1x128xf32>
    %223 = vector.shape_cast %222 : vector<1x1x128xf32> to vector<1x128xf32>
    %c44 = arith.constant 44 : index
    %c0_224 = arith.constant 0 : index
    %224 = vector.load %arg8[%c44, %c0_224] : memref<64x128xf32, #tpu.memory_space<vmem>>, vector<1x128xf32>
    tpu.vector_store %arg8[%c44, %c0_224], %223 {strides = array<i32>} : memref<64x128xf32, #tpu.memory_space<vmem>>, vector<1x128xf32>,
    %c5_225 = arith.constant 5 : index
    %c5_226 = arith.constant 5 : index
    %225 = memref.load %arg0[%c5_225, %c5_226] : memref<8x8xi32, #tpu.memory_space<smem>>
    %226 = arith.index_cast %225 : i32 to index
    %c0_227 = arith.constant 0 : index
    %c0_228 = arith.constant 0 : index
    %227 = vector.load %arg1[%226, %c0_227, %c0_228] : memref<66x1x128xf32, #tpu.memory_space<vmem>>, vector<1x1x128xf32>
    %228 = vector.shape_cast %227 : vector<1x1x128xf32> to vector<1x128xf32>
    %c45 = arith.constant 45 : index
    %c0_229 = arith.constant 0 : index
    %229 = vector.load %arg8[%c45, %c0_229] : memref<64x128xf32, #tpu.memory_space<vmem>>, vector<1x128xf32>
    tpu.vector_store %arg8[%c45, %c0_229], %228 {strides = array<i32>} : memref<64x128xf32, #tpu.memory_space<vmem>>, vector<1x128xf32>,
    %c6_230 = arith.constant 6 : index
    %c5_231 = arith.constant 5 : index
    %230 = memref.load %arg0[%c6_230, %c5_231] : memref<8x8xi32, #tpu.memory_space<smem>>
    %231 = arith.index_cast %230 : i32 to index
    %c0_232 = arith.constant 0 : index
    %c0_233 = arith.constant 0 : index
    %232 = vector.load %arg1[%231, %c0_232, %c0_233] : memref<66x1x128xf32, #tpu.memory_space<vmem>>, vector<1x1x128xf32>
    %233 = vector.shape_cast %232 : vector<1x1x128xf32> to vector<1x128xf32>
    %c46 = arith.constant 46 : index
    %c0_234 = arith.constant 0 : index
    %234 = vector.load %arg8[%c46, %c0_234] : memref<64x128xf32, #tpu.memory_space<vmem>>, vector<1x128xf32>
    tpu.vector_store %arg8[%c46, %c0_234], %233 {strides = array<i32>} : memref<64x128xf32, #tpu.memory_space<vmem>>, vector<1x128xf32>,
    %c7_235 = arith.constant 7 : index
    %c5_236 = arith.constant 5 : index
    %235 = memref.load %arg0[%c7_235, %c5_236] : memref<8x8xi32, #tpu.memory_space<smem>>
    %236 = arith.index_cast %235 : i32 to index
    %c0_237 = arith.constant 0 : index
    %c0_238 = arith.constant 0 : index
    %237 = vector.load %arg1[%236, %c0_237, %c0_238] : memref<66x1x128xf32, #tpu.memory_space<vmem>>, vector<1x1x128xf32>
    %238 = vector.shape_cast %237 : vector<1x1x128xf32> to vector<1x128xf32>
    %c47 = arith.constant 47 : index
    %c0_239 = arith.constant 0 : index
    %239 = vector.load %arg8[%c47, %c0_239] : memref<64x128xf32, #tpu.memory_space<vmem>>, vector<1x128xf32>
    tpu.vector_store %arg8[%c47, %c0_239], %238 {strides = array<i32>} : memref<64x128xf32, #tpu.memory_space<vmem>>, vector<1x128xf32>,
    %c0_240 = arith.constant 0 : index
    %c6_241 = arith.constant 6 : index
    %240 = memref.load %arg0[%c0_240, %c6_241] : memref<8x8xi32, #tpu.memory_space<smem>>
    %241 = arith.index_cast %240 : i32 to index
    %c0_242 = arith.constant 0 : index
    %c0_243 = arith.constant 0 : index
    %242 = vector.load %arg1[%241, %c0_242, %c0_243] : memref<66x1x128xf32, #tpu.memory_space<vmem>>, vector<1x1x128xf32>
    %243 = vector.shape_cast %242 : vector<1x1x128xf32> to vector<1x128xf32>
    %c48 = arith.constant 48 : index
    %c0_244 = arith.constant 0 : index
    %244 = vector.load %arg8[%c48, %c0_244] : memref<64x128xf32, #tpu.memory_space<vmem>>, vector<1x128xf32>
    tpu.vector_store %arg8[%c48, %c0_244], %243 {strides = array<i32>} : memref<64x128xf32, #tpu.memory_space<vmem>>, vector<1x128xf32>,
    %c1_245 = arith.constant 1 : index
    %c6_246 = arith.constant 6 : index
    %245 = memref.load %arg0[%c1_245, %c6_246] : memref<8x8xi32, #tpu.memory_space<smem>>
    %246 = arith.index_cast %245 : i32 to index
    %c0_247 = arith.constant 0 : index
    %c0_248 = arith.constant 0 : index
    %247 = vector.load %arg1[%246, %c0_247, %c0_248] : memref<66x1x128xf32, #tpu.memory_space<vmem>>, vector<1x1x128xf32>
    %248 = vector.shape_cast %247 : vector<1x1x128xf32> to vector<1x128xf32>
    %c49 = arith.constant 49 : index
    %c0_249 = arith.constant 0 : index
    %249 = vector.load %arg8[%c49, %c0_249] : memref<64x128xf32, #tpu.memory_space<vmem>>, vector<1x128xf32>
    tpu.vector_store %arg8[%c49, %c0_249], %248 {strides = array<i32>} : memref<64x128xf32, #tpu.memory_space<vmem>>, vector<1x128xf32>,
    %c2_250 = arith.constant 2 : index
    %c6_251 = arith.constant 6 : index
    %250 = memref.load %arg0[%c2_250, %c6_251] : memref<8x8xi32, #tpu.memory_space<smem>>
    %251 = arith.index_cast %250 : i32 to index
    %c0_252 = arith.constant 0 : index
    %c0_253 = arith.constant 0 : index
    %252 = vector.load %arg1[%251, %c0_252, %c0_253] : memref<66x1x128xf32, #tpu.memory_space<vmem>>, vector<1x1x128xf32>
    %253 = vector.shape_cast %252 : vector<1x1x128xf32> to vector<1x128xf32>
    %c50 = arith.constant 50 : index
    %c0_254 = arith.constant 0 : index
    %254 = vector.load %arg8[%c50, %c0_254] : memref<64x128xf32, #tpu.memory_space<vmem>>, vector<1x128xf32>
    tpu.vector_store %arg8[%c50, %c0_254], %253 {strides = array<i32>} : memref<64x128xf32, #tpu.memory_space<vmem>>, vector<1x128xf32>,
    %c3_255 = arith.constant 3 : index
    %c6_256 = arith.constant 6 : index
    %255 = memref.load %arg0[%c3_255, %c6_256] : memref<8x8xi32, #tpu.memory_space<smem>>
    %256 = arith.index_cast %255 : i32 to index
    %c0_257 = arith.constant 0 : index
    %c0_258 = arith.constant 0 : index
    %257 = vector.load %arg1[%256, %c0_257, %c0_258] : memref<66x1x128xf32, #tpu.memory_space<vmem>>, vector<1x1x128xf32>
    %258 = vector.shape_cast %257 : vector<1x1x128xf32> to vector<1x128xf32>
    %c51 = arith.constant 51 : index
    %c0_259 = arith.constant 0 : index
    %259 = vector.load %arg8[%c51, %c0_259] : memref<64x128xf32, #tpu.memory_space<vmem>>, vector<1x128xf32>
    tpu.vector_store %arg8[%c51, %c0_259], %258 {strides = array<i32>} : memref<64x128xf32, #tpu.memory_space<vmem>>, vector<1x128xf32>,
    %c4_260 = arith.constant 4 : index
    %c6_261 = arith.constant 6 : index
    %260 = memref.load %arg0[%c4_260, %c6_261] : memref<8x8xi32, #tpu.memory_space<smem>>
    %261 = arith.index_cast %260 : i32 to index
    %c0_262 = arith.constant 0 : index
    %c0_263 = arith.constant 0 : index
    %262 = vector.load %arg1[%261, %c0_262, %c0_263] : memref<66x1x128xf32, #tpu.memory_space<vmem>>, vector<1x1x128xf32>
    %263 = vector.shape_cast %262 : vector<1x1x128xf32> to vector<1x128xf32>
    %c52 = arith.constant 52 : index
    %c0_264 = arith.constant 0 : index
    %264 = vector.load %arg8[%c52, %c0_264] : memref<64x128xf32, #tpu.memory_space<vmem>>, vector<1x128xf32>
    tpu.vector_store %arg8[%c52, %c0_264], %263 {strides = array<i32>} : memref<64x128xf32, #tpu.memory_space<vmem>>, vector<1x128xf32>,
    %c5_265 = arith.constant 5 : index
    %c6_266 = arith.constant 6 : index
    %265 = memref.load %arg0[%c5_265, %c6_266] : memref<8x8xi32, #tpu.memory_space<smem>>
    %266 = arith.index_cast %265 : i32 to index
    %c0_267 = arith.constant 0 : index
    %c0_268 = arith.constant 0 : index
    %267 = vector.load %arg1[%266, %c0_267, %c0_268] : memref<66x1x128xf32, #tpu.memory_space<vmem>>, vector<1x1x128xf32>
    %268 = vector.shape_cast %267 : vector<1x1x128xf32> to vector<1x128xf32>
    %c53 = arith.constant 53 : index
    %c0_269 = arith.constant 0 : index
    %269 = vector.load %arg8[%c53, %c0_269] : memref<64x128xf32, #tpu.memory_space<vmem>>, vector<1x128xf32>
    tpu.vector_store %arg8[%c53, %c0_269], %268 {strides = array<i32>} : memref<64x128xf32, #tpu.memory_space<vmem>>, vector<1x128xf32>,
    %c6_270 = arith.constant 6 : index
    %c6_271 = arith.constant 6 : index
    %270 = memref.load %arg0[%c6_270, %c6_271] : memref<8x8xi32, #tpu.memory_space<smem>>
    %271 = arith.index_cast %270 : i32 to index
    %c0_272 = arith.constant 0 : index
    %c0_273 = arith.constant 0 : index
    %272 = vector.load %arg1[%271, %c0_272, %c0_273] : memref<66x1x128xf32, #tpu.memory_space<vmem>>, vector<1x1x128xf32>
    %273 = vector.shape_cast %272 : vector<1x1x128xf32> to vector<1x128xf32>
    %c54 = arith.constant 54 : index
    %c0_274 = arith.constant 0 : index
    %274 = vector.load %arg8[%c54, %c0_274] : memref<64x128xf32, #tpu.memory_space<vmem>>, vector<1x128xf32>
    tpu.vector_store %arg8[%c54, %c0_274], %273 {strides = array<i32>} : memref<64x128xf32, #tpu.memory_space<vmem>>, vector<1x128xf32>,
    %c7_275 = arith.constant 7 : index
    %c6_276 = arith.constant 6 : index
    %275 = memref.load %arg0[%c7_275, %c6_276] : memref<8x8xi32, #tpu.memory_space<smem>>
    %276 = arith.index_cast %275 : i32 to index
    %c0_277 = arith.constant 0 : index
    %c0_278 = arith.constant 0 : index
    %277 = vector.load %arg1[%276, %c0_277, %c0_278] : memref<66x1x128xf32, #tpu.memory_space<vmem>>, vector<1x1x128xf32>
    %278 = vector.shape_cast %277 : vector<1x1x128xf32> to vector<1x128xf32>
    %c55 = arith.constant 55 : index
    %c0_279 = arith.constant 0 : index
    %279 = vector.load %arg8[%c55, %c0_279] : memref<64x128xf32, #tpu.memory_space<vmem>>, vector<1x128xf32>
    tpu.vector_store %arg8[%c55, %c0_279], %278 {strides = array<i32>} : memref<64x128xf32, #tpu.memory_space<vmem>>, vector<1x128xf32>,
    %c0_280 = arith.constant 0 : index
    %c7_281 = arith.constant 7 : index
    %280 = memref.load %arg0[%c0_280, %c7_281] : memref<8x8xi32, #tpu.memory_space<smem>>
    %281 = arith.index_cast %280 : i32 to index
    %c0_282 = arith.constant 0 : index
    %c0_283 = arith.constant 0 : index
    %282 = vector.load %arg1[%281, %c0_282, %c0_283] : memref<66x1x128xf32, #tpu.memory_space<vmem>>, vector<1x1x128xf32>
    %283 = vector.shape_cast %282 : vector<1x1x128xf32> to vector<1x128xf32>
    %c56 = arith.constant 56 : index
    %c0_284 = arith.constant 0 : index
    %284 = vector.load %arg8[%c56, %c0_284] : memref<64x128xf32, #tpu.memory_space<vmem>>, vector<1x128xf32>
    tpu.vector_store %arg8[%c56, %c0_284], %283 {strides = array<i32>} : memref<64x128xf32, #tpu.memory_space<vmem>>, vector<1x128xf32>,
    %c1_285 = arith.constant 1 : index
    %c7_286 = arith.constant 7 : index
    %285 = memref.load %arg0[%c1_285, %c7_286] : memref<8x8xi32, #tpu.memory_space<smem>>
    %286 = arith.index_cast %285 : i32 to index
    %c0_287 = arith.constant 0 : index
    %c0_288 = arith.constant 0 : index
    %287 = vector.load %arg1[%286, %c0_287, %c0_288] : memref<66x1x128xf32, #tpu.memory_space<vmem>>, vector<1x1x128xf32>
    %288 = vector.shape_cast %287 : vector<1x1x128xf32> to vector<1x128xf32>
    %c57 = arith.constant 57 : index
    %c0_289 = arith.constant 0 : index
    %289 = vector.load %arg8[%c57, %c0_289] : memref<64x128xf32, #tpu.memory_space<vmem>>, vector<1x128xf32>
    tpu.vector_store %arg8[%c57, %c0_289], %288 {strides = array<i32>} : memref<64x128xf32, #tpu.memory_space<vmem>>, vector<1x128xf32>,
    %c2_290 = arith.constant 2 : index
    %c7_291 = arith.constant 7 : index
    %290 = memref.load %arg0[%c2_290, %c7_291] : memref<8x8xi32, #tpu.memory_space<smem>>
    %291 = arith.index_cast %290 : i32 to index
    %c0_292 = arith.constant 0 : index
    %c0_293 = arith.constant 0 : index
    %292 = vector.load %arg1[%291, %c0_292, %c0_293] : memref<66x1x128xf32, #tpu.memory_space<vmem>>, vector<1x1x128xf32>
    %293 = vector.shape_cast %292 : vector<1x1x128xf32> to vector<1x128xf32>
    %c58 = arith.constant 58 : index
    %c0_294 = arith.constant 0 : index
    %294 = vector.load %arg8[%c58, %c0_294] : memref<64x128xf32, #tpu.memory_space<vmem>>, vector<1x128xf32>
    tpu.vector_store %arg8[%c58, %c0_294], %293 {strides = array<i32>} : memref<64x128xf32, #tpu.memory_space<vmem>>, vector<1x128xf32>,
    %c3_295 = arith.constant 3 : index
    %c7_296 = arith.constant 7 : index
    %295 = memref.load %arg0[%c3_295, %c7_296] : memref<8x8xi32, #tpu.memory_space<smem>>
    %296 = arith.index_cast %295 : i32 to index
    %c0_297 = arith.constant 0 : index
    %c0_298 = arith.constant 0 : index
    %297 = vector.load %arg1[%296, %c0_297, %c0_298] : memref<66x1x128xf32, #tpu.memory_space<vmem>>, vector<1x1x128xf32>
    %298 = vector.shape_cast %297 : vector<1x1x128xf32> to vector<1x128xf32>
    %c59 = arith.constant 59 : index
    %c0_299 = arith.constant 0 : index
    %299 = vector.load %arg8[%c59, %c0_299] : memref<64x128xf32, #tpu.memory_space<vmem>>, vector<1x128xf32>
    tpu.vector_store %arg8[%c59, %c0_299], %298 {strides = array<i32>} : memref<64x128xf32, #tpu.memory_space<vmem>>, vector<1x128xf32>,
    %c4_300 = arith.constant 4 : index
    %c7_301 = arith.constant 7 : index
    %300 = memref.load %arg0[%c4_300, %c7_301] : memref<8x8xi32, #tpu.memory_space<smem>>
    %301 = arith.index_cast %300 : i32 to index
    %c0_302 = arith.constant 0 : index
    %c0_303 = arith.constant 0 : index
    %302 = vector.load %arg1[%301, %c0_302, %c0_303] : memref<66x1x128xf32, #tpu.memory_space<vmem>>, vector<1x1x128xf32>
    %303 = vector.shape_cast %302 : vector<1x1x128xf32> to vector<1x128xf32>
    %c60 = arith.constant 60 : index
    %c0_304 = arith.constant 0 : index
    %304 = vector.load %arg8[%c60, %c0_304] : memref<64x128xf32, #tpu.memory_space<vmem>>, vector<1x128xf32>
    tpu.vector_store %arg8[%c60, %c0_304], %303 {strides = array<i32>} : memref<64x128xf32, #tpu.memory_space<vmem>>, vector<1x128xf32>,
    %c5_305 = arith.constant 5 : index
    %c7_306 = arith.constant 7 : index
    %305 = memref.load %arg0[%c5_305, %c7_306] : memref<8x8xi32, #tpu.memory_space<smem>>
    %306 = arith.index_cast %305 : i32 to index
    %c0_307 = arith.constant 0 : index
    %c0_308 = arith.constant 0 : index
    %307 = vector.load %arg1[%306, %c0_307, %c0_308] : memref<66x1x128xf32, #tpu.memory_space<vmem>>, vector<1x1x128xf32>
    %308 = vector.shape_cast %307 : vector<1x1x128xf32> to vector<1x128xf32>
    %c61 = arith.constant 61 : index
    %c0_309 = arith.constant 0 : index
    %309 = vector.load %arg8[%c61, %c0_309] : memref<64x128xf32, #tpu.memory_space<vmem>>, vector<1x128xf32>
    tpu.vector_store %arg8[%c61, %c0_309], %308 {strides = array<i32>} : memref<64x128xf32, #tpu.memory_space<vmem>>, vector<1x128xf32>,
    %c6_310 = arith.constant 6 : index
    %c7_311 = arith.constant 7 : index
    %310 = memref.load %arg0[%c6_310, %c7_311] : memref<8x8xi32, #tpu.memory_space<smem>>
    %311 = arith.index_cast %310 : i32 to index
    %c0_312 = arith.constant 0 : index
    %c0_313 = arith.constant 0 : index
    %312 = vector.load %arg1[%311, %c0_312, %c0_313] : memref<66x1x128xf32, #tpu.memory_space<vmem>>, vector<1x1x128xf32>
    %313 = vector.shape_cast %312 : vector<1x1x128xf32> to vector<1x128xf32>
    %c62 = arith.constant 62 : index
    %c0_314 = arith.constant 0 : index
    %314 = vector.load %arg8[%c62, %c0_314] : memref<64x128xf32, #tpu.memory_space<vmem>>, vector<1x128xf32>
    tpu.vector_store %arg8[%c62, %c0_314], %313 {strides = array<i32>} : memref<64x128xf32, #tpu.memory_space<vmem>>, vector<1x128xf32>,
    %c7_315 = arith.constant 7 : index
    %c7_316 = arith.constant 7 : index
    %315 = memref.load %arg0[%c7_315, %c7_316] : memref<8x8xi32, #tpu.memory_space<smem>>
    %316 = arith.index_cast %315 : i32 to index
    %c0_317 = arith.constant 0 : index
    %c0_318 = arith.constant 0 : index
    %317 = vector.load %arg1[%316, %c0_317, %c0_318] : memref<66x1x128xf32, #tpu.memory_space<vmem>>, vector<1x1x128xf32>
    %318 = vector.shape_cast %317 : vector<1x1x128xf32> to vector<1x128xf32>
    %c63 = arith.constant 63 : index
    %c0_319 = arith.constant 0 : index
    %319 = vector.load %arg8[%c63, %c0_319] : memref<64x128xf32, #tpu.memory_space<vmem>>, vector<1x128xf32>
    tpu.vector_store %arg8[%c63, %c0_319], %318 {strides = array<i32>} : memref<64x128xf32, #tpu.memory_space<vmem>>, vector<1x128xf32>,
    %c0_320 = arith.constant 0 : index
    %c0_321 = arith.constant 0 : index
    %c0_322 = arith.constant 0 : index
    %320 = vector.load %arg3[%c0_320, %c0_321, %c0_322] : memref<2x32x128xf32, #tpu.memory_space<vmem>>, vector<1x32x128xf32>
    %321 = vector.shape_cast %320 : vector<1x32x128xf32> to vector<32x128xf32>
    %c0_323 = arith.constant 0 : index
    %c0_324 = arith.constant 0 : index
    %c0_325 = arith.constant 0 : index
    %322 = vector.load %arg4[%c0_323, %c0_324, %c0_325] : memref<2x1x128xf32, #tpu.memory_space<vmem>>, vector<1x1x128xf32>
    %323 = vector.shape_cast %322 : vector<1x1x128xf32> to vector<1x128xf32>
    %cst = arith.constant 0.000000e+00 : f32
    %324 = vector.broadcast %cst : f32 to vector<8x32xf32>
    %cst_326 = arith.constant 0.000000e+00 : f32
    %325 = vector.broadcast %cst_326 : f32 to vector<8x32xf32>
    %c0_327 = arith.constant 0 : index
    %c0_328 = arith.constant 0 : index
    %326 = vector.load %arg8[%c0_327, %c0_328] : memref<64x128xf32, #tpu.memory_space<vmem>>, vector<8x128xf32>
    %cst_329 = arith.constant dense<0.000000e+00> : vector<8x128xf32>
    %327 = tpu.matmul %324, %321, %cst_329 {dimension_numbers = #tpu.dot_dimension_numbers<[1], [0], [0], [1], [0, 0, 1, 1], [], []>} : vector<8x32xf32>, vector<32x128xf32>, vector<8x128xf32> -> vector<8x128xf32>
    %328 = arith.addf %326, %327 : vector<8x128xf32>
    %329 = vector.broadcast %323 : vector<1x128xf32> to vector<8x128xf32>
    %330 = arith.addf %328, %329 : vector<8x128xf32>
    %331 = arith.negf %330 : vector<8x128xf32>
    %332 = math.exp %331 : vector<8x128xf32>
    %cst_330 = arith.constant 1.000000e+00 : f32
    %333 = vector.broadcast %cst_330 : f32 to vector<8x128xf32>
    %334 = arith.addf %333, %332 : vector<8x128xf32>
    %335 = arith.divf %333, %334 : vector<8x128xf32>
    %336 = vector.extract_strided_slice %335 {offsets = [0, 0], sizes = [8, 32], strides = [1, 1]} : vector<8x128xf32> to vector<8x32xf32>
    %337 = vector.extract_strided_slice %335 {offsets = [0, 32], sizes = [8, 32], strides = [1, 1]} : vector<8x128xf32> to vector<8x32xf32>
    %338 = vector.extract_strided_slice %335 {offsets = [0, 64], sizes = [8, 32], strides = [1, 1]} : vector<8x128xf32> to vector<8x32xf32>
    %cst_331 = arith.constant 2.000000e+00 : f32
    %339 = vector.broadcast %cst_331 : f32 to vector<8x32xf32>
    %340 = arith.mulf %339, %338 : vector<8x32xf32>
    %cst_332 = arith.constant 1.000000e+00 : f32
    %341 = vector.broadcast %cst_332 : f32 to vector<8x32xf32>
    %342 = arith.subf %340, %341 : vector<8x32xf32>
    %343 = vector.extract_strided_slice %335 {offsets = [0, 96], sizes = [8, 32], strides = [1, 1]} : vector<8x128xf32> to vector<8x32xf32>
    %344 = arith.mulf %337, %325 : vector<8x32xf32>
    %345 = arith.mulf %336, %342 : vector<8x32xf32>
    %346 = arith.addf %344, %345 : vector<8x32xf32>
    %347 = math.tanh %346 : vector<8x32xf32>
    %348 = arith.mulf %343, %347 : vector<8x32xf32>
    %c0_333 = arith.constant 0 : index
    %c0_334 = arith.constant 0 : index
    %349 = vector.load %arg9[%c0_333, %c0_334] : memref<64x32xf32, #tpu.memory_space<vmem>>, vector<8x32xf32>
    tpu.vector_store %arg9[%c0_333, %c0_334], %348 {strides = array<i32>} : memref<64x32xf32, #tpu.memory_space<vmem>>, vector<8x32xf32>,
    %c8_335 = arith.constant 8 : index
    %c0_336 = arith.constant 0 : index
    %350 = vector.load %arg8[%c8_335, %c0_336] : memref<64x128xf32, #tpu.memory_space<vmem>>, vector<8x128xf32>
    %cst_337 = arith.constant dense<0.000000e+00> : vector<8x128xf32>
    %351 = tpu.matmul %348, %321, %cst_337 {dimension_numbers = #tpu.dot_dimension_numbers<[1], [0], [0], [1], [0, 0, 1, 1], [], []>} : vector<8x32xf32>, vector<32x128xf32>, vector<8x128xf32> -> vector<8x128xf32>
    %352 = arith.addf %350, %351 : vector<8x128xf32>
    %353 = vector.broadcast %323 : vector<1x128xf32> to vector<8x128xf32>
    %354 = arith.addf %352, %353 : vector<8x128xf32>
    %355 = arith.negf %354 : vector<8x128xf32>
    %356 = math.exp %355 : vector<8x128xf32>
    %cst_338 = arith.constant 1.000000e+00 : f32
    %357 = vector.broadcast %cst_338 : f32 to vector<8x128xf32>
    %358 = arith.addf %357, %356 : vector<8x128xf32>
    %359 = arith.divf %357, %358 : vector<8x128xf32>
    %360 = vector.extract_strided_slice %359 {offsets = [0, 0], sizes = [8, 32], strides = [1, 1]} : vector<8x128xf32> to vector<8x32xf32>
    %361 = vector.extract_strided_slice %359 {offsets = [0, 32], sizes = [8, 32], strides = [1, 1]} : vector<8x128xf32> to vector<8x32xf32>
    %362 = vector.extract_strided_slice %359 {offsets = [0, 64], sizes = [8, 32], strides = [1, 1]} : vector<8x128xf32> to vector<8x32xf32>
    %cst_339 = arith.constant 2.000000e+00 : f32
    %363 = vector.broadcast %cst_339 : f32 to vector<8x32xf32>
    %364 = arith.mulf %363, %362 : vector<8x32xf32>
    %cst_340 = arith.constant 1.000000e+00 : f32
    %365 = vector.broadcast %cst_340 : f32 to vector<8x32xf32>
    %366 = arith.subf %364, %365 : vector<8x32xf32>
    %367 = vector.extract_strided_slice %359 {offsets = [0, 96], sizes = [8, 32], strides = [1, 1]} : vector<8x128xf32> to vector<8x32xf32>
    %368 = arith.mulf %361, %346 : vector<8x32xf32>
    %369 = arith.mulf %360, %366 : vector<8x32xf32>
    %370 = arith.addf %368, %369 : vector<8x32xf32>
    %371 = math.tanh %370 : vector<8x32xf32>
    %372 = arith.mulf %367, %371 : vector<8x32xf32>
    %c8_341 = arith.constant 8 : index
    %c0_342 = arith.constant 0 : index
    %373 = vector.load %arg9[%c8_341, %c0_342] : memref<64x32xf32, #tpu.memory_space<vmem>>, vector<8x32xf32>
    tpu.vector_store %arg9[%c8_341, %c0_342], %372 {strides = array<i32>} : memref<64x32xf32, #tpu.memory_space<vmem>>, vector<8x32xf32>,
    %c16_343 = arith.constant 16 : index
    %c0_344 = arith.constant 0 : index
    %374 = vector.load %arg8[%c16_343, %c0_344] : memref<64x128xf32, #tpu.memory_space<vmem>>, vector<8x128xf32>
    %cst_345 = arith.constant dense<0.000000e+00> : vector<8x128xf32>
    %375 = tpu.matmul %372, %321, %cst_345 {dimension_numbers = #tpu.dot_dimension_numbers<[1], [0], [0], [1], [0, 0, 1, 1], [], []>} : vector<8x32xf32>, vector<32x128xf32>, vector<8x128xf32> -> vector<8x128xf32>
    %376 = arith.addf %374, %375 : vector<8x128xf32>
    %377 = vector.broadcast %323 : vector<1x128xf32> to vector<8x128xf32>
    %378 = arith.addf %376, %377 : vector<8x128xf32>
    %379 = arith.negf %378 : vector<8x128xf32>
    %380 = math.exp %379 : vector<8x128xf32>
    %cst_346 = arith.constant 1.000000e+00 : f32
    %381 = vector.broadcast %cst_346 : f32 to vector<8x128xf32>
    %382 = arith.addf %381, %380 : vector<8x128xf32>
    %383 = arith.divf %381, %382 : vector<8x128xf32>
    %384 = vector.extract_strided_slice %383 {offsets = [0, 0], sizes = [8, 32], strides = [1, 1]} : vector<8x128xf32> to vector<8x32xf32>
    %385 = vector.extract_strided_slice %383 {offsets = [0, 32], sizes = [8, 32], strides = [1, 1]} : vector<8x128xf32> to vector<8x32xf32>
    %386 = vector.extract_strided_slice %383 {offsets = [0, 64], sizes = [8, 32], strides = [1, 1]} : vector<8x128xf32> to vector<8x32xf32>
    %cst_347 = arith.constant 2.000000e+00 : f32
    %387 = vector.broadcast %cst_347 : f32 to vector<8x32xf32>
    %388 = arith.mulf %387, %386 : vector<8x32xf32>
    %cst_348 = arith.constant 1.000000e+00 : f32
    %389 = vector.broadcast %cst_348 : f32 to vector<8x32xf32>
    %390 = arith.subf %388, %389 : vector<8x32xf32>
    %391 = vector.extract_strided_slice %383 {offsets = [0, 96], sizes = [8, 32], strides = [1, 1]} : vector<8x128xf32> to vector<8x32xf32>
    %392 = arith.mulf %385, %370 : vector<8x32xf32>
    %393 = arith.mulf %384, %390 : vector<8x32xf32>
    %394 = arith.addf %392, %393 : vector<8x32xf32>
    %395 = math.tanh %394 : vector<8x32xf32>
    %396 = arith.mulf %391, %395 : vector<8x32xf32>
    %c16_349 = arith.constant 16 : index
    %c0_350 = arith.constant 0 : index
    %397 = vector.load %arg9[%c16_349, %c0_350] : memref<64x32xf32, #tpu.memory_space<vmem>>, vector<8x32xf32>
    tpu.vector_store %arg9[%c16_349, %c0_350], %396 {strides = array<i32>} : memref<64x32xf32, #tpu.memory_space<vmem>>, vector<8x32xf32>,
    %c24_351 = arith.constant 24 : index
    %c0_352 = arith.constant 0 : index
    %398 = vector.load %arg8[%c24_351, %c0_352] : memref<64x128xf32, #tpu.memory_space<vmem>>, vector<8x128xf32>
    %cst_353 = arith.constant dense<0.000000e+00> : vector<8x128xf32>
    %399 = tpu.matmul %396, %321, %cst_353 {dimension_numbers = #tpu.dot_dimension_numbers<[1], [0], [0], [1], [0, 0, 1, 1], [], []>} : vector<8x32xf32>, vector<32x128xf32>, vector<8x128xf32> -> vector<8x128xf32>
    %400 = arith.addf %398, %399 : vector<8x128xf32>
    %401 = vector.broadcast %323 : vector<1x128xf32> to vector<8x128xf32>
    %402 = arith.addf %400, %401 : vector<8x128xf32>
    %403 = arith.negf %402 : vector<8x128xf32>
    %404 = math.exp %403 : vector<8x128xf32>
    %cst_354 = arith.constant 1.000000e+00 : f32
    %405 = vector.broadcast %cst_354 : f32 to vector<8x128xf32>
    %406 = arith.addf %405, %404 : vector<8x128xf32>
    %407 = arith.divf %405, %406 : vector<8x128xf32>
    %408 = vector.extract_strided_slice %407 {offsets = [0, 0], sizes = [8, 32], strides = [1, 1]} : vector<8x128xf32> to vector<8x32xf32>
    %409 = vector.extract_strided_slice %407 {offsets = [0, 32], sizes = [8, 32], strides = [1, 1]} : vector<8x128xf32> to vector<8x32xf32>
    %410 = vector.extract_strided_slice %407 {offsets = [0, 64], sizes = [8, 32], strides = [1, 1]} : vector<8x128xf32> to vector<8x32xf32>
    %cst_355 = arith.constant 2.000000e+00 : f32
    %411 = vector.broadcast %cst_355 : f32 to vector<8x32xf32>
    %412 = arith.mulf %411, %410 : vector<8x32xf32>
    %cst_356 = arith.constant 1.000000e+00 : f32
    %413 = vector.broadcast %cst_356 : f32 to vector<8x32xf32>
    %414 = arith.subf %412, %413 : vector<8x32xf32>
    %415 = vector.extract_strided_slice %407 {offsets = [0, 96], sizes = [8, 32], strides = [1, 1]} : vector<8x128xf32> to vector<8x32xf32>
    %416 = arith.mulf %409, %394 : vector<8x32xf32>
    %417 = arith.mulf %408, %414 : vector<8x32xf32>
    %418 = arith.addf %416, %417 : vector<8x32xf32>
    %419 = math.tanh %418 : vector<8x32xf32>
    %420 = arith.mulf %415, %419 : vector<8x32xf32>
    %c24_357 = arith.constant 24 : index
    %c0_358 = arith.constant 0 : index
    %421 = vector.load %arg9[%c24_357, %c0_358] : memref<64x32xf32, #tpu.memory_space<vmem>>, vector<8x32xf32>
    tpu.vector_store %arg9[%c24_357, %c0_358], %420 {strides = array<i32>} : memref<64x32xf32, #tpu.memory_space<vmem>>, vector<8x32xf32>,
    %c32_359 = arith.constant 32 : index
    %c0_360 = arith.constant 0 : index
    %422 = vector.load %arg8[%c32_359, %c0_360] : memref<64x128xf32, #tpu.memory_space<vmem>>, vector<8x128xf32>
    %cst_361 = arith.constant dense<0.000000e+00> : vector<8x128xf32>
    %423 = tpu.matmul %420, %321, %cst_361 {dimension_numbers = #tpu.dot_dimension_numbers<[1], [0], [0], [1], [0, 0, 1, 1], [], []>} : vector<8x32xf32>, vector<32x128xf32>, vector<8x128xf32> -> vector<8x128xf32>
    %424 = arith.addf %422, %423 : vector<8x128xf32>
    %425 = vector.broadcast %323 : vector<1x128xf32> to vector<8x128xf32>
    %426 = arith.addf %424, %425 : vector<8x128xf32>
    %427 = arith.negf %426 : vector<8x128xf32>
    %428 = math.exp %427 : vector<8x128xf32>
    %cst_362 = arith.constant 1.000000e+00 : f32
    %429 = vector.broadcast %cst_362 : f32 to vector<8x128xf32>
    %430 = arith.addf %429, %428 : vector<8x128xf32>
    %431 = arith.divf %429, %430 : vector<8x128xf32>
    %432 = vector.extract_strided_slice %431 {offsets = [0, 0], sizes = [8, 32], strides = [1, 1]} : vector<8x128xf32> to vector<8x32xf32>
    %433 = vector.extract_strided_slice %431 {offsets = [0, 32], sizes = [8, 32], strides = [1, 1]} : vector<8x128xf32> to vector<8x32xf32>
    %434 = vector.extract_strided_slice %431 {offsets = [0, 64], sizes = [8, 32], strides = [1, 1]} : vector<8x128xf32> to vector<8x32xf32>
    %cst_363 = arith.constant 2.000000e+00 : f32
    %435 = vector.broadcast %cst_363 : f32 to vector<8x32xf32>
    %436 = arith.mulf %435, %434 : vector<8x32xf32>
    %cst_364 = arith.constant 1.000000e+00 : f32
    %437 = vector.broadcast %cst_364 : f32 to vector<8x32xf32>
    %438 = arith.subf %436, %437 : vector<8x32xf32>
    %439 = vector.extract_strided_slice %431 {offsets = [0, 96], sizes = [8, 32], strides = [1, 1]} : vector<8x128xf32> to vector<8x32xf32>
    %440 = arith.mulf %433, %418 : vector<8x32xf32>
    %441 = arith.mulf %432, %438 : vector<8x32xf32>
    %442 = arith.addf %440, %441 : vector<8x32xf32>
    %443 = math.tanh %442 : vector<8x32xf32>
    %444 = arith.mulf %439, %443 : vector<8x32xf32>
    %c32_365 = arith.constant 32 : index
    %c0_366 = arith.constant 0 : index
    %445 = vector.load %arg9[%c32_365, %c0_366] : memref<64x32xf32, #tpu.memory_space<vmem>>, vector<8x32xf32>
    tpu.vector_store %arg9[%c32_365, %c0_366], %444 {strides = array<i32>} : memref<64x32xf32, #tpu.memory_space<vmem>>, vector<8x32xf32>,
    %c40_367 = arith.constant 40 : index
    %c0_368 = arith.constant 0 : index
    %446 = vector.load %arg8[%c40_367, %c0_368] : memref<64x128xf32, #tpu.memory_space<vmem>>, vector<8x128xf32>
    %cst_369 = arith.constant dense<0.000000e+00> : vector<8x128xf32>
    %447 = tpu.matmul %444, %321, %cst_369 {dimension_numbers = #tpu.dot_dimension_numbers<[1], [0], [0], [1], [0, 0, 1, 1], [], []>} : vector<8x32xf32>, vector<32x128xf32>, vector<8x128xf32> -> vector<8x128xf32>
    %448 = arith.addf %446, %447 : vector<8x128xf32>
    %449 = vector.broadcast %323 : vector<1x128xf32> to vector<8x128xf32>
    %450 = arith.addf %448, %449 : vector<8x128xf32>
    %451 = arith.negf %450 : vector<8x128xf32>
    %452 = math.exp %451 : vector<8x128xf32>
    %cst_370 = arith.constant 1.000000e+00 : f32
    %453 = vector.broadcast %cst_370 : f32 to vector<8x128xf32>
    %454 = arith.addf %453, %452 : vector<8x128xf32>
    %455 = arith.divf %453, %454 : vector<8x128xf32>
    %456 = vector.extract_strided_slice %455 {offsets = [0, 0], sizes = [8, 32], strides = [1, 1]} : vector<8x128xf32> to vector<8x32xf32>
    %457 = vector.extract_strided_slice %455 {offsets = [0, 32], sizes = [8, 32], strides = [1, 1]} : vector<8x128xf32> to vector<8x32xf32>
    %458 = vector.extract_strided_slice %455 {offsets = [0, 64], sizes = [8, 32], strides = [1, 1]} : vector<8x128xf32> to vector<8x32xf32>
    %cst_371 = arith.constant 2.000000e+00 : f32
    %459 = vector.broadcast %cst_371 : f32 to vector<8x32xf32>
    %460 = arith.mulf %459, %458 : vector<8x32xf32>
    %cst_372 = arith.constant 1.000000e+00 : f32
    %461 = vector.broadcast %cst_372 : f32 to vector<8x32xf32>
    %462 = arith.subf %460, %461 : vector<8x32xf32>
    %463 = vector.extract_strided_slice %455 {offsets = [0, 96], sizes = [8, 32], strides = [1, 1]} : vector<8x128xf32> to vector<8x32xf32>
    %464 = arith.mulf %457, %442 : vector<8x32xf32>
    %465 = arith.mulf %456, %462 : vector<8x32xf32>
    %466 = arith.addf %464, %465 : vector<8x32xf32>
    %467 = math.tanh %466 : vector<8x32xf32>
    %468 = arith.mulf %463, %467 : vector<8x32xf32>
    %c40_373 = arith.constant 40 : index
    %c0_374 = arith.constant 0 : index
    %469 = vector.load %arg9[%c40_373, %c0_374] : memref<64x32xf32, #tpu.memory_space<vmem>>, vector<8x32xf32>
    tpu.vector_store %arg9[%c40_373, %c0_374], %468 {strides = array<i32>} : memref<64x32xf32, #tpu.memory_space<vmem>>, vector<8x32xf32>,
    %c48_375 = arith.constant 48 : index
    %c0_376 = arith.constant 0 : index
    %470 = vector.load %arg8[%c48_375, %c0_376] : memref<64x128xf32, #tpu.memory_space<vmem>>, vector<8x128xf32>
    %cst_377 = arith.constant dense<0.000000e+00> : vector<8x128xf32>
    %471 = tpu.matmul %468, %321, %cst_377 {dimension_numbers = #tpu.dot_dimension_numbers<[1], [0], [0], [1], [0, 0, 1, 1], [], []>} : vector<8x32xf32>, vector<32x128xf32>, vector<8x128xf32> -> vector<8x128xf32>
    %472 = arith.addf %470, %471 : vector<8x128xf32>
    %473 = vector.broadcast %323 : vector<1x128xf32> to vector<8x128xf32>
    %474 = arith.addf %472, %473 : vector<8x128xf32>
    %475 = arith.negf %474 : vector<8x128xf32>
    %476 = math.exp %475 : vector<8x128xf32>
    %cst_378 = arith.constant 1.000000e+00 : f32
    %477 = vector.broadcast %cst_378 : f32 to vector<8x128xf32>
    %478 = arith.addf %477, %476 : vector<8x128xf32>
    %479 = arith.divf %477, %478 : vector<8x128xf32>
    %480 = vector.extract_strided_slice %479 {offsets = [0, 0], sizes = [8, 32], strides = [1, 1]} : vector<8x128xf32> to vector<8x32xf32>
    %481 = vector.extract_strided_slice %479 {offsets = [0, 32], sizes = [8, 32], strides = [1, 1]} : vector<8x128xf32> to vector<8x32xf32>
    %482 = vector.extract_strided_slice %479 {offsets = [0, 64], sizes = [8, 32], strides = [1, 1]} : vector<8x128xf32> to vector<8x32xf32>
    %cst_379 = arith.constant 2.000000e+00 : f32
    %483 = vector.broadcast %cst_379 : f32 to vector<8x32xf32>
    %484 = arith.mulf %483, %482 : vector<8x32xf32>
    %cst_380 = arith.constant 1.000000e+00 : f32
    %485 = vector.broadcast %cst_380 : f32 to vector<8x32xf32>
    %486 = arith.subf %484, %485 : vector<8x32xf32>
    %487 = vector.extract_strided_slice %479 {offsets = [0, 96], sizes = [8, 32], strides = [1, 1]} : vector<8x128xf32> to vector<8x32xf32>
    %488 = arith.mulf %481, %466 : vector<8x32xf32>
    %489 = arith.mulf %480, %486 : vector<8x32xf32>
    %490 = arith.addf %488, %489 : vector<8x32xf32>
    %491 = math.tanh %490 : vector<8x32xf32>
    %492 = arith.mulf %487, %491 : vector<8x32xf32>
    %c48_381 = arith.constant 48 : index
    %c0_382 = arith.constant 0 : index
    %493 = vector.load %arg9[%c48_381, %c0_382] : memref<64x32xf32, #tpu.memory_space<vmem>>, vector<8x32xf32>
    tpu.vector_store %arg9[%c48_381, %c0_382], %492 {strides = array<i32>} : memref<64x32xf32, #tpu.memory_space<vmem>>, vector<8x32xf32>,
    %c56_383 = arith.constant 56 : index
    %c0_384 = arith.constant 0 : index
    %494 = vector.load %arg8[%c56_383, %c0_384] : memref<64x128xf32, #tpu.memory_space<vmem>>, vector<8x128xf32>
    %cst_385 = arith.constant dense<0.000000e+00> : vector<8x128xf32>
    %495 = tpu.matmul %492, %321, %cst_385 {dimension_numbers = #tpu.dot_dimension_numbers<[1], [0], [0], [1], [0, 0, 1, 1], [], []>} : vector<8x32xf32>, vector<32x128xf32>, vector<8x128xf32> -> vector<8x128xf32>
    %496 = arith.addf %494, %495 : vector<8x128xf32>
    %497 = vector.broadcast %323 : vector<1x128xf32> to vector<8x128xf32>
    %498 = arith.addf %496, %497 : vector<8x128xf32>
    %499 = arith.negf %498 : vector<8x128xf32>
    %500 = math.exp %499 : vector<8x128xf32>
    %cst_386 = arith.constant 1.000000e+00 : f32
    %501 = vector.broadcast %cst_386 : f32 to vector<8x128xf32>
    %502 = arith.addf %501, %500 : vector<8x128xf32>
    %503 = arith.divf %501, %502 : vector<8x128xf32>
    %504 = vector.extract_strided_slice %503 {offsets = [0, 0], sizes = [8, 32], strides = [1, 1]} : vector<8x128xf32> to vector<8x32xf32>
    %505 = vector.extract_strided_slice %503 {offsets = [0, 32], sizes = [8, 32], strides = [1, 1]} : vector<8x128xf32> to vector<8x32xf32>
    %506 = vector.extract_strided_slice %503 {offsets = [0, 64], sizes = [8, 32], strides = [1, 1]} : vector<8x128xf32> to vector<8x32xf32>
    %cst_387 = arith.constant 2.000000e+00 : f32
    %507 = vector.broadcast %cst_387 : f32 to vector<8x32xf32>
    %508 = arith.mulf %507, %506 : vector<8x32xf32>
    %cst_388 = arith.constant 1.000000e+00 : f32
    %509 = vector.broadcast %cst_388 : f32 to vector<8x32xf32>
    %510 = arith.subf %508, %509 : vector<8x32xf32>
    %511 = vector.extract_strided_slice %503 {offsets = [0, 96], sizes = [8, 32], strides = [1, 1]} : vector<8x128xf32> to vector<8x32xf32>
    %512 = arith.mulf %505, %490 : vector<8x32xf32>
    %513 = arith.mulf %504, %510 : vector<8x32xf32>
    %514 = arith.addf %512, %513 : vector<8x32xf32>
    %515 = math.tanh %514 : vector<8x32xf32>
    %516 = arith.mulf %511, %515 : vector<8x32xf32>
    %c56_389 = arith.constant 56 : index
    %c0_390 = arith.constant 0 : index
    %517 = vector.load %arg9[%c56_389, %c0_390] : memref<64x32xf32, #tpu.memory_space<vmem>>, vector<8x32xf32>
    tpu.vector_store %arg9[%c56_389, %c0_390], %516 {strides = array<i32>} : memref<64x32xf32, #tpu.memory_space<vmem>>, vector<8x32xf32>,
    %c0_391 = arith.constant 0 : index
    %c0_392 = arith.constant 0 : index
    %c0_393 = arith.constant 0 : index
    %518 = vector.load %arg6[%c0_391, %c0_392, %c0_393] : memref<2x8x32xf32, #tpu.memory_space<vmem>>, vector<1x8x32xf32>
    %519 = vector.shape_cast %518 : vector<1x8x32xf32> to vector<8x32xf32>
    %520 = vector.shape_cast %516 : vector<8x32xf32> to vector<1x8x32xf32>
    tpu.vector_store %arg6[%c0_391, %c0_392, %c0_393], %520 {strides = array<i32>} : memref<2x8x32xf32, #tpu.memory_space<vmem>>, vector<1x8x32xf32>,
    %c0_394 = arith.constant 0 : index
    %c0_395 = arith.constant 0 : index
    %c0_396 = arith.constant 0 : index
    %521 = vector.load %arg7[%c0_394, %c0_395, %c0_396] : memref<2x8x32xf32, #tpu.memory_space<vmem>>, vector<1x8x32xf32>
    %522 = vector.shape_cast %521 : vector<1x8x32xf32> to vector<8x32xf32>
    %523 = vector.shape_cast %514 : vector<8x32xf32> to vector<1x8x32xf32>
    tpu.vector_store %arg7[%c0_394, %c0_395, %c0_396], %523 {strides = array<i32>} : memref<2x8x32xf32, #tpu.memory_space<vmem>>, vector<1x8x32xf32>,
    %c0_397 = arith.constant 0 : index
    %c0_398 = arith.constant 0 : index
    %524 = vector.load %arg9[%c0_397, %c0_398] : memref<64x32xf32, #tpu.memory_space<vmem>>, vector<64x32xf32>
    %c0_399 = arith.constant 0 : index
    %c0_400 = arith.constant 0 : index
    %c0_401 = arith.constant 0 : index
    %525 = vector.load %arg2[%c0_399, %c0_400, %c0_401] : memref<1x32x128xf32, #tpu.memory_space<vmem>>, vector<1x32x128xf32>
    %526 = vector.shape_cast %525 : vector<1x32x128xf32> to vector<32x128xf32>
    %cst_402 = arith.constant dense<0.000000e+00> : vector<64x128xf32>
    %527 = tpu.matmul %524, %526, %cst_402 {dimension_numbers = #tpu.dot_dimension_numbers<[1], [0], [0], [1], [0, 0, 1, 1], [], []>} : vector<64x32xf32>, vector<32x128xf32>, vector<64x128xf32> -> vector<64x128xf32>
    %c1_403 = arith.constant 1 : index
    %c0_404 = arith.constant 0 : index
    %c0_405 = arith.constant 0 : index
    %528 = vector.load %arg3[%c1_403, %c0_404, %c0_405] : memref<2x32x128xf32, #tpu.memory_space<vmem>>, vector<1x32x128xf32>
    %529 = vector.shape_cast %528 : vector<1x32x128xf32> to vector<32x128xf32>
    %c1_406 = arith.constant 1 : index
    %c0_407 = arith.constant 0 : index
    %c0_408 = arith.constant 0 : index
    %530 = vector.load %arg4[%c1_406, %c0_407, %c0_408] : memref<2x1x128xf32, #tpu.memory_space<vmem>>, vector<1x1x128xf32>
    %531 = vector.shape_cast %530 : vector<1x1x128xf32> to vector<1x128xf32>
    %cst_409 = arith.constant 0.000000e+00 : f32
    %532 = vector.broadcast %cst_409 : f32 to vector<8x32xf32>
    %cst_410 = arith.constant 0.000000e+00 : f32
    %533 = vector.broadcast %cst_410 : f32 to vector<8x32xf32>
    %534 = vector.extract_strided_slice %527 {offsets = [0, 0], sizes = [8, 128], strides = [1, 1]} : vector<64x128xf32> to vector<8x128xf32>
    %cst_411 = arith.constant dense<0.000000e+00> : vector<8x128xf32>
    %535 = tpu.matmul %532, %529, %cst_411 {dimension_numbers = #tpu.dot_dimension_numbers<[1], [0], [0], [1], [0, 0, 1, 1], [], []>} : vector<8x32xf32>, vector<32x128xf32>, vector<8x128xf32> -> vector<8x128xf32>
    %536 = arith.addf %534, %535 : vector<8x128xf32>
    %537 = vector.broadcast %531 : vector<1x128xf32> to vector<8x128xf32>
    %538 = arith.addf %536, %537 : vector<8x128xf32>
    %539 = arith.negf %538 : vector<8x128xf32>
    %540 = math.exp %539 : vector<8x128xf32>
    %cst_412 = arith.constant 1.000000e+00 : f32
    %541 = vector.broadcast %cst_412 : f32 to vector<8x128xf32>
    %542 = arith.addf %541, %540 : vector<8x128xf32>
    %543 = arith.divf %541, %542 : vector<8x128xf32>
    %544 = vector.extract_strided_slice %543 {offsets = [0, 0], sizes = [8, 32], strides = [1, 1]} : vector<8x128xf32> to vector<8x32xf32>
    %545 = vector.extract_strided_slice %543 {offsets = [0, 32], sizes = [8, 32], strides = [1, 1]} : vector<8x128xf32> to vector<8x32xf32>
    %546 = vector.extract_strided_slice %543 {offsets = [0, 64], sizes = [8, 32], strides = [1, 1]} : vector<8x128xf32> to vector<8x32xf32>
    %cst_413 = arith.constant 2.000000e+00 : f32
    %547 = vector.broadcast %cst_413 : f32 to vector<8x32xf32>
    %548 = arith.mulf %547, %546 : vector<8x32xf32>
    %cst_414 = arith.constant 1.000000e+00 : f32
    %549 = vector.broadcast %cst_414 : f32 to vector<8x32xf32>
    %550 = arith.subf %548, %549 : vector<8x32xf32>
    %551 = vector.extract_strided_slice %543 {offsets = [0, 96], sizes = [8, 32], strides = [1, 1]} : vector<8x128xf32> to vector<8x32xf32>
    %552 = arith.mulf %545, %533 : vector<8x32xf32>
    %553 = arith.mulf %544, %550 : vector<8x32xf32>
    %554 = arith.addf %552, %553 : vector<8x32xf32>
    %555 = math.tanh %554 : vector<8x32xf32>
    %556 = arith.mulf %551, %555 : vector<8x32xf32>
    %c0_415 = arith.constant 0 : index
    %c0_416 = arith.constant 0 : index
    %557 = vector.load %arg5[%c0_415, %c0_416] : memref<8x256xf32, #tpu.memory_space<vmem>>, vector<8x32xf32>
    tpu.vector_store %arg5[%c0_415, %c0_416], %556 {strides = array<i32>} : memref<8x256xf32, #tpu.memory_space<vmem>>, vector<8x32xf32>,
    %558 = vector.extract_strided_slice %527 {offsets = [8, 0], sizes = [8, 128], strides = [1, 1]} : vector<64x128xf32> to vector<8x128xf32>
    %cst_417 = arith.constant dense<0.000000e+00> : vector<8x128xf32>
    %559 = tpu.matmul %556, %529, %cst_417 {dimension_numbers = #tpu.dot_dimension_numbers<[1], [0], [0], [1], [0, 0, 1, 1], [], []>} : vector<8x32xf32>, vector<32x128xf32>, vector<8x128xf32> -> vector<8x128xf32>
    %560 = arith.addf %558, %559 : vector<8x128xf32>
    %561 = vector.broadcast %531 : vector<1x128xf32> to vector<8x128xf32>
    %562 = arith.addf %560, %561 : vector<8x128xf32>
    %563 = arith.negf %562 : vector<8x128xf32>
    %564 = math.exp %563 : vector<8x128xf32>
    %cst_418 = arith.constant 1.000000e+00 : f32
    %565 = vector.broadcast %cst_418 : f32 to vector<8x128xf32>
    %566 = arith.addf %565, %564 : vector<8x128xf32>
    %567 = arith.divf %565, %566 : vector<8x128xf32>
    %568 = vector.extract_strided_slice %567 {offsets = [0, 0], sizes = [8, 32], strides = [1, 1]} : vector<8x128xf32> to vector<8x32xf32>
    %569 = vector.extract_strided_slice %567 {offsets = [0, 32], sizes = [8, 32], strides = [1, 1]} : vector<8x128xf32> to vector<8x32xf32>
    %570 = vector.extract_strided_slice %567 {offsets = [0, 64], sizes = [8, 32], strides = [1, 1]} : vector<8x128xf32> to vector<8x32xf32>
    %cst_419 = arith.constant 2.000000e+00 : f32
    %571 = vector.broadcast %cst_419 : f32 to vector<8x32xf32>
    %572 = arith.mulf %571, %570 : vector<8x32xf32>
    %cst_420 = arith.constant 1.000000e+00 : f32
    %573 = vector.broadcast %cst_420 : f32 to vector<8x32xf32>
    %574 = arith.subf %572, %573 : vector<8x32xf32>
    %575 = vector.extract_strided_slice %567 {offsets = [0, 96], sizes = [8, 32], strides = [1, 1]} : vector<8x128xf32> to vector<8x32xf32>
    %576 = arith.mulf %569, %554 : vector<8x32xf32>
    %577 = arith.mulf %568, %574 : vector<8x32xf32>
    %578 = arith.addf %576, %577 : vector<8x32xf32>
    %579 = math.tanh %578 : vector<8x32xf32>
    %580 = arith.mulf %575, %579 : vector<8x32xf32>
    %c0_421 = arith.constant 0 : index
    %c32_422 = arith.constant 32 : index
    %581 = vector.load %arg5[%c0_421, %c32_422] : memref<8x256xf32, #tpu.memory_space<vmem>>, vector<8x32xf32>
    tpu.vector_store %arg5[%c0_421, %c32_422], %580 {strides = array<i32>} : memref<8x256xf32, #tpu.memory_space<vmem>>, vector<8x32xf32>,
    %582 = vector.extract_strided_slice %527 {offsets = [16, 0], sizes = [8, 128], strides = [1, 1]} : vector<64x128xf32> to vector<8x128xf32>
    %cst_423 = arith.constant dense<0.000000e+00> : vector<8x128xf32>
    %583 = tpu.matmul %580, %529, %cst_423 {dimension_numbers = #tpu.dot_dimension_numbers<[1], [0], [0], [1], [0, 0, 1, 1], [], []>} : vector<8x32xf32>, vector<32x128xf32>, vector<8x128xf32> -> vector<8x128xf32>
    %584 = arith.addf %582, %583 : vector<8x128xf32>
    %585 = vector.broadcast %531 : vector<1x128xf32> to vector<8x128xf32>
    %586 = arith.addf %584, %585 : vector<8x128xf32>
    %587 = arith.negf %586 : vector<8x128xf32>
    %588 = math.exp %587 : vector<8x128xf32>
    %cst_424 = arith.constant 1.000000e+00 : f32
    %589 = vector.broadcast %cst_424 : f32 to vector<8x128xf32>
    %590 = arith.addf %589, %588 : vector<8x128xf32>
    %591 = arith.divf %589, %590 : vector<8x128xf32>
    %592 = vector.extract_strided_slice %591 {offsets = [0, 0], sizes = [8, 32], strides = [1, 1]} : vector<8x128xf32> to vector<8x32xf32>
    %593 = vector.extract_strided_slice %591 {offsets = [0, 32], sizes = [8, 32], strides = [1, 1]} : vector<8x128xf32> to vector<8x32xf32>
    %594 = vector.extract_strided_slice %591 {offsets = [0, 64], sizes = [8, 32], strides = [1, 1]} : vector<8x128xf32> to vector<8x32xf32>
    %cst_425 = arith.constant 2.000000e+00 : f32
    %595 = vector.broadcast %cst_425 : f32 to vector<8x32xf32>
    %596 = arith.mulf %595, %594 : vector<8x32xf32>
    %cst_426 = arith.constant 1.000000e+00 : f32
    %597 = vector.broadcast %cst_426 : f32 to vector<8x32xf32>
    %598 = arith.subf %596, %597 : vector<8x32xf32>
    %599 = vector.extract_strided_slice %591 {offsets = [0, 96], sizes = [8, 32], strides = [1, 1]} : vector<8x128xf32> to vector<8x32xf32>
    %600 = arith.mulf %593, %578 : vector<8x32xf32>
    %601 = arith.mulf %592, %598 : vector<8x32xf32>
    %602 = arith.addf %600, %601 : vector<8x32xf32>
    %603 = math.tanh %602 : vector<8x32xf32>
    %604 = arith.mulf %599, %603 : vector<8x32xf32>
    %c0_427 = arith.constant 0 : index
    %c64 = arith.constant 64 : index
    %605 = vector.load %arg5[%c0_427, %c64] : memref<8x256xf32, #tpu.memory_space<vmem>>, vector<8x32xf32>
    tpu.vector_store %arg5[%c0_427, %c64], %604 {strides = array<i32>} : memref<8x256xf32, #tpu.memory_space<vmem>>, vector<8x32xf32>,
    %606 = vector.extract_strided_slice %527 {offsets = [24, 0], sizes = [8, 128], strides = [1, 1]} : vector<64x128xf32> to vector<8x128xf32>
    %cst_428 = arith.constant dense<0.000000e+00> : vector<8x128xf32>
    %607 = tpu.matmul %604, %529, %cst_428 {dimension_numbers = #tpu.dot_dimension_numbers<[1], [0], [0], [1], [0, 0, 1, 1], [], []>} : vector<8x32xf32>, vector<32x128xf32>, vector<8x128xf32> -> vector<8x128xf32>
    %608 = arith.addf %606, %607 : vector<8x128xf32>
    %609 = vector.broadcast %531 : vector<1x128xf32> to vector<8x128xf32>
    %610 = arith.addf %608, %609 : vector<8x128xf32>
    %611 = arith.negf %610 : vector<8x128xf32>
    %612 = math.exp %611 : vector<8x128xf32>
    %cst_429 = arith.constant 1.000000e+00 : f32
    %613 = vector.broadcast %cst_429 : f32 to vector<8x128xf32>
    %614 = arith.addf %613, %612 : vector<8x128xf32>
    %615 = arith.divf %613, %614 : vector<8x128xf32>
    %616 = vector.extract_strided_slice %615 {offsets = [0, 0], sizes = [8, 32], strides = [1, 1]} : vector<8x128xf32> to vector<8x32xf32>
    %617 = vector.extract_strided_slice %615 {offsets = [0, 32], sizes = [8, 32], strides = [1, 1]} : vector<8x128xf32> to vector<8x32xf32>
    %618 = vector.extract_strided_slice %615 {offsets = [0, 64], sizes = [8, 32], strides = [1, 1]} : vector<8x128xf32> to vector<8x32xf32>
    %cst_430 = arith.constant 2.000000e+00 : f32
    %619 = vector.broadcast %cst_430 : f32 to vector<8x32xf32>
    %620 = arith.mulf %619, %618 : vector<8x32xf32>
    %cst_431 = arith.constant 1.000000e+00 : f32
    %621 = vector.broadcast %cst_431 : f32 to vector<8x32xf32>
    %622 = arith.subf %620, %621 : vector<8x32xf32>
    %623 = vector.extract_strided_slice %615 {offsets = [0, 96], sizes = [8, 32], strides = [1, 1]} : vector<8x128xf32> to vector<8x32xf32>
    %624 = arith.mulf %617, %602 : vector<8x32xf32>
    %625 = arith.mulf %616, %622 : vector<8x32xf32>
    %626 = arith.addf %624, %625 : vector<8x32xf32>
    %627 = math.tanh %626 : vector<8x32xf32>
    %628 = arith.mulf %623, %627 : vector<8x32xf32>
    %c0_432 = arith.constant 0 : index
    %c96 = arith.constant 96 : index
    %629 = vector.load %arg5[%c0_432, %c96] : memref<8x256xf32, #tpu.memory_space<vmem>>, vector<8x32xf32>
    tpu.vector_store %arg5[%c0_432, %c96], %628 {strides = array<i32>} : memref<8x256xf32, #tpu.memory_space<vmem>>, vector<8x32xf32>,
    %630 = vector.extract_strided_slice %527 {offsets = [32, 0], sizes = [8, 128], strides = [1, 1]} : vector<64x128xf32> to vector<8x128xf32>
    %cst_433 = arith.constant dense<0.000000e+00> : vector<8x128xf32>
    %631 = tpu.matmul %628, %529, %cst_433 {dimension_numbers = #tpu.dot_dimension_numbers<[1], [0], [0], [1], [0, 0, 1, 1], [], []>} : vector<8x32xf32>, vector<32x128xf32>, vector<8x128xf32> -> vector<8x128xf32>
    %632 = arith.addf %630, %631 : vector<8x128xf32>
    %633 = vector.broadcast %531 : vector<1x128xf32> to vector<8x128xf32>
    %634 = arith.addf %632, %633 : vector<8x128xf32>
    %635 = arith.negf %634 : vector<8x128xf32>
    %636 = math.exp %635 : vector<8x128xf32>
    %cst_434 = arith.constant 1.000000e+00 : f32
    %637 = vector.broadcast %cst_434 : f32 to vector<8x128xf32>
    %638 = arith.addf %637, %636 : vector<8x128xf32>
    %639 = arith.divf %637, %638 : vector<8x128xf32>
    %640 = vector.extract_strided_slice %639 {offsets = [0, 0], sizes = [8, 32], strides = [1, 1]} : vector<8x128xf32> to vector<8x32xf32>
    %641 = vector.extract_strided_slice %639 {offsets = [0, 32], sizes = [8, 32], strides = [1, 1]} : vector<8x128xf32> to vector<8x32xf32>
    %642 = vector.extract_strided_slice %639 {offsets = [0, 64], sizes = [8, 32], strides = [1, 1]} : vector<8x128xf32> to vector<8x32xf32>
    %cst_435 = arith.constant 2.000000e+00 : f32
    %643 = vector.broadcast %cst_435 : f32 to vector<8x32xf32>
    %644 = arith.mulf %643, %642 : vector<8x32xf32>
    %cst_436 = arith.constant 1.000000e+00 : f32
    %645 = vector.broadcast %cst_436 : f32 to vector<8x32xf32>
    %646 = arith.subf %644, %645 : vector<8x32xf32>
    %647 = vector.extract_strided_slice %639 {offsets = [0, 96], sizes = [8, 32], strides = [1, 1]} : vector<8x128xf32> to vector<8x32xf32>
    %648 = arith.mulf %641, %626 : vector<8x32xf32>
    %649 = arith.mulf %640, %646 : vector<8x32xf32>
    %650 = arith.addf %648, %649 : vector<8x32xf32>
    %651 = math.tanh %650 : vector<8x32xf32>
    %652 = arith.mulf %647, %651 : vector<8x32xf32>
    %c0_437 = arith.constant 0 : index
    %c128 = arith.constant 128 : index
    %653 = vector.load %arg5[%c0_437, %c128] : memref<8x256xf32, #tpu.memory_space<vmem>>, vector<8x32xf32>
    tpu.vector_store %arg5[%c0_437, %c128], %652 {strides = array<i32>} : memref<8x256xf32, #tpu.memory_space<vmem>>, vector<8x32xf32>,
    %654 = vector.extract_strided_slice %527 {offsets = [40, 0], sizes = [8, 128], strides = [1, 1]} : vector<64x128xf32> to vector<8x128xf32>
    %cst_438 = arith.constant dense<0.000000e+00> : vector<8x128xf32>
    %655 = tpu.matmul %652, %529, %cst_438 {dimension_numbers = #tpu.dot_dimension_numbers<[1], [0], [0], [1], [0, 0, 1, 1], [], []>} : vector<8x32xf32>, vector<32x128xf32>, vector<8x128xf32> -> vector<8x128xf32>
    %656 = arith.addf %654, %655 : vector<8x128xf32>
    %657 = vector.broadcast %531 : vector<1x128xf32> to vector<8x128xf32>
    %658 = arith.addf %656, %657 : vector<8x128xf32>
    %659 = arith.negf %658 : vector<8x128xf32>
    %660 = math.exp %659 : vector<8x128xf32>
    %cst_439 = arith.constant 1.000000e+00 : f32
    %661 = vector.broadcast %cst_439 : f32 to vector<8x128xf32>
    %662 = arith.addf %661, %660 : vector<8x128xf32>
    %663 = arith.divf %661, %662 : vector<8x128xf32>
    %664 = vector.extract_strided_slice %663 {offsets = [0, 0], sizes = [8, 32], strides = [1, 1]} : vector<8x128xf32> to vector<8x32xf32>
    %665 = vector.extract_strided_slice %663 {offsets = [0, 32], sizes = [8, 32], strides = [1, 1]} : vector<8x128xf32> to vector<8x32xf32>
    %666 = vector.extract_strided_slice %663 {offsets = [0, 64], sizes = [8, 32], strides = [1, 1]} : vector<8x128xf32> to vector<8x32xf32>
    %cst_440 = arith.constant 2.000000e+00 : f32
    %667 = vector.broadcast %cst_440 : f32 to vector<8x32xf32>
    %668 = arith.mulf %667, %666 : vector<8x32xf32>
    %cst_441 = arith.constant 1.000000e+00 : f32
    %669 = vector.broadcast %cst_441 : f32 to vector<8x32xf32>
    %670 = arith.subf %668, %669 : vector<8x32xf32>
    %671 = vector.extract_strided_slice %663 {offsets = [0, 96], sizes = [8, 32], strides = [1, 1]} : vector<8x128xf32> to vector<8x32xf32>
    %672 = arith.mulf %665, %650 : vector<8x32xf32>
    %673 = arith.mulf %664, %670 : vector<8x32xf32>
    %674 = arith.addf %672, %673 : vector<8x32xf32>
    %675 = math.tanh %674 : vector<8x32xf32>
    %676 = arith.mulf %671, %675 : vector<8x32xf32>
    %c0_442 = arith.constant 0 : index
    %c160 = arith.constant 160 : index
    %677 = vector.load %arg5[%c0_442, %c160] : memref<8x256xf32, #tpu.memory_space<vmem>>, vector<8x32xf32>
    tpu.vector_store %arg5[%c0_442, %c160], %676 {strides = array<i32>} : memref<8x256xf32, #tpu.memory_space<vmem>>, vector<8x32xf32>,
    %678 = vector.extract_strided_slice %527 {offsets = [48, 0], sizes = [8, 128], strides = [1, 1]} : vector<64x128xf32> to vector<8x128xf32>
    %cst_443 = arith.constant dense<0.000000e+00> : vector<8x128xf32>
    %679 = tpu.matmul %676, %529, %cst_443 {dimension_numbers = #tpu.dot_dimension_numbers<[1], [0], [0], [1], [0, 0, 1, 1], [], []>} : vector<8x32xf32>, vector<32x128xf32>, vector<8x128xf32> -> vector<8x128xf32>
    %680 = arith.addf %678, %679 : vector<8x128xf32>
    %681 = vector.broadcast %531 : vector<1x128xf32> to vector<8x128xf32>
    %682 = arith.addf %680, %681 : vector<8x128xf32>
    %683 = arith.negf %682 : vector<8x128xf32>
    %684 = math.exp %683 : vector<8x128xf32>
    %cst_444 = arith.constant 1.000000e+00 : f32
    %685 = vector.broadcast %cst_444 : f32 to vector<8x128xf32>
    %686 = arith.addf %685, %684 : vector<8x128xf32>
    %687 = arith.divf %685, %686 : vector<8x128xf32>
    %688 = vector.extract_strided_slice %687 {offsets = [0, 0], sizes = [8, 32], strides = [1, 1]} : vector<8x128xf32> to vector<8x32xf32>
    %689 = vector.extract_strided_slice %687 {offsets = [0, 32], sizes = [8, 32], strides = [1, 1]} : vector<8x128xf32> to vector<8x32xf32>
    %690 = vector.extract_strided_slice %687 {offsets = [0, 64], sizes = [8, 32], strides = [1, 1]} : vector<8x128xf32> to vector<8x32xf32>
    %cst_445 = arith.constant 2.000000e+00 : f32
    %691 = vector.broadcast %cst_445 : f32 to vector<8x32xf32>
    %692 = arith.mulf %691, %690 : vector<8x32xf32>
    %cst_446 = arith.constant 1.000000e+00 : f32
    %693 = vector.broadcast %cst_446 : f32 to vector<8x32xf32>
    %694 = arith.subf %692, %693 : vector<8x32xf32>
    %695 = vector.extract_strided_slice %687 {offsets = [0, 96], sizes = [8, 32], strides = [1, 1]} : vector<8x128xf32> to vector<8x32xf32>
    %696 = arith.mulf %689, %674 : vector<8x32xf32>
    %697 = arith.mulf %688, %694 : vector<8x32xf32>
    %698 = arith.addf %696, %697 : vector<8x32xf32>
    %699 = math.tanh %698 : vector<8x32xf32>
    %700 = arith.mulf %695, %699 : vector<8x32xf32>
    %c0_447 = arith.constant 0 : index
    %c192 = arith.constant 192 : index
    %701 = vector.load %arg5[%c0_447, %c192] : memref<8x256xf32, #tpu.memory_space<vmem>>, vector<8x32xf32>
    tpu.vector_store %arg5[%c0_447, %c192], %700 {strides = array<i32>} : memref<8x256xf32, #tpu.memory_space<vmem>>, vector<8x32xf32>,
    %702 = vector.extract_strided_slice %527 {offsets = [56, 0], sizes = [8, 128], strides = [1, 1]} : vector<64x128xf32> to vector<8x128xf32>
    %cst_448 = arith.constant dense<0.000000e+00> : vector<8x128xf32>
    %703 = tpu.matmul %700, %529, %cst_448 {dimension_numbers = #tpu.dot_dimension_numbers<[1], [0], [0], [1], [0, 0, 1, 1], [], []>} : vector<8x32xf32>, vector<32x128xf32>, vector<8x128xf32> -> vector<8x128xf32>
    %704 = arith.addf %702, %703 : vector<8x128xf32>
    %705 = vector.broadcast %531 : vector<1x128xf32> to vector<8x128xf32>
    %706 = arith.addf %704, %705 : vector<8x128xf32>
    %707 = arith.negf %706 : vector<8x128xf32>
    %708 = math.exp %707 : vector<8x128xf32>
    %cst_449 = arith.constant 1.000000e+00 : f32
    %709 = vector.broadcast %cst_449 : f32 to vector<8x128xf32>
    %710 = arith.addf %709, %708 : vector<8x128xf32>
    %711 = arith.divf %709, %710 : vector<8x128xf32>
    %712 = vector.extract_strided_slice %711 {offsets = [0, 0], sizes = [8, 32], strides = [1, 1]} : vector<8x128xf32> to vector<8x32xf32>
    %713 = vector.extract_strided_slice %711 {offsets = [0, 32], sizes = [8, 32], strides = [1, 1]} : vector<8x128xf32> to vector<8x32xf32>
    %714 = vector.extract_strided_slice %711 {offsets = [0, 64], sizes = [8, 32], strides = [1, 1]} : vector<8x128xf32> to vector<8x32xf32>
    %cst_450 = arith.constant 2.000000e+00 : f32
    %715 = vector.broadcast %cst_450 : f32 to vector<8x32xf32>
    %716 = arith.mulf %715, %714 : vector<8x32xf32>
    %cst_451 = arith.constant 1.000000e+00 : f32
    %717 = vector.broadcast %cst_451 : f32 to vector<8x32xf32>
    %718 = arith.subf %716, %717 : vector<8x32xf32>
    %719 = vector.extract_strided_slice %711 {offsets = [0, 96], sizes = [8, 32], strides = [1, 1]} : vector<8x128xf32> to vector<8x32xf32>
    %720 = arith.mulf %713, %698 : vector<8x32xf32>
    %721 = arith.mulf %712, %718 : vector<8x32xf32>
    %722 = arith.addf %720, %721 : vector<8x32xf32>
    %723 = math.tanh %722 : vector<8x32xf32>
    %724 = arith.mulf %719, %723 : vector<8x32xf32>
    %c0_452 = arith.constant 0 : index
    %c224 = arith.constant 224 : index
    %725 = vector.load %arg5[%c0_452, %c224] : memref<8x256xf32, #tpu.memory_space<vmem>>, vector<8x32xf32>
    tpu.vector_store %arg5[%c0_452, %c224], %724 {strides = array<i32>} : memref<8x256xf32, #tpu.memory_space<vmem>>, vector<8x32xf32>,
    %c1_453 = arith.constant 1 : index
    %c0_454 = arith.constant 0 : index
    %c0_455 = arith.constant 0 : index
    %726 = vector.load %arg6[%c1_453, %c0_454, %c0_455] : memref<2x8x32xf32, #tpu.memory_space<vmem>>, vector<1x8x32xf32>
    %727 = vector.shape_cast %726 : vector<1x8x32xf32> to vector<8x32xf32>
    %728 = vector.shape_cast %724 : vector<8x32xf32> to vector<1x8x32xf32>
    tpu.vector_store %arg6[%c1_453, %c0_454, %c0_455], %728 {strides = array<i32>} : memref<2x8x32xf32, #tpu.memory_space<vmem>>, vector<1x8x32xf32>,
    %c1_456 = arith.constant 1 : index
    %c0_457 = arith.constant 0 : index
    %c0_458 = arith.constant 0 : index
    %729 = vector.load %arg7[%c1_456, %c0_457, %c0_458] : memref<2x8x32xf32, #tpu.memory_space<vmem>>, vector<1x8x32xf32>
    %730 = vector.shape_cast %729 : vector<1x8x32xf32> to vector<8x32xf32>
    %731 = vector.shape_cast %722 : vector<8x32xf32> to vector<1x8x32xf32>
    tpu.vector_store %arg7[%c1_456, %c0_457, %c0_458], %731 {strides = array<i32>} : memref<2x8x32xf32, #tpu.memory_space<vmem>>, vector<1x8x32xf32>,
    return
  }
}

</mosaic_0001>

<llo_original>
// kernel: tpu_custom_call.1
$region0: #{tpu_custom_call.1}
  #allocation0 [shape = 'u32[]', space=smem, size = 0x4, offset = 0x4, fixed_abs, tag = 'smem constant byte address 0x4 - core index']
  #allocation1 [shape = 'u32[144,128]{1,0:T(1,128)}', space=vmem, size = 0x12000, scoped, tag = 'internal scratch']
  #allocation2 [shape = 'f32[64,128]{1,0:T(8,128)}', space=vmem, size = 0x8000, scoped, tag = 'scratch operand']
  #allocation3 [shape = 'f32[64,32]{1,0:T(8,128)}', space=vmem, size = 0x8000, scoped, tag = 'scratch operand']
  #allocation4 [shape = 's32[1]{0}', space=sflag, size = 0x4, scoped, tag = 'scoped memory for tpu_custom_call.1']
  #allocation5 [shape = 'u8[4096]{0}', space=smem, size = 0x1000, scoped, tag = 'prefetched SMEM operand 0']
  %s0 = inlined_call_operand.hbm [shape: s32[8,8], index: 0, kind: input, shape index: {}]
  %s1 = inlined_call_operand.hbm [shape: f32[66,1,128], index: 1, kind: input, shape index: {}]
  %s2 = inlined_call_operand.hbm [shape: f32[1,32,128], index: 2, kind: input, shape index: {}]
  %s3 = inlined_call_operand.hbm [shape: f32[2,32,128], index: 3, kind: input, shape index: {}]
  %s4 = inlined_call_operand.vmem [shape: f32[2,1,128], index: 4, kind: input, shape index: {}]
  %s5 = inlined_call_operand.hbm [shape: f32[8,256], index: 5, kind: output, shape index: {0}]
  %s6 = inlined_call_operand.hbm [shape: f32[2,8,32], index: 6, kind: output, shape index: {1}]
  %s7 = inlined_call_operand.hbm [shape: f32[2,8,32], index: 7, kind: output, shape index: {2}]
  %8 = xla_tuple %s5, %s6, %s7
  %s9 = sld [smem:[#allocation0]]
  $region54: #{tpu_custom_call.1} parent=0
    _
  %s11 = ssub.s32 1, %s9
  %s12 = scalar_select 0, %s11, %s9
  %14 = dma.hbm_to_smem %s0, 128, [#allocation5], [#allocation4]
  %15 = dma.done [#allocation4], 128
  %16 = sfence
  $region1: #{tpu_custom_call.1} parent=0
    #allocation6 [shape = 'u8[33792]{0}', space=vmem, size = 0x8400, scoped, tag = 'input window, operand 1, single buffered']
    #allocation7 [shape = 's32[1]{0}', space=sflag, size = 0x4, scoped, tag = 'scoped memory for tpu_custom_call.1']
    #allocation8 [shape = 's32[1]{0}', space=sflag, size = 0x4, scoped, tag = 'scoped memory for tpu_custom_call.1']
    #allocation9 [shape = 'u8[16384]{0}', space=vmem, size = 0x4000, scoped, tag = 'input window, operand 2, single buffered']
    #allocation10 [shape = 's32[1]{0}', space=sflag, size = 0x4, scoped, tag = 'scoped memory for tpu_custom_call.1']
    #allocation11 [shape = 'u8[32768]{0}', space=vmem, size = 0x8000, scoped, tag = 'input window, operand 3, single buffered']
    #allocation12 [shape = 'u8[8192]{0}', space=vmem, size = 0x2000, scoped, tag = 'output window, operand 0, single buffered']
    #allocation13 [shape = 'u8[8192]{0}', space=vmem, size = 0x2000, scoped, tag = 'output window, operand 1, single buffered']
    #allocation14 [shape = 's32[1]{0}', space=sflag, size = 0x4, scoped, tag = 'scoped memory for tpu_custom_call.1']
    #allocation15 [shape = 'u8[8192]{0}', space=vmem, size = 0x2000, scoped, tag = 'output window, operand 2, single buffered']
    %17 = vsyncpa [#allocation7], 0
    %18 = vsyncpa [#allocation10], 0
    %19 = vsyncpa [#allocation8], 0
    %20 = vsyncpa [#allocation14], 0
    // Predicated region
    $region2: #{tpu_custom_call.1} parent=1 // pred_check
      _
    $region3: #{tpu_custom_call.1} parent=1 // pred_check_branch
      %22 = sbr.rel (0) target = $region5
    $region4: #{tpu_custom_call.1} parent=1 // pred_region
      %s24 = ssub.s32 1056, 1056
      %25 = vsyncadd [#allocation7], %s24
      %s26 = sshll.u32 [#allocation6], 4
      %s27 = int_to_ptr.vmem [resolvable:$true] %s26
      %32 = dma.hbm_to_vmem [thread:$0]  %s1, 1056, %s27, [#allocation7], 16, 16, 1
    $region5: #{tpu_custom_call.1} parent=1 // pred_fallthru
      _
    // Predicated region
    $region6: #{tpu_custom_call.1} parent=1 // pred_check
      _
    $region7: #{tpu_custom_call.1} parent=1 // pred_check_branch
      %34 = sbr.rel (0) target = $region9
    $region8: #{tpu_custom_call.1} parent=1 // pred_region
      %s36 = ssub.s32 512, 512
      %37 = vsyncadd [#allocation10], %s36
      %s38 = sshll.u32 [#allocation9], 4
      %s39 = int_to_ptr.vmem [resolvable:$true] %s38
      %44 = dma.hbm_to_vmem [thread:$0]  %s2, 512, %s39, [#allocation10], 128, 128, 8
    $region9: #{tpu_custom_call.1} parent=1 // pred_fallthru
      _
    // Predicated region
    $region10: #{tpu_custom_call.1} parent=1 // pred_check
      _
    $region11: #{tpu_custom_call.1} parent=1 // pred_check_branch
      %46 = sbr.rel (0) target = $region13
    $region12: #{tpu_custom_call.1} parent=1 // pred_region
      %s48 = ssub.s32 1024, 1024
      %49 = vsyncadd [#allocation10], %s48
      %s50 = sshll.u32 [#allocation11], 4
      %s51 = int_to_ptr.vmem [resolvable:$true] %s50
      %56 = dma.hbm_to_vmem [thread:$0]  %s3, 1024, %s51, [#allocation10], 128, 128, 8
    $region13: #{tpu_custom_call.1} parent=1 // pred_fallthru
      _
    // Predicated region
    $region14: #{tpu_custom_call.1} parent=1 // pred_check
      _
    $region15: #{tpu_custom_call.1} parent=1 // pred_check_branch
      %58 = sbr.rel (0) target = $region17
    $region16: #{tpu_custom_call.1} parent=1 // pred_region
      _
    $region17: #{tpu_custom_call.1} parent=1 // pred_fallthru
      _
    // Predicated region
    $region18: #{tpu_custom_call.1} parent=1 // pred_check
      _
    $region19: #{tpu_custom_call.1} parent=1 // pred_check_branch
      %60 = sbr.rel (0) target = $region21
    $region20: #{tpu_custom_call.1} parent=1 // pred_region
      %61 = dma.done [#allocation7], 1056
    $region21: #{tpu_custom_call.1} parent=1 // pred_fallthru
      _
    // Predicated region
    $region22: #{tpu_custom_call.1} parent=1 // pred_check
      _
    $region23: #{tpu_custom_call.1} parent=1 // pred_check_branch
      %63 = sbr.rel (0) target = $region25
    $region24: #{tpu_custom_call.1} parent=1 // pred_region
      %64 = dma.done [#allocation10], 512
    $region25: #{tpu_custom_call.1} parent=1 // pred_fallthru
      _
    // Predicated region
    $region26: #{tpu_custom_call.1} parent=1 // pred_check
      _
    $region27: #{tpu_custom_call.1} parent=1 // pred_check_branch
      %66 = sbr.rel (0) target = $region29
    $region28: #{tpu_custom_call.1} parent=1 // pred_region
      %67 = dma.done [#allocation10], 1024
    $region29: #{tpu_custom_call.1} parent=1 // pred_fallthru
      _
    %s68 = sld [smem:[#allocation5]]
    %s69 = scalar_lea.vmem [#allocation6], %s68
    %v70 = vld [vmem:[%s69] sm:$0x1]
    %71 = vst [vmem:[#allocation2] sm:$0x1] %v70
    %s72 = sld [smem:[#allocation5 + $0x80]]
    %s73 = scalar_lea.vmem [#allocation6], %s72
    %v74 = vld [vmem:[%s73] sm:$0x1]
    %75 = vst [vmem:[#allocation2 + $0x1] sm:$0x1] %v74
    %s76 = sld [smem:[#allocation5 + $0x100]]
    %s77 = scalar_lea.vmem [#allocation6], %s76
    %v78 = vld [vmem:[%s77] sm:$0x1]
    %79 = vst [vmem:[#allocation2 + $0x2] sm:$0x1] %v78
    %s80 = sld [smem:[#allocation5 + $0x180]]
    %s81 = scalar_lea.vmem [#allocation6], %s80
    %v82 = vld [vmem:[%s81] sm:$0x1]
    %83 = vst [vmem:[#allocation2 + $0x3] sm:$0x1] %v82
    %s84 = sld [smem:[#allocation5 + $0x200]]
    %s85 = scalar_lea.vmem [#allocation6], %s84
    %v86 = vld [vmem:[%s85] sm:$0x1]
    %87 = vst [vmem:[#allocation2 + $0x4] sm:$0x1] %v86
    %s88 = sld [smem:[#allocation5 + $0x280]]
    %s89 = scalar_lea.vmem [#allocation6], %s88
    %v90 = vld [vmem:[%s89] sm:$0x1]
    %91 = vst [vmem:[#allocation2 + $0x5] sm:$0x1] %v90
    %s92 = sld [smem:[#allocation5 + $0x300]]
    %s93 = scalar_lea.vmem [#allocation6], %s92
    %v94 = vld [vmem:[%s93] sm:$0x1]
    %95 = vst [vmem:[#allocation2 + $0x6] sm:$0x1] %v94
    %s96 = sld [smem:[#allocation5 + $0x380]]
    %s97 = scalar_lea.vmem [#allocation6], %s96
    %v98 = vld [vmem:[%s97] sm:$0x1]
    %99 = vst [vmem:[#allocation2 + $0x7] sm:$0x1] %v98
    %s100 = sld [smem:[#allocation5 + $0x1]]
    %s101 = scalar_lea.vmem [#allocation6], %s100
    %v102 = vld [vmem:[%s101] sm:$0x1]
    %103 = vst [vmem:[#allocation2 + $0x8] sm:$0x1] %v102
    %s104 = sld [smem:[#allocation5 + $0x81]]
    %s105 = scalar_lea.vmem [#allocation6], %s104
    %v106 = vld [vmem:[%s105] sm:$0x1]
    %107 = vst [vmem:[#allocation2 + $0x9] sm:$0x1] %v106
    %s108 = sld [smem:[#allocation5 + $0x101]]
    %s109 = scalar_lea.vmem [#allocation6], %s108
    %v110 = vld [vmem:[%s109] sm:$0x1]
    %111 = vst [vmem:[#allocation2 + $0xa] sm:$0x1] %v110
    %s112 = sld [smem:[#allocation5 + $0x181]]
    %s113 = scalar_lea.vmem [#allocation6], %s112
    %v114 = vld [vmem:[%s113] sm:$0x1]
    %115 = vst [vmem:[#allocation2 + $0xb] sm:$0x1] %v114
    %s116 = sld [smem:[#allocation5 + $0x201]]
    %s117 = scalar_lea.vmem [#allocation6], %s116
    %v118 = vld [vmem:[%s117] sm:$0x1]
    %119 = vst [vmem:[#allocation2 + $0xc] sm:$0x1] %v118
    %s120 = sld [smem:[#allocation5 + $0x281]]
    %s121 = scalar_lea.vmem [#allocation6], %s120
    %v122 = vld [vmem:[%s121] sm:$0x1]
    %123 = vst [vmem:[#allocation2 + $0xd] sm:$0x1] %v122
    %s124 = sld [smem:[#allocation5 + $0x301]]
    %s125 = scalar_lea.vmem [#allocation6], %s124
    %v126 = vld [vmem:[%s125] sm:$0x1]
    %127 = vst [vmem:[#allocation2 + $0xe] sm:$0x1] %v126
    %s128 = sld [smem:[#allocation5 + $0x381]]
    %s129 = scalar_lea.vmem [#allocation6], %s128
    %v130 = vld [vmem:[%s129] sm:$0x1]
    %131 = vst [vmem:[#allocation2 + $0xf] sm:$0x1] %v130
    %s132 = sld [smem:[#allocation5 + $0x2]]
    %s133 = scalar_lea.vmem [#allocation6], %s132
    %v134 = vld [vmem:[%s133] sm:$0x1]
    %135 = vst [vmem:[#allocation2 + $0x10] sm:$0x1] %v134
    %s136 = sld [smem:[#allocation5 + $0x82]]
    %s137 = scalar_lea.vmem [#allocation6], %s136
    %v138 = vld [vmem:[%s137] sm:$0x1]
    %139 = vst [vmem:[#allocation2 + $0x11] sm:$0x1] %v138
    %s140 = sld [smem:[#allocation5 + $0x102]]
    %s141 = scalar_lea.vmem [#allocation6], %s140
    %v142 = vld [vmem:[%s141] sm:$0x1]
    %143 = vst [vmem:[#allocation2 + $0x12] sm:$0x1] %v142
    %s144 = sld [smem:[#allocation5 + $0x182]]
    %s145 = scalar_lea.vmem [#allocation6], %s144
    %v146 = vld [vmem:[%s145] sm:$0x1]
    %147 = vst [vmem:[#allocation2 + $0x13] sm:$0x1] %v146
    %s148 = sld [smem:[#allocation5 + $0x202]]
    %s149 = scalar_lea.vmem [#allocation6], %s148
    %v150 = vld [vmem:[%s149] sm:$0x1]
    %151 = vst [vmem:[#allocation2 + $0x14] sm:$0x1] %v150
    %s152 = sld [smem:[#allocation5 + $0x282]]
    %s153 = scalar_lea.vmem [#allocation6], %s152
    %v154 = vld [vmem:[%s153] sm:$0x1]
    %155 = vst [vmem:[#allocation2 + $0x15] sm:$0x1] %v154
    %s156 = sld [smem:[#allocation5 + $0x302]]
    %s157 = scalar_lea.vmem [#allocation6], %s156
    %v158 = vld [vmem:[%s157] sm:$0x1]
    %159 = vst [vmem:[#allocation2 + $0x16] sm:$0x1] %v158
    %s160 = sld [smem:[#allocation5 + $0x382]]
    %s161 = scalar_lea.vmem [#allocation6], %s160
    %v162 = vld [vmem:[%s161] sm:$0x1]
    %163 = vst [vmem:[#allocation2 + $0x17] sm:$0x1] %v162
    %s164 = sld [smem:[#allocation5 + $0x3]]
    %s165 = scalar_lea.vmem [#allocation6], %s164
    %v166 = vld [vmem:[%s165] sm:$0x1]
    %167 = vst [vmem:[#allocation2 + $0x18] sm:$0x1] %v166
    %s168 = sld [smem:[#allocation5 + $0x83]]
    %s169 = scalar_lea.vmem [#allocation6], %s168
    %v170 = vld [vmem:[%s169] sm:$0x1]
    %171 = vst [vmem:[#allocation2 + $0x19] sm:$0x1] %v170
    %s172 = sld [smem:[#allocation5 + $0x103]]
    %s173 = scalar_lea.vmem [#allocation6], %s172
    %v174 = vld [vmem:[%s173] sm:$0x1]
    %175 = vst [vmem:[#allocation2 + $0x1a] sm:$0x1] %v174
    %s176 = sld [smem:[#allocation5 + $0x183]]
    %s177 = scalar_lea.vmem [#allocation6], %s176
    %v178 = vld [vmem:[%s177] sm:$0x1]
    %179 = vst [vmem:[#allocation2 + $0x1b] sm:$0x1] %v178
    %s180 = sld [smem:[#allocation5 + $0x203]]
    %s181 = scalar_lea.vmem [#allocation6], %s180
    %v182 = vld [vmem:[%s181] sm:$0x1]
    %183 = vst [vmem:[#allocation2 + $0x1c] sm:$0x1] %v182
    %s184 = sld [smem:[#allocation5 + $0x283]]
    %s185 = scalar_lea.vmem [#allocation6], %s184
    %v186 = vld [vmem:[%s185] sm:$0x1]
    %187 = vst [vmem:[#allocation2 + $0x1d] sm:$0x1] %v186
    %s188 = sld [smem:[#allocation5 + $0x303]]
    %s189 = scalar_lea.vmem [#allocation6], %s188
    %v190 = vld [vmem:[%s189] sm:$0x1]
    %191 = vst [vmem:[#allocation2 + $0x1e] sm:$0x1] %v190
    %s192 = sld [smem:[#allocation5 + $0x383]]
    %s193 = scalar_lea.vmem [#allocation6], %s192
    %v194 = vld [vmem:[%s193] sm:$0x1]
    %195 = vst [vmem:[#allocation2 + $0x1f] sm:$0x1] %v194
    %s196 = sld [smem:[#allocation5 + $0x4]]
    %s197 = scalar_lea.vmem [#allocation6], %s196
    %v198 = vld [vmem:[%s197] sm:$0x1]
    %199 = vst [vmem:[#allocation2 + $0x20] sm:$0x1] %v198
    %s200 = sld [smem:[#allocation5 + $0x84]]
    %s201 = scalar_lea.vmem [#allocation6], %s200
    %v202 = vld [vmem:[%s201] sm:$0x1]
    %203 = vst [vmem:[#allocation2 + $0x21] sm:$0x1] %v202
    %s204 = sld [smem:[#allocation5 + $0x104]]
    %s205 = scalar_lea.vmem [#allocation6], %s204
    %v206 = vld [vmem:[%s205] sm:$0x1]
    %207 = vst [vmem:[#allocation2 + $0x22] sm:$0x1] %v206
    %s208 = sld [smem:[#allocation5 + $0x184]]
    %s209 = scalar_lea.vmem [#allocation6], %s208
    %v210 = vld [vmem:[%s209] sm:$0x1]
    %211 = vst [vmem:[#allocation2 + $0x23] sm:$0x1] %v210
    %s212 = sld [smem:[#allocation5 + $0x204]]
    %s213 = scalar_lea.vmem [#allocation6], %s212
    %v214 = vld [vmem:[%s213] sm:$0x1]
    %215 = vst [vmem:[#allocation2 + $0x24] sm:$0x1] %v214
    %s216 = sld [smem:[#allocation5 + $0x284]]
    %s217 = scalar_lea.vmem [#allocation6], %s216
    %v218 = vld [vmem:[%s217] sm:$0x1]
    %219 = vst [vmem:[#allocation2 + $0x25] sm:$0x1] %v218
    %s220 = sld [smem:[#allocation5 + $0x304]]
    %s221 = scalar_lea.vmem [#allocation6], %s220
    %v222 = vld [vmem:[%s221] sm:$0x1]
    %223 = vst [vmem:[#allocation2 + $0x26] sm:$0x1] %v222
    %s224 = sld [smem:[#allocation5 + $0x384]]
    %s225 = scalar_lea.vmem [#allocation6], %s224
    %v226 = vld [vmem:[%s225] sm:$0x1]
    %227 = vst [vmem:[#allocation2 + $0x27] sm:$0x1] %v226
    %s228 = sld [smem:[#allocation5 + $0x5]]
    %s229 = scalar_lea.vmem [#allocation6], %s228
    %v230 = vld [vmem:[%s229] sm:$0x1]
    %231 = vst [vmem:[#allocation2 + $0x28] sm:$0x1] %v230
    %s232 = sld [smem:[#allocation5 + $0x85]]
    %s233 = scalar_lea.vmem [#allocation6], %s232
    %v234 = vld [vmem:[%s233] sm:$0x1]
    %235 = vst [vmem:[#allocation2 + $0x29] sm:$0x1] %v234
    %s236 = sld [smem:[#allocation5 + $0x105]]
    %s237 = scalar_lea.vmem [#allocation6], %s236
    %v238 = vld [vmem:[%s237] sm:$0x1]
    %239 = vst [vmem:[#allocation2 + $0x2a] sm:$0x1] %v238
    %s240 = sld [smem:[#allocation5 + $0x185]]
    %s241 = scalar_lea.vmem [#allocation6], %s240
    %v242 = vld [vmem:[%s241] sm:$0x1]
    %243 = vst [vmem:[#allocation2 + $0x2b] sm:$0x1] %v242
    %s244 = sld [smem:[#allocation5 + $0x205]]
    %s245 = scalar_lea.vmem [#allocation6], %s244
    %v246 = vld [vmem:[%s245] sm:$0x1]
    %247 = vst [vmem:[#allocation2 + $0x2c] sm:$0x1] %v246
    %s248 = sld [smem:[#allocation5 + $0x285]]
    %s249 = scalar_lea.vmem [#allocation6], %s248
    %v250 = vld [vmem:[%s249] sm:$0x1]
    %251 = vst [vmem:[#allocation2 + $0x2d] sm:$0x1] %v250
    %s252 = sld [smem:[#allocation5 + $0x305]]
    %s253 = scalar_lea.vmem [#allocation6], %s252
    %v254 = vld [vmem:[%s253] sm:$0x1]
    %255 = vst [vmem:[#allocation2 + $0x2e] sm:$0x1] %v254
    %s256 = sld [smem:[#allocation5 + $0x385]]
    %s257 = scalar_lea.vmem [#allocation6], %s256
    %v258 = vld [vmem:[%s257] sm:$0x1]
    %259 = vst [vmem:[#allocation2 + $0x2f] sm:$0x1] %v258
    %s260 = sld [smem:[#allocation5 + $0x6]]
    %s261 = scalar_lea.vmem [#allocation6], %s260
    %v262 = vld [vmem:[%s261] sm:$0x1]
    %263 = vst [vmem:[#allocation2 + $0x30] sm:$0x1] %v262
    %s264 = sld [smem:[#allocation5 + $0x86]]
    %s265 = scalar_lea.vmem [#allocation6], %s264
    %v266 = vld [vmem:[%s265] sm:$0x1]
    %267 = vst [vmem:[#allocation2 + $0x31] sm:$0x1] %v266
    %s268 = sld [smem:[#allocation5 + $0x106]]
    %s269 = scalar_lea.vmem [#allocation6], %s268
    %v270 = vld [vmem:[%s269] sm:$0x1]
    %271 = vst [vmem:[#allocation2 + $0x32] sm:$0x1] %v270
    %s272 = sld [smem:[#allocation5 + $0x186]]
    %s273 = scalar_lea.vmem [#allocation6], %s272
    %v274 = vld [vmem:[%s273] sm:$0x1]
    %275 = vst [vmem:[#allocation2 + $0x33] sm:$0x1] %v274
    %s276 = sld [smem:[#allocation5 + $0x206]]
    %s277 = scalar_lea.vmem [#allocation6], %s276
    %v278 = vld [vmem:[%s277] sm:$0x1]
    %279 = vst [vmem:[#allocation2 + $0x34] sm:$0x1] %v278
    %s280 = sld [smem:[#allocation5 + $0x286]]
    %s281 = scalar_lea.vmem [#allocation6], %s280
    %v282 = vld [vmem:[%s281] sm:$0x1]
    %283 = vst [vmem:[#allocation2 + $0x35] sm:$0x1] %v282
    %s284 = sld [smem:[#allocation5 + $0x306]]
    %s285 = scalar_lea.vmem [#allocation6], %s284
    %v286 = vld [vmem:[%s285] sm:$0x1]
    %287 = vst [vmem:[#allocation2 + $0x36] sm:$0x1] %v286
    %s288 = sld [smem:[#allocation5 + $0x386]]
    %s289 = scalar_lea.vmem [#allocation6], %s288
    %v290 = vld [vmem:[%s289] sm:$0x1]
    %291 = vst [vmem:[#allocation2 + $0x37] sm:$0x1] %v290
    %s292 = sld [smem:[#allocation5 + $0x7]]
    %s293 = scalar_lea.vmem [#allocation6], %s292
    %v294 = vld [vmem:[%s293] sm:$0x1]
    %295 = vst [vmem:[#allocation2 + $0x38] sm:$0x1] %v294
    %s296 = sld [smem:[#allocation5 + $0x87]]
    %s297 = scalar_lea.vmem [#allocation6], %s296
    %v298 = vld [vmem:[%s297] sm:$0x1]
    %299 = vst [vmem:[#allocation2 + $0x39] sm:$0x1] %v298
    %s300 = sld [smem:[#allocation5 + $0x107]]
    %s301 = scalar_lea.vmem [#allocation6], %s300
    %v302 = vld [vmem:[%s301] sm:$0x1]
    %303 = vst [vmem:[#allocation2 + $0x3a] sm:$0x1] %v302
    %s304 = sld [smem:[#allocation5 + $0x187]]
    %s305 = scalar_lea.vmem [#allocation6], %s304
    %v306 = vld [vmem:[%s305] sm:$0x1]
    %307 = vst [vmem:[#allocation2 + $0x3b] sm:$0x1] %v306
    %s308 = sld [smem:[#allocation5 + $0x207]]
    %s309 = scalar_lea.vmem [#allocation6], %s308
    %v310 = vld [vmem:[%s309] sm:$0x1]
    %311 = vst [vmem:[#allocation2 + $0x3c] sm:$0x1] %v310
    %s312 = sld [smem:[#allocation5 + $0x287]]
    %s313 = scalar_lea.vmem [#allocation6], %s312
    %v314 = vld [vmem:[%s313] sm:$0x1]
    %315 = vst [vmem:[#allocation2 + $0x3d] sm:$0x1] %v314
    %s316 = sld [smem:[#allocation5 + $0x307]]
    %s317 = scalar_lea.vmem [#allocation6], %s316
    %v318 = vld [vmem:[%s317] sm:$0x1]
    %319 = vst [vmem:[#allocation2 + $0x3e] sm:$0x1] %v318
    %s320 = sld [smem:[#allocation5 + $0x387]]
    %s321 = scalar_lea.vmem [#allocation6], %s320
    %v322 = vld [vmem:[%s321] sm:$0x1]
    %323 = vst [vmem:[#allocation2 + $0x3f] sm:$0x1] %v322
    %v324 = vld [vmem:[#allocation11] sm:$0xff]
    %v325 = vld [vmem:[#allocation11 + $0x8] sm:$0xff]
    %v326 = vld [vmem:[#allocation11 + $0x10] sm:$0xff]
    %v327 = vld [vmem:[#allocation11 + $0x18] sm:$0xff]
    %v328 = vld [vmem:[%s4] sm:$0x1]
    %v329 = vld [vmem:[#allocation2] sm:$0xff]
    %vm330 = vcmask 261120
    %v332 = vsel %vm330, 0.0, 0
    %334 = vmatprep.subr.mxu0 0.0
    %335 = vmatpush1.msra.mxu0 0.0
    %336 = vmatprep.subr.mxu0 0.0
    %337 = vmatpush1.msra.mxu0 0.0
    %338 = vmatprep.subr.mxu0 0.0
    %339 = vmatpush1.msra.mxu0 0.0
    %340 = vmatprep.subr.mxu0 0.0
    %341 = vmatpush1.msra.mxu0 0.0
    %342 = vmatprep.subr.mxu0 0.0
    %343 = vmatpush1.msra.mxu0 0.0
    %344 = vmatprep.subr.mxu0 0.0
    %345 = vmatpush1.msra.mxu0 0.0
    %346 = vmatprep.subr.mxu0 0.0
    %347 = vmatpush1.msra.mxu0 0.0
    %348 = vmatprep.subr.mxu0 0.0
    %349 = vmatpush1.msra.mxu0 0.0
    %350 = vmatprep.subr.mxu0 0.0
    %351 = vmatpush1.msra.mxu0 0.0
    %352 = vmatprep.subr.mxu0 0.0
    %353 = vmatpush1.msra.mxu0 0.0
    %354 = vmatprep.subr.mxu0 0.0
    %355 = vmatpush1.msra.mxu0 0.0
    %356 = vmatprep.subr.mxu0 0.0
    %357 = vmatpush1.msra.mxu0 0.0
    %358 = vmatprep.subr.mxu0 0.0
    %359 = vmatpush1.msra.mxu0 %v327
    %360 = vmatprep.subr.mxu0 0.0
    %361 = vmatpush1.msra.mxu0 %v326
    %362 = vmatprep.subr.mxu0 0.0
    %363 = vmatpush1.msra.mxu0 %v325
    %364 = vmatprep.subr.mxu0 0.0
    %365 = vmatpush1.msra.mxu0 %v324
    %366 = vmatprep.subr.mxu0 0.0
    %367 = vmatpush2.msra.mxu0 0.0
    %368 = vmatprep.subr.mxu0 0.0
    %369 = vmatpush2.msra.mxu0 0.0
    %370 = vmatprep.subr.mxu0 0.0
    %371 = vmatpush2.msra.mxu0 0.0
    %372 = vmatprep.subr.mxu0 0.0
    %373 = vmatpush2.msra.mxu0 0.0
    %374 = vmatprep.subr.mxu0 0.0
    %375 = vmatpush2.msra.mxu0 0.0
    %376 = vmatprep.subr.mxu0 0.0
    %377 = vmatpush2.msra.mxu0 0.0
    %378 = vmatprep.subr.mxu0 0.0
    %379 = vmatpush2.msra.mxu0 0.0
    %380 = vmatprep.subr.mxu0 0.0
    %381 = vmatpush2.msra.mxu0 0.0
    %382 = vmatprep.subr.mxu0 0.0
    %383 = vmatpush2.msra.mxu0 0.0
    %384 = vmatprep.subr.mxu0 0.0
    %385 = vmatpush2.msra.mxu0 0.0
    %386 = vmatprep.subr.mxu0 0.0
    %387 = vmatpush2.msra.mxu0 0.0
    %388 = vmatprep.subr.mxu0 0.0
    %389 = vmatpush2.msra.mxu0 0.0
    %390 = vmatprep.subr.mxu0 0.0
    %391 = vmatpush2.msra.mxu0 0.0
    %392 = vmatprep.subr.mxu0 0.0
    %393 = vmatpush2.msra.mxu0 0.0
    %394 = vmatprep.subr.mxu0 0.0
    %395 = vmatpush2.msra.mxu0 0.0
    %396 = vmatprep.subr.mxu0 0.0
    %397 = vmatpush2.msra.mxu0 0.0
    %398 = vmatprep.mubr.f32.mxu0 0.0
    %399 = vmatmul.mubr.f32.gmra.mxu0 %v332
    %v400 = vpop.f32.mrf.mxu0
    %v401 = vadd.f32 0.0, %v400
    %v402 = vpop.f32.mrf.mxu0
    %403 = vdwg.mxu0
    %v404 = vadd.f32 %v329, %v401
    %v406 = vlaneseq
    %v407 = vshrl.u32 %v406, 7
    %v408 = vsub.s32 0, %v407
    %v409 = vrot.slane %v328, %v408
    %v411 = vadd.f32 %v404, %v409
    %v412 = vxor.u32 %v411, 2147483648
    %v413 = vmul.f32 %v412, 1.442695
    %v414 = vpow.pop %v413
    %v415 = vadd.f32 %v414, 1.0
    %v416 = vrcp.pop %v415
    %v417 = vmul.f32 1.0, %v416
    %v418 = vmul.f32 %v417, 2.0
    %v419 = vsub.f32 %v418, 1.0
    %v420 = vmul.f32 %v417, 0.0
    %422 = vrot.lane.b32.xlu0 %v419, 64
    %v423 = vpop.permute.xlu0 %422
    %v425 = vmul.f32 %v417, %v423
    %427 = vrot.lane.b32.xlu0 %v425, 32
    %v428 = vpop.permute.xlu0 %427
    %v430 = vadd.f32 %v420, %v428
    %v431 = vtanh.pop %v430
    %433 = vrot.lane.b32.xlu0 %v431, 64
    %v434 = vpop.permute.xlu0 %433
    %v436 = vmul.f32 %v417, %v434
    %438 = vrot.lane.b32.xlu0 %v436, 32
    %v439 = vpop.permute.xlu0 %438
    %441 = vst.msk [vmem:[#allocation3] sm:$0xff] %vm330, %v439
    %v442 = vld [vmem:[#allocation2 + $0x8] sm:$0xff]
    %v443 = vsel %vm330, %v439, 0
    %445 = vmatprep.subr.mxu0 0.0
    %446 = vmatpush1.msra.mxu0 0.0
    %447 = vmatprep.subr.mxu0 0.0
    %448 = vmatpush1.msra.mxu0 0.0
    %449 = vmatprep.subr.mxu0 0.0
    %450 = vmatpush1.msra.mxu0 0.0
    %451 = vmatprep.subr.mxu0 0.0
    %452 = vmatpush1.msra.mxu0 0.0
    %453 = vmatprep.subr.mxu0 0.0
    %454 = vmatpush1.msra.mxu0 0.0
    %455 = vmatprep.subr.mxu0 0.0
    %456 = vmatpush1.msra.mxu0 0.0
    %457 = vmatprep.subr.mxu0 0.0
    %458 = vmatpush1.msra.mxu0 0.0
    %459 = vmatprep.subr.mxu0 0.0
    %460 = vmatpush1.msra.mxu0 0.0
    %461 = vmatprep.subr.mxu0 0.0
    %462 = vmatpush1.msra.mxu0 0.0
    %463 = vmatprep.subr.mxu0 0.0
    %464 = vmatpush1.msra.mxu0 0.0
    %465 = vmatprep.subr.mxu0 0.0
    %466 = vmatpush1.msra.mxu0 0.0
    %467 = vmatprep.subr.mxu0 0.0
    %468 = vmatpush1.msra.mxu0 0.0
    %469 = vmatprep.subr.mxu0 0.0
    %470 = vmatpush1.msra.mxu0 %v327
    %471 = vmatprep.subr.mxu0 0.0
    %472 = vmatpush1.msra.mxu0 %v326
    %473 = vmatprep.subr.mxu0 0.0
    %474 = vmatpush1.msra.mxu0 %v325
    %475 = vmatprep.subr.mxu0 0.0
    %476 = vmatpush1.msra.mxu0 %v324
    %477 = vmatprep.subr.mxu0 0.0
    %478 = vmatpush2.msra.mxu0 0.0
    %479 = vmatprep.subr.mxu0 0.0
    %480 = vmatpush2.msra.mxu0 0.0
    %481 = vmatprep.subr.mxu0 0.0
    %482 = vmatpush2.msra.mxu0 0.0
    %483 = vmatprep.subr.mxu0 0.0
    %484 = vmatpush2.msra.mxu0 0.0
    %485 = vmatprep.subr.mxu0 0.0
    %486 = vmatpush2.msra.mxu0 0.0
    %487 = vmatprep.subr.mxu0 0.0
    %488 = vmatpush2.msra.mxu0 0.0
    %489 = vmatprep.subr.mxu0 0.0
    %490 = vmatpush2.msra.mxu0 0.0
    %491 = vmatprep.subr.mxu0 0.0
    %492 = vmatpush2.msra.mxu0 0.0
    %493 = vmatprep.subr.mxu0 0.0
    %494 = vmatpush2.msra.mxu0 0.0
    %495 = vmatprep.subr.mxu0 0.0
    %496 = vmatpush2.msra.mxu0 0.0
    %497 = vmatprep.subr.mxu0 0.0
    %498 = vmatpush2.msra.mxu0 0.0
    %499 = vmatprep.subr.mxu0 0.0
    %500 = vmatpush2.msra.mxu0 0.0
    %501 = vmatprep.subr.mxu0 0.0
    %502 = vmatpush2.msra.mxu0 0.0
    %503 = vmatprep.subr.mxu0 0.0
    %504 = vmatpush2.msra.mxu0 0.0
    %505 = vmatprep.subr.mxu0 0.0
    %506 = vmatpush2.msra.mxu0 0.0
    %507 = vmatprep.subr.mxu0 0.0
    %508 = vmatpush2.msra.mxu0 0.0
    %509 = vmatprep.mubr.f32.mxu0 0.0
    %510 = vmatmul.mubr.f32.gmra.mxu0 %v443
    %v511 = vpop.f32.mrf.mxu0
    %v512 = vadd.f32 0.0, %v511
    %v513 = vpop.f32.mrf.mxu0
    %514 = vdwg.mxu0
    %v515 = vadd.f32 %v442, %v512
    %v516 = vadd.f32 %v515, %v409
    %v517 = vxor.u32 %v516, 2147483648
    %v518 = vmul.f32 %v517, 1.442695
    %v519 = vpow.pop %v518
    %v520 = vadd.f32 %v519, 1.0
    %v521 = vrcp.pop %v520
    %v522 = vmul.f32 1.0, %v521
    %v523 = vmul.f32 %v522, 2.0
    %v524 = vsub.f32 %v523, 1.0
    %v525 = vmul.f32 %v522, %v430
    %527 = vrot.lane.b32.xlu0 %v524, 64
    %v528 = vpop.permute.xlu0 %527
    %v530 = vmul.f32 %v522, %v528
    %532 = vrot.lane.b32.xlu0 %v530, 32
    %v533 = vpop.permute.xlu0 %532
    %v535 = vadd.f32 %v525, %v533
    %v536 = vtanh.pop %v535
    %538 = vrot.lane.b32.xlu0 %v536, 64
    %v539 = vpop.permute.xlu0 %538
    %v541 = vmul.f32 %v522, %v539
    %543 = vrot.lane.b32.xlu0 %v541, 32
    %v544 = vpop.permute.xlu0 %543
    %546 = vst.msk [vmem:[#allocation3 + $0x8] sm:$0xff] %vm330, %v544
    %v547 = vld [vmem:[#allocation2 + $0x10] sm:$0xff]
    %v548 = vsel %vm330, %v544, 0
    %550 = vmatprep.subr.mxu0 0.0
    %551 = vmatpush1.msra.mxu0 0.0
    %552 = vmatprep.subr.mxu0 0.0
    %553 = vmatpush1.msra.mxu0 0.0
    %554 = vmatprep.subr.mxu0 0.0
    %555 = vmatpush1.msra.mxu0 0.0
    %556 = vmatprep.subr.mxu0 0.0
    %557 = vmatpush1.msra.mxu0 0.0
    %558 = vmatprep.subr.mxu0 0.0
    %559 = vmatpush1.msra.mxu0 0.0
    %560 = vmatprep.subr.mxu0 0.0
    %561 = vmatpush1.msra.mxu0 0.0
    %562 = vmatprep.subr.mxu0 0.0
    %563 = vmatpush1.msra.mxu0 0.0
    %564 = vmatprep.subr.mxu0 0.0
    %565 = vmatpush1.msra.mxu0 0.0
    %566 = vmatprep.subr.mxu0 0.0
    %567 = vmatpush1.msra.mxu0 0.0
    %568 = vmatprep.subr.mxu0 0.0
    %569 = vmatpush1.msra.mxu0 0.0
    %570 = vmatprep.subr.mxu0 0.0
    %571 = vmatpush1.msra.mxu0 0.0
    %572 = vmatprep.subr.mxu0 0.0
    %573 = vmatpush1.msra.mxu0 0.0
    %574 = vmatprep.subr.mxu0 0.0
    %575 = vmatpush1.msra.mxu0 %v327
    %576 = vmatprep.subr.mxu0 0.0
    %577 = vmatpush1.msra.mxu0 %v326
    %578 = vmatprep.subr.mxu0 0.0
    %579 = vmatpush1.msra.mxu0 %v325
    %580 = vmatprep.subr.mxu0 0.0
    %581 = vmatpush1.msra.mxu0 %v324
    %582 = vmatprep.subr.mxu0 0.0
    %583 = vmatpush2.msra.mxu0 0.0
    %584 = vmatprep.subr.mxu0 0.0
    %585 = vmatpush2.msra.mxu0 0.0
    %586 = vmatprep.subr.mxu0 0.0
    %587 = vmatpush2.msra.mxu0 0.0
    %588 = vmatprep.subr.mxu0 0.0
    %589 = vmatpush2.msra.mxu0 0.0
    %590 = vmatprep.subr.mxu0 0.0
    %591 = vmatpush2.msra.mxu0 0.0
    %592 = vmatprep.subr.mxu0 0.0
    %593 = vmatpush2.msra.mxu0 0.0
    %594 = vmatprep.subr.mxu0 0.0
    %595 = vmatpush2.msra.mxu0 0.0
    %596 = vmatprep.subr.mxu0 0.0
    %597 = vmatpush2.msra.mxu0 0.0
    %598 = vmatprep.subr.mxu0 0.0
    %599 = vmatpush2.msra.mxu0 0.0
    %600 = vmatprep.subr.mxu0 0.0
    %601 = vmatpush2.msra.mxu0 0.0
    %602 = vmatprep.subr.mxu0 0.0
    %603 = vmatpush2.msra.mxu0 0.0
    %604 = vmatprep.subr.mxu0 0.0
    %605 = vmatpush2.msra.mxu0 0.0
    %606 = vmatprep.subr.mxu0 0.0
    %607 = vmatpush2.msra.mxu0 0.0
    %608 = vmatprep.subr.mxu0 0.0
    %609 = vmatpush2.msra.mxu0 0.0
    %610 = vmatprep.subr.mxu0 0.0
    %611 = vmatpush2.msra.mxu0 0.0
    %612 = vmatprep.subr.mxu0 0.0
    %613 = vmatpush2.msra.mxu0 0.0
    %614 = vmatprep.mubr.f32.mxu0 0.0
    %615 = vmatmul.mubr.f32.gmra.mxu0 %v548
    %v616 = vpop.f32.mrf.mxu0
    %v617 = vadd.f32 0.0, %v616
    %v618 = vpop.f32.mrf.mxu0
    %619 = vdwg.mxu0
    %v620 = vadd.f32 %v547, %v617
    %v621 = vadd.f32 %v620, %v409
    %v622 = vxor.u32 %v621, 2147483648
    %v623 = vmul.f32 %v622, 1.442695
    %v624 = vpow.pop %v623
    %v625 = vadd.f32 %v624, 1.0
    %v626 = vrcp.pop %v625
    %v627 = vmul.f32 1.0, %v626
    %v628 = vmul.f32 %v627, 2.0
    %v629 = vsub.f32 %v628, 1.0
    %v630 = vmul.f32 %v627, %v535
    %632 = vrot.lane.b32.xlu0 %v629, 64
    %v633 = vpop.permute.xlu0 %632
    %v635 = vmul.f32 %v627, %v633
    %637 = vrot.lane.b32.xlu0 %v635, 32
    %v638 = vpop.permute.xlu0 %637
    %v640 = vadd.f32 %v630, %v638
    %v641 = vtanh.pop %v640
    %643 = vrot.lane.b32.xlu0 %v641, 64
    %v644 = vpop.permute.xlu0 %643
    %v646 = vmul.f32 %v627, %v644
    %648 = vrot.lane.b32.xlu0 %v646, 32
    %v649 = vpop.permute.xlu0 %648
    %651 = vst.msk [vmem:[#allocation3 + $0x10] sm:$0xff] %vm330, %v649
    %v652 = vld [vmem:[#allocation2 + $0x18] sm:$0xff]
    %v653 = vsel %vm330, %v649, 0
    %655 = vmatprep.subr.mxu0 0.0
    %656 = vmatpush1.msra.mxu0 0.0
    %657 = vmatprep.subr.mxu0 0.0
    %658 = vmatpush1.msra.mxu0 0.0
    %659 = vmatprep.subr.mxu0 0.0
    %660 = vmatpush1.msra.mxu0 0.0
    %661 = vmatprep.subr.mxu0 0.0
    %662 = vmatpush1.msra.mxu0 0.0
    %663 = vmatprep.subr.mxu0 0.0
    %664 = vmatpush1.msra.mxu0 0.0
    %665 = vmatprep.subr.mxu0 0.0
    %666 = vmatpush1.msra.mxu0 0.0
    %667 = vmatprep.subr.mxu0 0.0
    %668 = vmatpush1.msra.mxu0 0.0
    %669 = vmatprep.subr.mxu0 0.0
    %670 = vmatpush1.msra.mxu0 0.0
    %671 = vmatprep.subr.mxu0 0.0
    %672 = vmatpush1.msra.mxu0 0.0
    %673 = vmatprep.subr.mxu0 0.0
    %674 = vmatpush1.msra.mxu0 0.0
    %675 = vmatprep.subr.mxu0 0.0
    %676 = vmatpush1.msra.mxu0 0.0
    %677 = vmatprep.subr.mxu0 0.0
    %678 = vmatpush1.msra.mxu0 0.0
    %679 = vmatprep.subr.mxu0 0.0
    %680 = vmatpush1.msra.mxu0 %v327
    %681 = vmatprep.subr.mxu0 0.0
    %682 = vmatpush1.msra.mxu0 %v326
    %683 = vmatprep.subr.mxu0 0.0
    %684 = vmatpush1.msra.mxu0 %v325
    %685 = vmatprep.subr.mxu0 0.0
    %686 = vmatpush1.msra.mxu0 %v324
    %687 = vmatprep.subr.mxu0 0.0
    %688 = vmatpush2.msra.mxu0 0.0
    %689 = vmatprep.subr.mxu0 0.0
    %690 = vmatpush2.msra.mxu0 0.0
    %691 = vmatprep.subr.mxu0 0.0
    %692 = vmatpush2.msra.mxu0 0.0
    %693 = vmatprep.subr.mxu0 0.0
    %694 = vmatpush2.msra.mxu0 0.0
    %695 = vmatprep.subr.mxu0 0.0
    %696 = vmatpush2.msra.mxu0 0.0
    %697 = vmatprep.subr.mxu0 0.0
    %698 = vmatpush2.msra.mxu0 0.0
    %699 = vmatprep.subr.mxu0 0.0
    %700 = vmatpush2.msra.mxu0 0.0
    %701 = vmatprep.subr.mxu0 0.0
    %702 = vmatpush2.msra.mxu0 0.0
    %703 = vmatprep.subr.mxu0 0.0
    %704 = vmatpush2.msra.mxu0 0.0
    %705 = vmatprep.subr.mxu0 0.0
    %706 = vmatpush2.msra.mxu0 0.0
    %707 = vmatprep.subr.mxu0 0.0
    %708 = vmatpush2.msra.mxu0 0.0
    %709 = vmatprep.subr.mxu0 0.0
    %710 = vmatpush2.msra.mxu0 0.0
    %711 = vmatprep.subr.mxu0 0.0
    %712 = vmatpush2.msra.mxu0 0.0
    %713 = vmatprep.subr.mxu0 0.0
    %714 = vmatpush2.msra.mxu0 0.0
    %715 = vmatprep.subr.mxu0 0.0
    %716 = vmatpush2.msra.mxu0 0.0
    %717 = vmatprep.subr.mxu0 0.0
    %718 = vmatpush2.msra.mxu0 0.0
    %719 = vmatprep.mubr.f32.mxu0 0.0
    %720 = vmatmul.mubr.f32.gmra.mxu0 %v653
    %v721 = vpop.f32.mrf.mxu0
    %v722 = vadd.f32 0.0, %v721
    %v723 = vpop.f32.mrf.mxu0
    %724 = vdwg.mxu0
    %v725 = vadd.f32 %v652, %v722
    %v726 = vadd.f32 %v725, %v409
    %v727 = vxor.u32 %v726, 2147483648
    %v728 = vmul.f32 %v727, 1.442695
    %v729 = vpow.pop %v728
    %v730 = vadd.f32 %v729, 1.0
    %v731 = vrcp.pop %v730
    %v732 = vmul.f32 1.0, %v731
    %v733 = vmul.f32 %v732, 2.0
    %v734 = vsub.f32 %v733, 1.0
    %v735 = vmul.f32 %v732, %v640
    %737 = vrot.lane.b32.xlu0 %v734, 64
    %v738 = vpop.permute.xlu0 %737
    %v740 = vmul.f32 %v732, %v738
    %742 = vrot.lane.b32.xlu0 %v740, 32
    %v743 = vpop.permute.xlu0 %742
    %v745 = vadd.f32 %v735, %v743
    %v746 = vtanh.pop %v745
    %748 = vrot.lane.b32.xlu0 %v746, 64
    %v749 = vpop.permute.xlu0 %748
    %v751 = vmul.f32 %v732, %v749
    %753 = vrot.lane.b32.xlu0 %v751, 32
    %v754 = vpop.permute.xlu0 %753
    %756 = vst.msk [vmem:[#allocation3 + $0x18] sm:$0xff] %vm330, %v754
    %v757 = vld [vmem:[#allocation2 + $0x20] sm:$0xff]
    %v758 = vsel %vm330, %v754, 0
    %760 = vmatprep.subr.mxu0 0.0
    %761 = vmatpush1.msra.mxu0 0.0
    %762 = vmatprep.subr.mxu0 0.0
    %763 = vmatpush1.msra.mxu0 0.0
    %764 = vmatprep.subr.mxu0 0.0
    %765 = vmatpush1.msra.mxu0 0.0
    %766 = vmatprep.subr.mxu0 0.0
    %767 = vmatpush1.msra.mxu0 0.0
    %768 = vmatprep.subr.mxu0 0.0
    %769 = vmatpush1.msra.mxu0 0.0
    %770 = vmatprep.subr.mxu0 0.0
    %771 = vmatpush1.msra.mxu0 0.0
    %772 = vmatprep.subr.mxu0 0.0
    %773 = vmatpush1.msra.mxu0 0.0
    %774 = vmatprep.subr.mxu0 0.0
    %775 = vmatpush1.msra.mxu0 0.0
    %776 = vmatprep.subr.mxu0 0.0
    %777 = vmatpush1.msra.mxu0 0.0
    %778 = vmatprep.subr.mxu0 0.0
    %779 = vmatpush1.msra.mxu0 0.0
    %780 = vmatprep.subr.mxu0 0.0
    %781 = vmatpush1.msra.mxu0 0.0
    %782 = vmatprep.subr.mxu0 0.0
    %783 = vmatpush1.msra.mxu0 0.0
    %784 = vmatprep.subr.mxu0 0.0
    %785 = vmatpush1.msra.mxu0 %v327
    %786 = vmatprep.subr.mxu0 0.0
    %787 = vmatpush1.msra.mxu0 %v326
    %788 = vmatprep.subr.mxu0 0.0
    %789 = vmatpush1.msra.mxu0 %v325
    %790 = vmatprep.subr.mxu0 0.0
    %791 = vmatpush1.msra.mxu0 %v324
    %792 = vmatprep.subr.mxu0 0.0
    %793 = vmatpush2.msra.mxu0 0.0
    %794 = vmatprep.subr.mxu0 0.0
    %795 = vmatpush2.msra.mxu0 0.0
    %796 = vmatprep.subr.mxu0 0.0
    %797 = vmatpush2.msra.mxu0 0.0
    %798 = vmatprep.subr.mxu0 0.0
    %799 = vmatpush2.msra.mxu0 0.0
    %800 = vmatprep.subr.mxu0 0.0
    %801 = vmatpush2.msra.mxu0 0.0
    %802 = vmatprep.subr.mxu0 0.0
    %803 = vmatpush2.msra.mxu0 0.0
    %804 = vmatprep.subr.mxu0 0.0
    %805 = vmatpush2.msra.mxu0 0.0
    %806 = vmatprep.subr.mxu0 0.0
    %807 = vmatpush2.msra.mxu0 0.0
    %808 = vmatprep.subr.mxu0 0.0
    %809 = vmatpush2.msra.mxu0 0.0
    %810 = vmatprep.subr.mxu0 0.0
    %811 = vmatpush2.msra.mxu0 0.0
    %812 = vmatprep.subr.mxu0 0.0
    %813 = vmatpush2.msra.mxu0 0.0
    %814 = vmatprep.subr.mxu0 0.0
    %815 = vmatpush2.msra.mxu0 0.0
    %816 = vmatprep.subr.mxu0 0.0
    %817 = vmatpush2.msra.mxu0 0.0
    %818 = vmatprep.subr.mxu0 0.0
    %819 = vmatpush2.msra.mxu0 0.0
    %820 = vmatprep.subr.mxu0 0.0
    %821 = vmatpush2.msra.mxu0 0.0
    %822 = vmatprep.subr.mxu0 0.0
    %823 = vmatpush2.msra.mxu0 0.0
    %824 = vmatprep.mubr.f32.mxu0 0.0
    %825 = vmatmul.mubr.f32.gmra.mxu0 %v758
    %v826 = vpop.f32.mrf.mxu0
    %v827 = vadd.f32 0.0, %v826
    %v828 = vpop.f32.mrf.mxu0
    %829 = vdwg.mxu0
    %v830 = vadd.f32 %v757, %v827
    %v831 = vadd.f32 %v830, %v409
    %v832 = vxor.u32 %v831, 2147483648
    %v833 = vmul.f32 %v832, 1.442695
    %v834 = vpow.pop %v833
    %v835 = vadd.f32 %v834, 1.0
    %v836 = vrcp.pop %v835
    %v837 = vmul.f32 1.0, %v836
    %v838 = vmul.f32 %v837, 2.0
    %v839 = vsub.f32 %v838, 1.0
    %v840 = vmul.f32 %v837, %v745
    %842 = vrot.lane.b32.xlu0 %v839, 64
    %v843 = vpop.permute.xlu0 %842
    %v845 = vmul.f32 %v837, %v843
    %847 = vrot.lane.b32.xlu0 %v845, 32
    %v848 = vpop.permute.xlu0 %847
    %v850 = vadd.f32 %v840, %v848
    %v851 = vtanh.pop %v850
    %853 = vrot.lane.b32.xlu0 %v851, 64
    %v854 = vpop.permute.xlu0 %853
    %v856 = vmul.f32 %v837, %v854
    %858 = vrot.lane.b32.xlu0 %v856, 32
    %v859 = vpop.permute.xlu0 %858
    %861 = vst.msk [vmem:[#allocation3 + $0x20] sm:$0xff] %vm330, %v859
    %v862 = vld [vmem:[#allocation2 + $0x28] sm:$0xff]
    %v863 = vsel %vm330, %v859, 0
    %865 = vmatprep.subr.mxu0 0.0
    %866 = vmatpush1.msra.mxu0 0.0
    %867 = vmatprep.subr.mxu0 0.0
    %868 = vmatpush1.msra.mxu0 0.0
    %869 = vmatprep.subr.mxu0 0.0
    %870 = vmatpush1.msra.mxu0 0.0
    %871 = vmatprep.subr.mxu0 0.0
    %872 = vmatpush1.msra.mxu0 0.0
    %873 = vmatprep.subr.mxu0 0.0
    %874 = vmatpush1.msra.mxu0 0.0
    %875 = vmatprep.subr.mxu0 0.0
    %876 = vmatpush1.msra.mxu0 0.0
    %877 = vmatprep.subr.mxu0 0.0
    %878 = vmatpush1.msra.mxu0 0.0
    %879 = vmatprep.subr.mxu0 0.0
    %880 = vmatpush1.msra.mxu0 0.0
    %881 = vmatprep.subr.mxu0 0.0
    %882 = vmatpush1.msra.mxu0 0.0
    %883 = vmatprep.subr.mxu0 0.0
    %884 = vmatpush1.msra.mxu0 0.0
    %885 = vmatprep.subr.mxu0 0.0
    %886 = vmatpush1.msra.mxu0 0.0
    %887 = vmatprep.subr.mxu0 0.0
    %888 = vmatpush1.msra.mxu0 0.0
    %889 = vmatprep.subr.mxu0 0.0
    %890 = vmatpush1.msra.mxu0 %v327
    %891 = vmatprep.subr.mxu0 0.0
    %892 = vmatpush1.msra.mxu0 %v326
    %893 = vmatprep.subr.mxu0 0.0
    %894 = vmatpush1.msra.mxu0 %v325
    %895 = vmatprep.subr.mxu0 0.0
    %896 = vmatpush1.msra.mxu0 %v324
    %897 = vmatprep.subr.mxu0 0.0
    %898 = vmatpush2.msra.mxu0 0.0
    %899 = vmatprep.subr.mxu0 0.0
    %900 = vmatpush2.msra.mxu0 0.0
    %901 = vmatprep.subr.mxu0 0.0
    %902 = vmatpush2.msra.mxu0 0.0
    %903 = vmatprep.subr.mxu0 0.0
    %904 = vmatpush2.msra.mxu0 0.0
    %905 = vmatprep.subr.mxu0 0.0
    %906 = vmatpush2.msra.mxu0 0.0
    %907 = vmatprep.subr.mxu0 0.0
    %908 = vmatpush2.msra.mxu0 0.0
    %909 = vmatprep.subr.mxu0 0.0
    %910 = vmatpush2.msra.mxu0 0.0
    %911 = vmatprep.subr.mxu0 0.0
    %912 = vmatpush2.msra.mxu0 0.0
    %913 = vmatprep.subr.mxu0 0.0
    %914 = vmatpush2.msra.mxu0 0.0
    %915 = vmatprep.subr.mxu0 0.0
    %916 = vmatpush2.msra.mxu0 0.0
    %917 = vmatprep.subr.mxu0 0.0
    %918 = vmatpush2.msra.mxu0 0.0
    %919 = vmatprep.subr.mxu0 0.0
    %920 = vmatpush2.msra.mxu0 0.0
    %921 = vmatprep.subr.mxu0 0.0
    %922 = vmatpush2.msra.mxu0 0.0
    %923 = vmatprep.subr.mxu0 0.0
    %924 = vmatpush2.msra.mxu0 0.0
    %925 = vmatprep.subr.mxu0 0.0
    %926 = vmatpush2.msra.mxu0 0.0
    %927 = vmatprep.subr.mxu0 0.0
    %928 = vmatpush2.msra.mxu0 0.0
    %929 = vmatprep.mubr.f32.mxu0 0.0
    %930 = vmatmul.mubr.f32.gmra.mxu0 %v863
    %v931 = vpop.f32.mrf.mxu0
    %v932 = vadd.f32 0.0, %v931
    %v933 = vpop.f32.mrf.mxu0
    %934 = vdwg.mxu0
    %v935 = vadd.f32 %v862, %v932
    %v936 = vadd.f32 %v935, %v409
    %v937 = vxor.u32 %v936, 2147483648
    %v938 = vmul.f32 %v937, 1.442695
    %v939 = vpow.pop %v938
    %v940 = vadd.f32 %v939, 1.0
    %v941 = vrcp.pop %v940
    %v942 = vmul.f32 1.0, %v941
    %v943 = vmul.f32 %v942, 2.0
    %v944 = vsub.f32 %v943, 1.0
    %v945 = vmul.f32 %v942, %v850
    %947 = vrot.lane.b32.xlu0 %v944, 64
    %v948 = vpop.permute.xlu0 %947
    %v950 = vmul.f32 %v942, %v948
    %952 = vrot.lane.b32.xlu0 %v950, 32
    %v953 = vpop.permute.xlu0 %952
    %v955 = vadd.f32 %v945, %v953
    %v956 = vtanh.pop %v955
    %958 = vrot.lane.b32.xlu0 %v956, 64
    %v959 = vpop.permute.xlu0 %958
    %v961 = vmul.f32 %v942, %v959
    %963 = vrot.lane.b32.xlu0 %v961, 32
    %v964 = vpop.permute.xlu0 %963
    %966 = vst.msk [vmem:[#allocation3 + $0x28] sm:$0xff] %vm330, %v964
    %v967 = vld [vmem:[#allocation2 + $0x30] sm:$0xff]
    %v968 = vsel %vm330, %v964, 0
    %970 = vmatprep.subr.mxu0 0.0
    %971 = vmatpush1.msra.mxu0 0.0
    %972 = vmatprep.subr.mxu0 0.0
    %973 = vmatpush1.msra.mxu0 0.0
    %974 = vmatprep.subr.mxu0 0.0
    %975 = vmatpush1.msra.mxu0 0.0
    %976 = vmatprep.subr.mxu0 0.0
    %977 = vmatpush1.msra.mxu0 0.0
    %978 = vmatprep.subr.mxu0 0.0
    %979 = vmatpush1.msra.mxu0 0.0
    %980 = vmatprep.subr.mxu0 0.0
    %981 = vmatpush1.msra.mxu0 0.0
    %982 = vmatprep.subr.mxu0 0.0
    %983 = vmatpush1.msra.mxu0 0.0
    %984 = vmatprep.subr.mxu0 0.0
    %985 = vmatpush1.msra.mxu0 0.0
    %986 = vmatprep.subr.mxu0 0.0
    %987 = vmatpush1.msra.mxu0 0.0
    %988 = vmatprep.subr.mxu0 0.0
    %989 = vmatpush1.msra.mxu0 0.0
    %990 = vmatprep.subr.mxu0 0.0
    %991 = vmatpush1.msra.mxu0 0.0
    %992 = vmatprep.subr.mxu0 0.0
    %993 = vmatpush1.msra.mxu0 0.0
    %994 = vmatprep.subr.mxu0 0.0
    %995 = vmatpush1.msra.mxu0 %v327
    %996 = vmatprep.subr.mxu0 0.0
    %997 = vmatpush1.msra.mxu0 %v326
    %998 = vmatprep.subr.mxu0 0.0
    %999 = vmatpush1.msra.mxu0 %v325
    %1000 = vmatprep.subr.mxu0 0.0
    %1001 = vmatpush1.msra.mxu0 %v324
    %1002 = vmatprep.subr.mxu0 0.0
    %1003 = vmatpush2.msra.mxu0 0.0
    %1004 = vmatprep.subr.mxu0 0.0
    %1005 = vmatpush2.msra.mxu0 0.0
    %1006 = vmatprep.subr.mxu0 0.0
    %1007 = vmatpush2.msra.mxu0 0.0
    %1008 = vmatprep.subr.mxu0 0.0
    %1009 = vmatpush2.msra.mxu0 0.0
    %1010 = vmatprep.subr.mxu0 0.0
    %1011 = vmatpush2.msra.mxu0 0.0
    %1012 = vmatprep.subr.mxu0 0.0
    %1013 = vmatpush2.msra.mxu0 0.0
    %1014 = vmatprep.subr.mxu0 0.0
    %1015 = vmatpush2.msra.mxu0 0.0
    %1016 = vmatprep.subr.mxu0 0.0
    %1017 = vmatpush2.msra.mxu0 0.0
    %1018 = vmatprep.subr.mxu0 0.0
    %1019 = vmatpush2.msra.mxu0 0.0
    %1020 = vmatprep.subr.mxu0 0.0
    %1021 = vmatpush2.msra.mxu0 0.0
    %1022 = vmatprep.subr.mxu0 0.0
    %1023 = vmatpush2.msra.mxu0 0.0
    %1024 = vmatprep.subr.mxu0 0.0
    %1025 = vmatpush2.msra.mxu0 0.0
    %1026 = vmatprep.subr.mxu0 0.0
    %1027 = vmatpush2.msra.mxu0 0.0
    %1028 = vmatprep.subr.mxu0 0.0
    %1029 = vmatpush2.msra.mxu0 0.0
    %1030 = vmatprep.subr.mxu0 0.0
    %1031 = vmatpush2.msra.mxu0 0.0
    %1032 = vmatprep.subr.mxu0 0.0
    %1033 = vmatpush2.msra.mxu0 0.0
    %1034 = vmatprep.mubr.f32.mxu0 0.0
    %1035 = vmatmul.mubr.f32.gmra.mxu0 %v968
    %v1036 = vpop.f32.mrf.mxu0
    %v1037 = vadd.f32 0.0, %v1036
    %v1038 = vpop.f32.mrf.mxu0
    %1039 = vdwg.mxu0
    %v1040 = vadd.f32 %v967, %v1037
    %v1041 = vadd.f32 %v1040, %v409
    %v1042 = vxor.u32 %v1041, 2147483648
    %v1043 = vmul.f32 %v1042, 1.442695
    %v1044 = vpow.pop %v1043
    %v1045 = vadd.f32 %v1044, 1.0
    %v1046 = vrcp.pop %v1045
    %v1047 = vmul.f32 1.0, %v1046
    %v1048 = vmul.f32 %v1047, 2.0
    %v1049 = vsub.f32 %v1048, 1.0
    %v1050 = vmul.f32 %v1047, %v955
    %1052 = vrot.lane.b32.xlu0 %v1049, 64
    %v1053 = vpop.permute.xlu0 %1052
    %v1055 = vmul.f32 %v1047, %v1053
    %1057 = vrot.lane.b32.xlu0 %v1055, 32
    %v1058 = vpop.permute.xlu0 %1057
    %v1060 = vadd.f32 %v1050, %v1058
    %v1061 = vtanh.pop %v1060
    %1063 = vrot.lane.b32.xlu0 %v1061, 64
    %v1064 = vpop.permute.xlu0 %1063
    %v1066 = vmul.f32 %v1047, %v1064
    %1068 = vrot.lane.b32.xlu0 %v1066, 32
    %v1069 = vpop.permute.xlu0 %1068
    %1071 = vst.msk [vmem:[#allocation3 + $0x30] sm:$0xff] %vm330, %v1069
    %v1072 = vld [vmem:[#allocation2 + $0x38] sm:$0xff]
    %v1073 = vsel %vm330, %v1069, 0
    %1075 = vmatprep.subr.mxu0 0.0
    %1076 = vmatpush1.msra.mxu0 0.0
    %1077 = vmatprep.subr.mxu0 0.0
    %1078 = vmatpush1.msra.mxu0 0.0
    %1079 = vmatprep.subr.mxu0 0.0
    %1080 = vmatpush1.msra.mxu0 0.0
    %1081 = vmatprep.subr.mxu0 0.0
    %1082 = vmatpush1.msra.mxu0 0.0
    %1083 = vmatprep.subr.mxu0 0.0
    %1084 = vmatpush1.msra.mxu0 0.0
    %1085 = vmatprep.subr.mxu0 0.0
    %1086 = vmatpush1.msra.mxu0 0.0
    %1087 = vmatprep.subr.mxu0 0.0
    %1088 = vmatpush1.msra.mxu0 0.0
    %1089 = vmatprep.subr.mxu0 0.0
    %1090 = vmatpush1.msra.mxu0 0.0
    %1091 = vmatprep.subr.mxu0 0.0
    %1092 = vmatpush1.msra.mxu0 0.0
    %1093 = vmatprep.subr.mxu0 0.0
    %1094 = vmatpush1.msra.mxu0 0.0
    %1095 = vmatprep.subr.mxu0 0.0
    %1096 = vmatpush1.msra.mxu0 0.0
    %1097 = vmatprep.subr.mxu0 0.0
    %1098 = vmatpush1.msra.mxu0 0.0
    %1099 = vmatprep.subr.mxu0 0.0
    %1100 = vmatpush1.msra.mxu0 %v327
    %1101 = vmatprep.subr.mxu0 0.0
    %1102 = vmatpush1.msra.mxu0 %v326
    %1103 = vmatprep.subr.mxu0 0.0
    %1104 = vmatpush1.msra.mxu0 %v325
    %1105 = vmatprep.subr.mxu0 0.0
    %1106 = vmatpush1.msra.mxu0 %v324
    %1107 = vmatprep.subr.mxu0 0.0
    %1108 = vmatpush2.msra.mxu0 0.0
    %1109 = vmatprep.subr.mxu0 0.0
    %1110 = vmatpush2.msra.mxu0 0.0
    %1111 = vmatprep.subr.mxu0 0.0
    %1112 = vmatpush2.msra.mxu0 0.0
    %1113 = vmatprep.subr.mxu0 0.0
    %1114 = vmatpush2.msra.mxu0 0.0
    %1115 = vmatprep.subr.mxu0 0.0
    %1116 = vmatpush2.msra.mxu0 0.0
    %1117 = vmatprep.subr.mxu0 0.0
    %1118 = vmatpush2.msra.mxu0 0.0
    %1119 = vmatprep.subr.mxu0 0.0
    %1120 = vmatpush2.msra.mxu0 0.0
    %1121 = vmatprep.subr.mxu0 0.0
    %1122 = vmatpush2.msra.mxu0 0.0
    %1123 = vmatprep.subr.mxu0 0.0
    %1124 = vmatpush2.msra.mxu0 0.0
    %1125 = vmatprep.subr.mxu0 0.0
    %1126 = vmatpush2.msra.mxu0 0.0
    %1127 = vmatprep.subr.mxu0 0.0
    %1128 = vmatpush2.msra.mxu0 0.0
    %1129 = vmatprep.subr.mxu0 0.0
    %1130 = vmatpush2.msra.mxu0 0.0
    %1131 = vmatprep.subr.mxu0 0.0
    %1132 = vmatpush2.msra.mxu0 0.0
    %1133 = vmatprep.subr.mxu0 0.0
    %1134 = vmatpush2.msra.mxu0 0.0
    %1135 = vmatprep.subr.mxu0 0.0
    %1136 = vmatpush2.msra.mxu0 0.0
    %1137 = vmatprep.subr.mxu0 0.0
    %1138 = vmatpush2.msra.mxu0 0.0
    %1139 = vmatprep.mubr.f32.mxu0 0.0
    %1140 = vmatmul.mubr.f32.gmra.mxu0 %v1073
    %v1141 = vpop.f32.mrf.mxu0
    %v1142 = vadd.f32 0.0, %v1141
    %v1143 = vpop.f32.mrf.mxu0
    %1144 = vdwg.mxu0
    %v1145 = vadd.f32 %v1072, %v1142
    %v1146 = vadd.f32 %v1145, %v409
    %v1147 = vxor.u32 %v1146, 2147483648
    %v1148 = vmul.f32 %v1147, 1.442695
    %v1149 = vpow.pop %v1148
    %v1150 = vadd.f32 %v1149, 1.0
    %v1151 = vrcp.pop %v1150
    %v1152 = vmul.f32 1.0, %v1151
    %v1153 = vmul.f32 %v1152, 2.0
    %v1154 = vsub.f32 %v1153, 1.0
    %v1155 = vmul.f32 %v1152, %v1060
    %1157 = vrot.lane.b32.xlu0 %v1154, 64
    %v1158 = vpop.permute.xlu0 %1157
    %v1160 = vmul.f32 %v1152, %v1158
    %1162 = vrot.lane.b32.xlu0 %v1160, 32
    %v1163 = vpop.permute.xlu0 %1162
    %v1165 = vadd.f32 %v1155, %v1163
    %v1166 = vtanh.pop %v1165
    %1168 = vrot.lane.b32.xlu0 %v1166, 64
    %v1169 = vpop.permute.xlu0 %1168
    %v1171 = vmul.f32 %v1152, %v1169
    %1173 = vrot.lane.b32.xlu0 %v1171, 32
    %v1174 = vpop.permute.xlu0 %1173
    %1176 = vst.msk [vmem:[#allocation3 + $0x38] sm:$0xff] %vm330, %v1174
    %1177 = vst.msk [vmem:[#allocation13] sm:$0xff] %vm330, %v1174
    %1179 = vrot.lane.b32.xlu0 %v1165, 96
    %v1180 = vpop.permute.xlu0 %1179
    %1182 = vst.msk [vmem:[#allocation15] sm:$0xff] %vm330, %v1180
    %v1183 = vld [vmem:[#allocation3] sm:$0xff]
    %v1184 = vld [vmem:[#allocation3 + $0x8] sm:$0xff]
    %v1185 = vld [vmem:[#allocation3 + $0x10] sm:$0xff]
    %v1186 = vld [vmem:[#allocation3 + $0x18] sm:$0xff]
    %v1187 = vld [vmem:[#allocation3 + $0x20] sm:$0xff]
    %v1188 = vld [vmem:[#allocation3 + $0x28] sm:$0xff]
    %v1189 = vld [vmem:[#allocation3 + $0x30] sm:$0xff]
    %v1190 = vld [vmem:[#allocation3 + $0x38] sm:$0xff]
    %v1191 = vld [vmem:[#allocation9] sm:$0xff]
    %v1192 = vld [vmem:[#allocation9 + $0x8] sm:$0xff]
    %v1193 = vld [vmem:[#allocation9 + $0x10] sm:$0xff]
    %v1194 = vld [vmem:[#allocation9 + $0x18] sm:$0xff]
    %v1196 = vsel %vm330, %v1183, 0
    %v1199 = vsel %vm330, %v1184, 0
    %v1202 = vsel %vm330, %v1185, 0
    %v1205 = vsel %vm330, %v1186, 0
    %v1208 = vsel %vm330, %v1187, 0
    %v1211 = vsel %vm330, %v1188, 0
    %v1214 = vsel %vm330, %v1189, 0
    %v1217 = vsel %vm330, %v1190, 0
    %1219 = vmatprep.subr.mxu0 0.0
    %1220 = vmatpush1.msra.mxu0 0.0
    %1221 = vmatprep.subr.mxu0 0.0
    %1222 = vmatpush1.msra.mxu0 0.0
    %1223 = vmatprep.subr.mxu0 0.0
    %1224 = vmatpush1.msra.mxu0 0.0
    %1225 = vmatprep.subr.mxu0 0.0
    %1226 = vmatpush1.msra.mxu0 0.0
    %1227 = vmatprep.subr.mxu0 0.0
    %1228 = vmatpush1.msra.mxu0 0.0
    %1229 = vmatprep.subr.mxu0 0.0
    %1230 = vmatpush1.msra.mxu0 0.0
    %1231 = vmatprep.subr.mxu0 0.0
    %1232 = vmatpush1.msra.mxu0 0.0
    %1233 = vmatprep.subr.mxu0 0.0
    %1234 = vmatpush1.msra.mxu0 0.0
    %1235 = vmatprep.subr.mxu0 0.0
    %1236 = vmatpush1.msra.mxu0 0.0
    %1237 = vmatprep.subr.mxu0 0.0
    %1238 = vmatpush1.msra.mxu0 0.0
    %1239 = vmatprep.subr.mxu0 0.0
    %1240 = vmatpush1.msra.mxu0 0.0
    %1241 = vmatprep.subr.mxu0 0.0
    %1242 = vmatpush1.msra.mxu0 0.0
    %1243 = vmatprep.subr.mxu0 0.0
    %1244 = vmatpush1.msra.mxu0 %v1194
    %1245 = vmatprep.subr.mxu0 0.0
    %1246 = vmatpush1.msra.mxu0 %v1193
    %1247 = vmatprep.subr.mxu0 0.0
    %1248 = vmatpush1.msra.mxu0 %v1192
    %1249 = vmatprep.subr.mxu0 0.0
    %1250 = vmatpush1.msra.mxu0 %v1191
    %1251 = vmatprep.subr.mxu0 0.0
    %1252 = vmatpush2.msra.mxu0 0.0
    %1253 = vmatprep.subr.mxu0 0.0
    %1254 = vmatpush2.msra.mxu0 0.0
    %1255 = vmatprep.subr.mxu0 0.0
    %1256 = vmatpush2.msra.mxu0 0.0
    %1257 = vmatprep.subr.mxu0 0.0
    %1258 = vmatpush2.msra.mxu0 0.0
    %1259 = vmatprep.subr.mxu0 0.0
    %1260 = vmatpush2.msra.mxu0 0.0
    %1261 = vmatprep.subr.mxu0 0.0
    %1262 = vmatpush2.msra.mxu0 0.0
    %1263 = vmatprep.subr.mxu0 0.0
    %1264 = vmatpush2.msra.mxu0 0.0
    %1265 = vmatprep.subr.mxu0 0.0
    %1266 = vmatpush2.msra.mxu0 0.0
    %1267 = vmatprep.subr.mxu0 0.0
    %1268 = vmatpush2.msra.mxu0 0.0
    %1269 = vmatprep.subr.mxu0 0.0
    %1270 = vmatpush2.msra.mxu0 0.0
    %1271 = vmatprep.subr.mxu0 0.0
    %1272 = vmatpush2.msra.mxu0 0.0
    %1273 = vmatprep.subr.mxu0 0.0
    %1274 = vmatpush2.msra.mxu0 0.0
    %1275 = vmatprep.subr.mxu0 0.0
    %1276 = vmatpush2.msra.mxu0 0.0
    %1277 = vmatprep.subr.mxu0 0.0
    %1278 = vmatpush2.msra.mxu0 0.0
    %1279 = vmatprep.subr.mxu0 0.0
    %1280 = vmatpush2.msra.mxu0 0.0
    %1281 = vmatprep.subr.mxu0 0.0
    %1282 = vmatpush2.msra.mxu0 0.0
    %1283 = vmatprep.mubr.f32.mxu0 0.0
    %1284 = vmatmul.mubr.f32.gmra.mxu0 %v1196
    %v1285 = vpop.f32.mrf.mxu0
    %v1286 = vadd.f32 0.0, %v1285
    %v1287 = vpop.f32.mrf.mxu0
    %1288 = vmatprep.mubr.f32.mxu0 0.0
    %1289 = vmatmul.mubr.f32.gmra.mxu0 %v1199
    %v1290 = vpop.f32.mrf.mxu0
    %v1291 = vadd.f32 0.0, %v1290
    %v1292 = vpop.f32.mrf.mxu0
    %1293 = vmatprep.mubr.f32.mxu0 0.0
    %1294 = vmatmul.mubr.f32.gmra.mxu0 %v1202
    %v1295 = vpop.f32.mrf.mxu0
    %v1296 = vadd.f32 0.0, %v1295
    %v1297 = vpop.f32.mrf.mxu0
    %1298 = vmatprep.mubr.f32.mxu0 0.0
    %1299 = vmatmul.mubr.f32.gmra.mxu0 %v1205
    %v1300 = vpop.f32.mrf.mxu0
    %v1301 = vadd.f32 0.0, %v1300
    %v1302 = vpop.f32.mrf.mxu0
    %1303 = vmatprep.mubr.f32.mxu0 0.0
    %1304 = vmatmul.mubr.f32.gmra.mxu0 %v1208
    %v1305 = vpop.f32.mrf.mxu0
    %v1306 = vadd.f32 0.0, %v1305
    %v1307 = vpop.f32.mrf.mxu0
    %1308 = vmatprep.mubr.f32.mxu0 0.0
    %1309 = vmatmul.mubr.f32.gmra.mxu0 %v1211
    %v1310 = vpop.f32.mrf.mxu0
    %v1311 = vadd.f32 0.0, %v1310
    %v1312 = vpop.f32.mrf.mxu0
    %1313 = vmatprep.mubr.f32.mxu0 0.0
    %1314 = vmatmul.mubr.f32.gmra.mxu0 %v1214
    %v1315 = vpop.f32.mrf.mxu0
    %v1316 = vadd.f32 0.0, %v1315
    %v1317 = vpop.f32.mrf.mxu0
    %1318 = vmatprep.mubr.f32.mxu0 0.0
    %1319 = vmatmul.mubr.f32.gmra.mxu0 %v1217
    %v1320 = vpop.f32.mrf.mxu0
    %v1321 = vadd.f32 0.0, %v1320
    %v1322 = vpop.f32.mrf.mxu0
    %1323 = vdwg.mxu0
    %s1324 = scalar_lea.vmem [#allocation11], 32
    %v1325 = vld [vmem:[%s1324] sm:$0xff]
    %v1326 = vld [vmem:[%s1324 + $0x8] sm:$0xff]
    %v1327 = vld [vmem:[%s1324 + $0x10] sm:$0xff]
    %v1328 = vld [vmem:[%s1324 + $0x18] sm:$0xff]
    %s1329 = scalar_lea.vmem %s4, 1
    %v1330 = vld [vmem:[%s1329] sm:$0x1]
    %1331 = vmatprep.subr.mxu0 0.0
    %1332 = vmatpush1.msra.mxu0 0.0
    %1333 = vmatprep.subr.mxu0 0.0
    %1334 = vmatpush1.msra.mxu0 0.0
    %1335 = vmatprep.subr.mxu0 0.0
    %1336 = vmatpush1.msra.mxu0 0.0
    %1337 = vmatprep.subr.mxu0 0.0
    %1338 = vmatpush1.msra.mxu0 0.0
    %1339 = vmatprep.subr.mxu0 0.0
    %1340 = vmatpush1.msra.mxu0 0.0
    %1341 = vmatprep.subr.mxu0 0.0
    %1342 = vmatpush1.msra.mxu0 0.0
    %1343 = vmatprep.subr.mxu0 0.0
    %1344 = vmatpush1.msra.mxu0 0.0
    %1345 = vmatprep.subr.mxu0 0.0
    %1346 = vmatpush1.msra.mxu0 0.0
    %1347 = vmatprep.subr.mxu0 0.0
    %1348 = vmatpush1.msra.mxu0 0.0
    %1349 = vmatprep.subr.mxu0 0.0
    %1350 = vmatpush1.msra.mxu0 0.0
    %1351 = vmatprep.subr.mxu0 0.0
    %1352 = vmatpush1.msra.mxu0 0.0
    %1353 = vmatprep.subr.mxu0 0.0
    %1354 = vmatpush1.msra.mxu0 0.0
    %1355 = vmatprep.subr.mxu0 0.0
    %1356 = vmatpush1.msra.mxu0 %v1328
    %1357 = vmatprep.subr.mxu0 0.0
    %1358 = vmatpush1.msra.mxu0 %v1327
    %1359 = vmatprep.subr.mxu0 0.0
    %1360 = vmatpush1.msra.mxu0 %v1326
    %1361 = vmatprep.subr.mxu0 0.0
    %1362 = vmatpush1.msra.mxu0 %v1325
    %1363 = vmatprep.subr.mxu0 0.0
    %1364 = vmatpush2.msra.mxu0 0.0
    %1365 = vmatprep.subr.mxu0 0.0
    %1366 = vmatpush2.msra.mxu0 0.0
    %1367 = vmatprep.subr.mxu0 0.0
    %1368 = vmatpush2.msra.mxu0 0.0
    %1369 = vmatprep.subr.mxu0 0.0
    %1370 = vmatpush2.msra.mxu0 0.0
    %1371 = vmatprep.subr.mxu0 0.0
    %1372 = vmatpush2.msra.mxu0 0.0
    %1373 = vmatprep.subr.mxu0 0.0
    %1374 = vmatpush2.msra.mxu0 0.0
    %1375 = vmatprep.subr.mxu0 0.0
    %1376 = vmatpush2.msra.mxu0 0.0
    %1377 = vmatprep.subr.mxu0 0.0
    %1378 = vmatpush2.msra.mxu0 0.0
    %1379 = vmatprep.subr.mxu0 0.0
    %1380 = vmatpush2.msra.mxu0 0.0
    %1381 = vmatprep.subr.mxu0 0.0
    %1382 = vmatpush2.msra.mxu0 0.0
    %1383 = vmatprep.subr.mxu0 0.0
    %1384 = vmatpush2.msra.mxu0 0.0
    %1385 = vmatprep.subr.mxu0 0.0
    %1386 = vmatpush2.msra.mxu0 0.0
    %1387 = vmatprep.subr.mxu0 0.0
    %1388 = vmatpush2.msra.mxu0 0.0
    %1389 = vmatprep.subr.mxu0 0.0
    %1390 = vmatpush2.msra.mxu0 0.0
    %1391 = vmatprep.subr.mxu0 0.0
    %1392 = vmatpush2.msra.mxu0 0.0
    %1393 = vmatprep.subr.mxu0 0.0
    %1394 = vmatpush2.msra.mxu0 0.0
    %1395 = vmatprep.mubr.f32.mxu0 0.0
    %1396 = vmatmul.mubr.f32.gmra.mxu0 %v332
    %v1397 = vpop.f32.mrf.mxu0
    %v1398 = vadd.f32 0.0, %v1397
    %v1399 = vpop.f32.mrf.mxu0
    %1400 = vdwg.mxu0
    %v1401 = vadd.f32 %v1286, %v1398
    %v1403 = vlaneseq
    %v1404 = vshrl.u32 %v1403, 7
    %v1405 = vsub.s32 0, %v1404
    %v1406 = vrot.slane %v1330, %v1405
    %v1408 = vadd.f32 %v1401, %v1406
    %v1409 = vxor.u32 %v1408, 2147483648
    %v1410 = vmul.f32 %v1409, 1.442695
    %v1411 = vpow.pop %v1410
    %v1412 = vadd.f32 %v1411, 1.0
    %v1413 = vrcp.pop %v1412
    %v1414 = vmul.f32 1.0, %v1413
    %v1415 = vmul.f32 %v1414, 2.0
    %v1416 = vsub.f32 %v1415, 1.0
    %v1417 = vmul.f32 %v1414, 0.0
    %1419 = vrot.lane.b32.xlu0 %v1416, 64
    %v1420 = vpop.permute.xlu0 %1419
    %v1422 = vmul.f32 %v1414, %v1420
    %1424 = vrot.lane.b32.xlu0 %v1422, 32
    %v1425 = vpop.permute.xlu0 %1424
    %v1427 = vadd.f32 %v1417, %v1425
    %v1428 = vtanh.pop %v1427
    %1430 = vrot.lane.b32.xlu0 %v1428, 64
    %v1431 = vpop.permute.xlu0 %1430
    %v1433 = vmul.f32 %v1414, %v1431
    %1435 = vrot.lane.b32.xlu0 %v1433, 32
    %v1436 = vpop.permute.xlu0 %1435
    %1438 = vst.msk [vmem:[#allocation12] sm:$0xff] %vm330, %v1436
    %v1439 = vsel %vm330, %v1436, 0
    %1441 = vmatprep.subr.mxu0 0.0
    %1442 = vmatpush1.msra.mxu0 0.0
    %1443 = vmatprep.subr.mxu0 0.0
    %1444 = vmatpush1.msra.mxu0 0.0
    %1445 = vmatprep.subr.mxu0 0.0
    %1446 = vmatpush1.msra.mxu0 0.0
    %1447 = vmatprep.subr.mxu0 0.0
    %1448 = vmatpush1.msra.mxu0 0.0
    %1449 = vmatprep.subr.mxu0 0.0
    %1450 = vmatpush1.msra.mxu0 0.0
    %1451 = vmatprep.subr.mxu0 0.0
    %1452 = vmatpush1.msra.mxu0 0.0
    %1453 = vmatprep.subr.mxu0 0.0
    %1454 = vmatpush1.msra.mxu0 0.0
    %1455 = vmatprep.subr.mxu0 0.0
    %1456 = vmatpush1.msra.mxu0 0.0
    %1457 = vmatprep.subr.mxu0 0.0
    %1458 = vmatpush1.msra.mxu0 0.0
    %1459 = vmatprep.subr.mxu0 0.0
    %1460 = vmatpush1.msra.mxu0 0.0
    %1461 = vmatprep.subr.mxu0 0.0
    %1462 = vmatpush1.msra.mxu0 0.0
    %1463 = vmatprep.subr.mxu0 0.0
    %1464 = vmatpush1.msra.mxu0 0.0
    %1465 = vmatprep.subr.mxu0 0.0
    %1466 = vmatpush1.msra.mxu0 %v1328
    %1467 = vmatprep.subr.mxu0 0.0
    %1468 = vmatpush1.msra.mxu0 %v1327
    %1469 = vmatprep.subr.mxu0 0.0
    %1470 = vmatpush1.msra.mxu0 %v1326
    %1471 = vmatprep.subr.mxu0 0.0
    %1472 = vmatpush1.msra.mxu0 %v1325
    %1473 = vmatprep.subr.mxu0 0.0
    %1474 = vmatpush2.msra.mxu0 0.0
    %1475 = vmatprep.subr.mxu0 0.0
    %1476 = vmatpush2.msra.mxu0 0.0
    %1477 = vmatprep.subr.mxu0 0.0
    %1478 = vmatpush2.msra.mxu0 0.0
    %1479 = vmatprep.subr.mxu0 0.0
    %1480 = vmatpush2.msra.mxu0 0.0
    %1481 = vmatprep.subr.mxu0 0.0
    %1482 = vmatpush2.msra.mxu0 0.0
    %1483 = vmatprep.subr.mxu0 0.0
    %1484 = vmatpush2.msra.mxu0 0.0
    %1485 = vmatprep.subr.mxu0 0.0
    %1486 = vmatpush2.msra.mxu0 0.0
    %1487 = vmatprep.subr.mxu0 0.0
    %1488 = vmatpush2.msra.mxu0 0.0
    %1489 = vmatprep.subr.mxu0 0.0
    %1490 = vmatpush2.msra.mxu0 0.0
    %1491 = vmatprep.subr.mxu0 0.0
    %1492 = vmatpush2.msra.mxu0 0.0
    %1493 = vmatprep.subr.mxu0 0.0
    %1494 = vmatpush2.msra.mxu0 0.0
    %1495 = vmatprep.subr.mxu0 0.0
    %1496 = vmatpush2.msra.mxu0 0.0
    %1497 = vmatprep.subr.mxu0 0.0
    %1498 = vmatpush2.msra.mxu0 0.0
    %1499 = vmatprep.subr.mxu0 0.0
    %1500 = vmatpush2.msra.mxu0 0.0
    %1501 = vmatprep.subr.mxu0 0.0
    %1502 = vmatpush2.msra.mxu0 0.0
    %1503 = vmatprep.subr.mxu0 0.0
    %1504 = vmatpush2.msra.mxu0 0.0
    %1505 = vmatprep.mubr.f32.mxu0 0.0
    %1506 = vmatmul.mubr.f32.gmra.mxu0 %v1439
    %v1507 = vpop.f32.mrf.mxu0
    %v1508 = vadd.f32 0.0, %v1507
    %v1509 = vpop.f32.mrf.mxu0
    %1510 = vdwg.mxu0
    %v1511 = vadd.f32 %v1291, %v1508
    %v1512 = vadd.f32 %v1511, %v1406
    %v1513 = vxor.u32 %v1512, 2147483648
    %v1514 = vmul.f32 %v1513, 1.442695
    %v1515 = vpow.pop %v1514
    %v1516 = vadd.f32 %v1515, 1.0
    %v1517 = vrcp.pop %v1516
    %v1518 = vmul.f32 1.0, %v1517
    %v1519 = vmul.f32 %v1518, 2.0
    %v1520 = vsub.f32 %v1519, 1.0
    %v1521 = vmul.f32 %v1518, %v1427
    %1523 = vrot.lane.b32.xlu0 %v1520, 64
    %v1524 = vpop.permute.xlu0 %1523
    %v1526 = vmul.f32 %v1518, %v1524
    %1528 = vrot.lane.b32.xlu0 %v1526, 32
    %v1529 = vpop.permute.xlu0 %1528
    %v1531 = vadd.f32 %v1521, %v1529
    %v1532 = vtanh.pop %v1531
    %1534 = vrot.lane.b32.xlu0 %v1532, 64
    %v1535 = vpop.permute.xlu0 %1534
    %v1537 = vmul.f32 %v1518, %v1535
    %1539 = vrot.lane.b32.xlu0 %v1537, 64
    %v1540 = vpop.permute.xlu0 %1539
    %vm1542 = vcmask 523520
    %1543 = vst.msk [vmem:[#allocation12] sm:$0xff] %vm1542, %v1540
    %1544 = vrot.lane.b32.xlu0 %v1537, 32
    %v1545 = vpop.permute.xlu0 %1544
    %v1546 = vsel %vm330, %v1545, 0
    %1548 = vmatprep.subr.mxu0 0.0
    %1549 = vmatpush1.msra.mxu0 0.0
    %1550 = vmatprep.subr.mxu0 0.0
    %1551 = vmatpush1.msra.mxu0 0.0
    %1552 = vmatprep.subr.mxu0 0.0
    %1553 = vmatpush1.msra.mxu0 0.0
    %1554 = vmatprep.subr.mxu0 0.0
    %1555 = vmatpush1.msra.mxu0 0.0
    %1556 = vmatprep.subr.mxu0 0.0
    %1557 = vmatpush1.msra.mxu0 0.0
    %1558 = vmatprep.subr.mxu0 0.0
    %1559 = vmatpush1.msra.mxu0 0.0
    %1560 = vmatprep.subr.mxu0 0.0
    %1561 = vmatpush1.msra.mxu0 0.0
    %1562 = vmatprep.subr.mxu0 0.0
    %1563 = vmatpush1.msra.mxu0 0.0
    %1564 = vmatprep.subr.mxu0 0.0
    %1565 = vmatpush1.msra.mxu0 0.0
    %1566 = vmatprep.subr.mxu0 0.0
    %1567 = vmatpush1.msra.mxu0 0.0
    %1568 = vmatprep.subr.mxu0 0.0
    %1569 = vmatpush1.msra.mxu0 0.0
    %1570 = vmatprep.subr.mxu0 0.0
    %1571 = vmatpush1.msra.mxu0 0.0
    %1572 = vmatprep.subr.mxu0 0.0
    %1573 = vmatpush1.msra.mxu0 %v1328
    %1574 = vmatprep.subr.mxu0 0.0
    %1575 = vmatpush1.msra.mxu0 %v1327
    %1576 = vmatprep.subr.mxu0 0.0
    %1577 = vmatpush1.msra.mxu0 %v1326
    %1578 = vmatprep.subr.mxu0 0.0
    %1579 = vmatpush1.msra.mxu0 %v1325
    %1580 = vmatprep.subr.mxu0 0.0
    %1581 = vmatpush2.msra.mxu0 0.0
    %1582 = vmatprep.subr.mxu0 0.0
    %1583 = vmatpush2.msra.mxu0 0.0
    %1584 = vmatprep.subr.mxu0 0.0
    %1585 = vmatpush2.msra.mxu0 0.0
    %1586 = vmatprep.subr.mxu0 0.0
    %1587 = vmatpush2.msra.mxu0 0.0
    %1588 = vmatprep.subr.mxu0 0.0
    %1589 = vmatpush2.msra.mxu0 0.0
    %1590 = vmatprep.subr.mxu0 0.0
    %1591 = vmatpush2.msra.mxu0 0.0
    %1592 = vmatprep.subr.mxu0 0.0
    %1593 = vmatpush2.msra.mxu0 0.0
    %1594 = vmatprep.subr.mxu0 0.0
    %1595 = vmatpush2.msra.mxu0 0.0
    %1596 = vmatprep.subr.mxu0 0.0
    %1597 = vmatpush2.msra.mxu0 0.0
    %1598 = vmatprep.subr.mxu0 0.0
    %1599 = vmatpush2.msra.mxu0 0.0
    %1600 = vmatprep.subr.mxu0 0.0
    %1601 = vmatpush2.msra.mxu0 0.0
    %1602 = vmatprep.subr.mxu0 0.0
    %1603 = vmatpush2.msra.mxu0 0.0
    %1604 = vmatprep.subr.mxu0 0.0
    %1605 = vmatpush2.msra.mxu0 0.0
    %1606 = vmatprep.subr.mxu0 0.0
    %1607 = vmatpush2.msra.mxu0 0.0
    %1608 = vmatprep.subr.mxu0 0.0
    %1609 = vmatpush2.msra.mxu0 0.0
    %1610 = vmatprep.subr.mxu0 0.0
    %1611 = vmatpush2.msra.mxu0 0.0
    %1612 = vmatprep.mubr.f32.mxu0 0.0
    %1613 = vmatmul.mubr.f32.gmra.mxu0 %v1546
    %v1614 = vpop.f32.mrf.mxu0
    %v1615 = vadd.f32 0.0, %v1614
    %v1616 = vpop.f32.mrf.mxu0
    %1617 = vdwg.mxu0
    %v1618 = vadd.f32 %v1296, %v1615
    %v1619 = vadd.f32 %v1618, %v1406
    %v1620 = vxor.u32 %v1619, 2147483648
    %v1621 = vmul.f32 %v1620, 1.442695
    %v1622 = vpow.pop %v1621
    %v1623 = vadd.f32 %v1622, 1.0
    %v1624 = vrcp.pop %v1623
    %v1625 = vmul.f32 1.0, %v1624
    %v1626 = vmul.f32 %v1625, 2.0
    %v1627 = vsub.f32 %v1626, 1.0
    %v1628 = vmul.f32 %v1625, %v1531
    %1630 = vrot.lane.b32.xlu0 %v1627, 64
    %v1631 = vpop.permute.xlu0 %1630
    %v1633 = vmul.f32 %v1625, %v1631
    %1635 = vrot.lane.b32.xlu0 %v1633, 32
    %v1636 = vpop.permute.xlu0 %1635
    %v1638 = vadd.f32 %v1628, %v1636
    %v1639 = vtanh.pop %v1638
    %1641 = vrot.lane.b32.xlu0 %v1639, 64
    %v1642 = vpop.permute.xlu0 %1641
    %v1644 = vmul.f32 %v1625, %v1642
    %1646 = vrot.lane.b32.xlu0 %v1644, 96
    %v1647 = vpop.permute.xlu0 %1646
    %vm1649 = vcmask 785920
    %1650 = vst.msk [vmem:[#allocation12] sm:$0xff] %vm1649, %v1647
    %1651 = vrot.lane.b32.xlu0 %v1644, 32
    %v1652 = vpop.permute.xlu0 %1651
    %v1653 = vsel %vm330, %v1652, 0
    %1655 = vmatprep.subr.mxu0 0.0
    %1656 = vmatpush1.msra.mxu0 0.0
    %1657 = vmatprep.subr.mxu0 0.0
    %1658 = vmatpush1.msra.mxu0 0.0
    %1659 = vmatprep.subr.mxu0 0.0
    %1660 = vmatpush1.msra.mxu0 0.0
    %1661 = vmatprep.subr.mxu0 0.0
    %1662 = vmatpush1.msra.mxu0 0.0
    %1663 = vmatprep.subr.mxu0 0.0
    %1664 = vmatpush1.msra.mxu0 0.0
    %1665 = vmatprep.subr.mxu0 0.0
    %1666 = vmatpush1.msra.mxu0 0.0
    %1667 = vmatprep.subr.mxu0 0.0
    %1668 = vmatpush1.msra.mxu0 0.0
    %1669 = vmatprep.subr.mxu0 0.0
    %1670 = vmatpush1.msra.mxu0 0.0
    %1671 = vmatprep.subr.mxu0 0.0
    %1672 = vmatpush1.msra.mxu0 0.0
    %1673 = vmatprep.subr.mxu0 0.0
    %1674 = vmatpush1.msra.mxu0 0.0
    %1675 = vmatprep.subr.mxu0 0.0
    %1676 = vmatpush1.msra.mxu0 0.0
    %1677 = vmatprep.subr.mxu0 0.0
    %1678 = vmatpush1.msra.mxu0 0.0
    %1679 = vmatprep.subr.mxu0 0.0
    %1680 = vmatpush1.msra.mxu0 %v1328
    %1681 = vmatprep.subr.mxu0 0.0
    %1682 = vmatpush1.msra.mxu0 %v1327
    %1683 = vmatprep.subr.mxu0 0.0
    %1684 = vmatpush1.msra.mxu0 %v1326
    %1685 = vmatprep.subr.mxu0 0.0
    %1686 = vmatpush1.msra.mxu0 %v1325
    %1687 = vmatprep.subr.mxu0 0.0
    %1688 = vmatpush2.msra.mxu0 0.0
    %1689 = vmatprep.subr.mxu0 0.0
    %1690 = vmatpush2.msra.mxu0 0.0
    %1691 = vmatprep.subr.mxu0 0.0
    %1692 = vmatpush2.msra.mxu0 0.0
    %1693 = vmatprep.subr.mxu0 0.0
    %1694 = vmatpush2.msra.mxu0 0.0
    %1695 = vmatprep.subr.mxu0 0.0
    %1696 = vmatpush2.msra.mxu0 0.0
    %1697 = vmatprep.subr.mxu0 0.0
    %1698 = vmatpush2.msra.mxu0 0.0
    %1699 = vmatprep.subr.mxu0 0.0
    %1700 = vmatpush2.msra.mxu0 0.0
    %1701 = vmatprep.subr.mxu0 0.0
    %1702 = vmatpush2.msra.mxu0 0.0
    %1703 = vmatprep.subr.mxu0 0.0
    %1704 = vmatpush2.msra.mxu0 0.0
    %1705 = vmatprep.subr.mxu0 0.0
    %1706 = vmatpush2.msra.mxu0 0.0
    %1707 = vmatprep.subr.mxu0 0.0
    %1708 = vmatpush2.msra.mxu0 0.0
    %1709 = vmatprep.subr.mxu0 0.0
    %1710 = vmatpush2.msra.mxu0 0.0
    %1711 = vmatprep.subr.mxu0 0.0
    %1712 = vmatpush2.msra.mxu0 0.0
    %1713 = vmatprep.subr.mxu0 0.0
    %1714 = vmatpush2.msra.mxu0 0.0
    %1715 = vmatprep.subr.mxu0 0.0
    %1716 = vmatpush2.msra.mxu0 0.0
    %1717 = vmatprep.subr.mxu0 0.0
    %1718 = vmatpush2.msra.mxu0 0.0
    %1719 = vmatprep.mubr.f32.mxu0 0.0
    %1720 = vmatmul.mubr.f32.gmra.mxu0 %v1653
    %v1721 = vpop.f32.mrf.mxu0
    %v1722 = vadd.f32 0.0, %v1721
    %v1723 = vpop.f32.mrf.mxu0
    %1724 = vdwg.mxu0
    %v1725 = vadd.f32 %v1301, %v1722
    %v1726 = vadd.f32 %v1725, %v1406
    %v1727 = vxor.u32 %v1726, 2147483648
    %v1728 = vmul.f32 %v1727, 1.442695
    %v1729 = vpow.pop %v1728
    %v1730 = vadd.f32 %v1729, 1.0
    %v1731 = vrcp.pop %v1730
    %v1732 = vmul.f32 1.0, %v1731
    %v1733 = vmul.f32 %v1732, 2.0
    %v1734 = vsub.f32 %v1733, 1.0
    %v1735 = vmul.f32 %v1732, %v1638
    %1737 = vrot.lane.b32.xlu0 %v1734, 64
    %v1738 = vpop.permute.xlu0 %1737
    %v1740 = vmul.f32 %v1732, %v1738
    %1742 = vrot.lane.b32.xlu0 %v1740, 32
    %v1743 = vpop.permute.xlu0 %1742
    %v1745 = vadd.f32 %v1735, %v1743
    %v1746 = vtanh.pop %v1745
    %1748 = vrot.lane.b32.xlu0 %v1746, 64
    %v1749 = vpop.permute.xlu0 %1748
    %v1751 = vmul.f32 %v1732, %v1749
    %vm1752 = vcmask 1048320
    %1753 = vst.msk [vmem:[#allocation12] sm:$0xff] %vm1752, %v1751
    %1755 = vrot.lane.b32.xlu0 %v1751, 32
    %v1756 = vpop.permute.xlu0 %1755
    %v1757 = vsel %vm330, %v1756, 0
    %1759 = vmatprep.subr.mxu0 0.0
    %1760 = vmatpush1.msra.mxu0 0.0
    %1761 = vmatprep.subr.mxu0 0.0
    %1762 = vmatpush1.msra.mxu0 0.0
    %1763 = vmatprep.subr.mxu0 0.0
    %1764 = vmatpush1.msra.mxu0 0.0
    %1765 = vmatprep.subr.mxu0 0.0
    %1766 = vmatpush1.msra.mxu0 0.0
    %1767 = vmatprep.subr.mxu0 0.0
    %1768 = vmatpush1.msra.mxu0 0.0
    %1769 = vmatprep.subr.mxu0 0.0
    %1770 = vmatpush1.msra.mxu0 0.0
    %1771 = vmatprep.subr.mxu0 0.0
    %1772 = vmatpush1.msra.mxu0 0.0
    %1773 = vmatprep.subr.mxu0 0.0
    %1774 = vmatpush1.msra.mxu0 0.0
    %1775 = vmatprep.subr.mxu0 0.0
    %1776 = vmatpush1.msra.mxu0 0.0
    %1777 = vmatprep.subr.mxu0 0.0
    %1778 = vmatpush1.msra.mxu0 0.0
    %1779 = vmatprep.subr.mxu0 0.0
    %1780 = vmatpush1.msra.mxu0 0.0
    %1781 = vmatprep.subr.mxu0 0.0
    %1782 = vmatpush1.msra.mxu0 0.0
    %1783 = vmatprep.subr.mxu0 0.0
    %1784 = vmatpush1.msra.mxu0 %v1328
    %1785 = vmatprep.subr.mxu0 0.0
    %1786 = vmatpush1.msra.mxu0 %v1327
    %1787 = vmatprep.subr.mxu0 0.0
    %1788 = vmatpush1.msra.mxu0 %v1326
    %1789 = vmatprep.subr.mxu0 0.0
    %1790 = vmatpush1.msra.mxu0 %v1325
    %1791 = vmatprep.subr.mxu0 0.0
    %1792 = vmatpush2.msra.mxu0 0.0
    %1793 = vmatprep.subr.mxu0 0.0
    %1794 = vmatpush2.msra.mxu0 0.0
    %1795 = vmatprep.subr.mxu0 0.0
    %1796 = vmatpush2.msra.mxu0 0.0
    %1797 = vmatprep.subr.mxu0 0.0
    %1798 = vmatpush2.msra.mxu0 0.0
    %1799 = vmatprep.subr.mxu0 0.0
    %1800 = vmatpush2.msra.mxu0 0.0
    %1801 = vmatprep.subr.mxu0 0.0
    %1802 = vmatpush2.msra.mxu0 0.0
    %1803 = vmatprep.subr.mxu0 0.0
    %1804 = vmatpush2.msra.mxu0 0.0
    %1805 = vmatprep.subr.mxu0 0.0
    %1806 = vmatpush2.msra.mxu0 0.0
    %1807 = vmatprep.subr.mxu0 0.0
    %1808 = vmatpush2.msra.mxu0 0.0
    %1809 = vmatprep.subr.mxu0 0.0
    %1810 = vmatpush2.msra.mxu0 0.0
    %1811 = vmatprep.subr.mxu0 0.0
    %1812 = vmatpush2.msra.mxu0 0.0
    %1813 = vmatprep.subr.mxu0 0.0
    %1814 = vmatpush2.msra.mxu0 0.0
    %1815 = vmatprep.subr.mxu0 0.0
    %1816 = vmatpush2.msra.mxu0 0.0
    %1817 = vmatprep.subr.mxu0 0.0
    %1818 = vmatpush2.msra.mxu0 0.0
    %1819 = vmatprep.subr.mxu0 0.0
    %1820 = vmatpush2.msra.mxu0 0.0
    %1821 = vmatprep.subr.mxu0 0.0
    %1822 = vmatpush2.msra.mxu0 0.0
    %1823 = vmatprep.mubr.f32.mxu0 0.0
    %1824 = vmatmul.mubr.f32.gmra.mxu0 %v1757
    %v1825 = vpop.f32.mrf.mxu0
    %v1826 = vadd.f32 0.0, %v1825
    %v1827 = vpop.f32.mrf.mxu0
    %1828 = vdwg.mxu0
    %v1829 = vadd.f32 %v1306, %v1826
    %v1830 = vadd.f32 %v1829, %v1406
    %v1831 = vxor.u32 %v1830, 2147483648
    %v1832 = vmul.f32 %v1831, 1.442695
    %v1833 = vpow.pop %v1832
    %v1834 = vadd.f32 %v1833, 1.0
    %v1835 = vrcp.pop %v1834
    %v1836 = vmul.f32 1.0, %v1835
    %v1837 = vmul.f32 %v1836, 2.0
    %v1838 = vsub.f32 %v1837, 1.0
    %v1839 = vmul.f32 %v1836, %v1745
    %1841 = vrot.lane.b32.xlu0 %v1838, 64
    %v1842 = vpop.permute.xlu0 %1841
    %v1844 = vmul.f32 %v1836, %v1842
    %1846 = vrot.lane.b32.xlu0 %v1844, 32
    %v1847 = vpop.permute.xlu0 %1846
    %v1849 = vadd.f32 %v1839, %v1847
    %v1850 = vtanh.pop %v1849
    %1852 = vrot.lane.b32.xlu0 %v1850, 64
    %v1853 = vpop.permute.xlu0 %1852
    %v1855 = vmul.f32 %v1836, %v1853
    %1857 = vrot.lane.b32.xlu0 %v1855, 32
    %v1858 = vpop.permute.xlu0 %1857
    %1860 = vst.msk [vmem:[#allocation12 + $0x8] sm:$0xff] %vm330, %v1858
    %v1861 = vsel %vm330, %v1858, 0
    %1863 = vmatprep.subr.mxu0 0.0
    %1864 = vmatpush1.msra.mxu0 0.0
    %1865 = vmatprep.subr.mxu0 0.0
    %1866 = vmatpush1.msra.mxu0 0.0
    %1867 = vmatprep.subr.mxu0 0.0
    %1868 = vmatpush1.msra.mxu0 0.0
    %1869 = vmatprep.subr.mxu0 0.0
    %1870 = vmatpush1.msra.mxu0 0.0
    %1871 = vmatprep.subr.mxu0 0.0
    %1872 = vmatpush1.msra.mxu0 0.0
    %1873 = vmatprep.subr.mxu0 0.0
    %1874 = vmatpush1.msra.mxu0 0.0
    %1875 = vmatprep.subr.mxu0 0.0
    %1876 = vmatpush1.msra.mxu0 0.0
    %1877 = vmatprep.subr.mxu0 0.0
    %1878 = vmatpush1.msra.mxu0 0.0
    %1879 = vmatprep.subr.mxu0 0.0
    %1880 = vmatpush1.msra.mxu0 0.0
    %1881 = vmatprep.subr.mxu0 0.0
    %1882 = vmatpush1.msra.mxu0 0.0
    %1883 = vmatprep.subr.mxu0 0.0
    %1884 = vmatpush1.msra.mxu0 0.0
    %1885 = vmatprep.subr.mxu0 0.0
    %1886 = vmatpush1.msra.mxu0 0.0
    %1887 = vmatprep.subr.mxu0 0.0
    %1888 = vmatpush1.msra.mxu0 %v1328
    %1889 = vmatprep.subr.mxu0 0.0
    %1890 = vmatpush1.msra.mxu0 %v1327
    %1891 = vmatprep.subr.mxu0 0.0
    %1892 = vmatpush1.msra.mxu0 %v1326
    %1893 = vmatprep.subr.mxu0 0.0
    %1894 = vmatpush1.msra.mxu0 %v1325
    %1895 = vmatprep.subr.mxu0 0.0
    %1896 = vmatpush2.msra.mxu0 0.0
    %1897 = vmatprep.subr.mxu0 0.0
    %1898 = vmatpush2.msra.mxu0 0.0
    %1899 = vmatprep.subr.mxu0 0.0
    %1900 = vmatpush2.msra.mxu0 0.0
    %1901 = vmatprep.subr.mxu0 0.0
    %1902 = vmatpush2.msra.mxu0 0.0
    %1903 = vmatprep.subr.mxu0 0.0
    %1904 = vmatpush2.msra.mxu0 0.0
    %1905 = vmatprep.subr.mxu0 0.0
    %1906 = vmatpush2.msra.mxu0 0.0
    %1907 = vmatprep.subr.mxu0 0.0
    %1908 = vmatpush2.msra.mxu0 0.0
    %1909 = vmatprep.subr.mxu0 0.0
    %1910 = vmatpush2.msra.mxu0 0.0
    %1911 = vmatprep.subr.mxu0 0.0
    %1912 = vmatpush2.msra.mxu0 0.0
    %1913 = vmatprep.subr.mxu0 0.0
    %1914 = vmatpush2.msra.mxu0 0.0
    %1915 = vmatprep.subr.mxu0 0.0
    %1916 = vmatpush2.msra.mxu0 0.0
    %1917 = vmatprep.subr.mxu0 0.0
    %1918 = vmatpush2.msra.mxu0 0.0
    %1919 = vmatprep.subr.mxu0 0.0
    %1920 = vmatpush2.msra.mxu0 0.0
    %1921 = vmatprep.subr.mxu0 0.0
    %1922 = vmatpush2.msra.mxu0 0.0
    %1923 = vmatprep.subr.mxu0 0.0
    %1924 = vmatpush2.msra.mxu0 0.0
    %1925 = vmatprep.subr.mxu0 0.0
    %1926 = vmatpush2.msra.mxu0 0.0
    %1927 = vmatprep.mubr.f32.mxu0 0.0
    %1928 = vmatmul.mubr.f32.gmra.mxu0 %v1861
    %v1929 = vpop.f32.mrf.mxu0
    %v1930 = vadd.f32 0.0, %v1929
    %v1931 = vpop.f32.mrf.mxu0
    %1932 = vdwg.mxu0
    %v1933 = vadd.f32 %v1311, %v1930
    %v1934 = vadd.f32 %v1933, %v1406
    %v1935 = vxor.u32 %v1934, 2147483648
    %v1936 = vmul.f32 %v1935, 1.442695
    %v1937 = vpow.pop %v1936
    %v1938 = vadd.f32 %v1937, 1.0
    %v1939 = vrcp.pop %v1938
    %v1940 = vmul.f32 1.0, %v1939
    %v1941 = vmul.f32 %v1940, 2.0
    %v1942 = vsub.f32 %v1941, 1.0
    %v1943 = vmul.f32 %v1940, %v1849
    %1945 = vrot.lane.b32.xlu0 %v1942, 64
    %v1946 = vpop.permute.xlu0 %1945
    %v1948 = vmul.f32 %v1940, %v1946
    %1950 = vrot.lane.b32.xlu0 %v1948, 32
    %v1951 = vpop.permute.xlu0 %1950
    %v1953 = vadd.f32 %v1943, %v1951
    %v1954 = vtanh.pop %v1953
    %1956 = vrot.lane.b32.xlu0 %v1954, 64
    %v1957 = vpop.permute.xlu0 %1956
    %v1959 = vmul.f32 %v1940, %v1957
    %1961 = vrot.lane.b32.xlu0 %v1959, 64
    %v1962 = vpop.permute.xlu0 %1961
    %1964 = vst.msk [vmem:[#allocation12 + $0x8] sm:$0xff] %vm1542, %v1962
    %1965 = vrot.lane.b32.xlu0 %v1959, 32
    %v1966 = vpop.permute.xlu0 %1965
    %v1967 = vsel %vm330, %v1966, 0
    %1969 = vmatprep.subr.mxu0 0.0
    %1970 = vmatpush1.msra.mxu0 0.0
    %1971 = vmatprep.subr.mxu0 0.0
    %1972 = vmatpush1.msra.mxu0 0.0
    %1973 = vmatprep.subr.mxu0 0.0
    %1974 = vmatpush1.msra.mxu0 0.0
    %1975 = vmatprep.subr.mxu0 0.0
    %1976 = vmatpush1.msra.mxu0 0.0
    %1977 = vmatprep.subr.mxu0 0.0
    %1978 = vmatpush1.msra.mxu0 0.0
    %1979 = vmatprep.subr.mxu0 0.0
    %1980 = vmatpush1.msra.mxu0 0.0
    %1981 = vmatprep.subr.mxu0 0.0
    %1982 = vmatpush1.msra.mxu0 0.0
    %1983 = vmatprep.subr.mxu0 0.0
    %1984 = vmatpush1.msra.mxu0 0.0
    %1985 = vmatprep.subr.mxu0 0.0
    %1986 = vmatpush1.msra.mxu0 0.0
    %1987 = vmatprep.subr.mxu0 0.0
    %1988 = vmatpush1.msra.mxu0 0.0
    %1989 = vmatprep.subr.mxu0 0.0
    %1990 = vmatpush1.msra.mxu0 0.0
    %1991 = vmatprep.subr.mxu0 0.0
    %1992 = vmatpush1.msra.mxu0 0.0
    %1993 = vmatprep.subr.mxu0 0.0
    %1994 = vmatpush1.msra.mxu0 %v1328
    %1995 = vmatprep.subr.mxu0 0.0
    %1996 = vmatpush1.msra.mxu0 %v1327
    %1997 = vmatprep.subr.mxu0 0.0
    %1998 = vmatpush1.msra.mxu0 %v1326
    %1999 = vmatprep.subr.mxu0 0.0
    %2000 = vmatpush1.msra.mxu0 %v1325
    %2001 = vmatprep.subr.mxu0 0.0
    %2002 = vmatpush2.msra.mxu0 0.0
    %2003 = vmatprep.subr.mxu0 0.0
    %2004 = vmatpush2.msra.mxu0 0.0
    %2005 = vmatprep.subr.mxu0 0.0
    %2006 = vmatpush2.msra.mxu0 0.0
    %2007 = vmatprep.subr.mxu0 0.0
    %2008 = vmatpush2.msra.mxu0 0.0
    %2009 = vmatprep.subr.mxu0 0.0
    %2010 = vmatpush2.msra.mxu0 0.0
    %2011 = vmatprep.subr.mxu0 0.0
    %2012 = vmatpush2.msra.mxu0 0.0
    %2013 = vmatprep.subr.mxu0 0.0
    %2014 = vmatpush2.msra.mxu0 0.0
    %2015 = vmatprep.subr.mxu0 0.0
    %2016 = vmatpush2.msra.mxu0 0.0
    %2017 = vmatprep.subr.mxu0 0.0
    %2018 = vmatpush2.msra.mxu0 0.0
    %2019 = vmatprep.subr.mxu0 0.0
    %2020 = vmatpush2.msra.mxu0 0.0
    %2021 = vmatprep.subr.mxu0 0.0
    %2022 = vmatpush2.msra.mxu0 0.0
    %2023 = vmatprep.subr.mxu0 0.0
    %2024 = vmatpush2.msra.mxu0 0.0
    %2025 = vmatprep.subr.mxu0 0.0
    %2026 = vmatpush2.msra.mxu0 0.0
    %2027 = vmatprep.subr.mxu0 0.0
    %2028 = vmatpush2.msra.mxu0 0.0
    %2029 = vmatprep.subr.mxu0 0.0
    %2030 = vmatpush2.msra.mxu0 0.0
    %2031 = vmatprep.subr.mxu0 0.0
    %2032 = vmatpush2.msra.mxu0 0.0
    %2033 = vmatprep.mubr.f32.mxu0 0.0
    %2034 = vmatmul.mubr.f32.gmra.mxu0 %v1967
    %v2035 = vpop.f32.mrf.mxu0
    %v2036 = vadd.f32 0.0, %v2035
    %v2037 = vpop.f32.mrf.mxu0
    %2038 = vdwg.mxu0
    %v2039 = vadd.f32 %v1316, %v2036
    %v2040 = vadd.f32 %v2039, %v1406
    %v2041 = vxor.u32 %v2040, 2147483648
    %v2042 = vmul.f32 %v2041, 1.442695
    %v2043 = vpow.pop %v2042
    %v2044 = vadd.f32 %v2043, 1.0
    %v2045 = vrcp.pop %v2044
    %v2046 = vmul.f32 1.0, %v2045
    %v2047 = vmul.f32 %v2046, 2.0
    %v2048 = vsub.f32 %v2047, 1.0
    %v2049 = vmul.f32 %v2046, %v1953
    %2051 = vrot.lane.b32.xlu0 %v2048, 64
    %v2052 = vpop.permute.xlu0 %2051
    %v2054 = vmul.f32 %v2046, %v2052
    %2056 = vrot.lane.b32.xlu0 %v2054, 32
    %v2057 = vpop.permute.xlu0 %2056
    %v2059 = vadd.f32 %v2049, %v2057
    %v2060 = vtanh.pop %v2059
    %2062 = vrot.lane.b32.xlu0 %v2060, 64
    %v2063 = vpop.permute.xlu0 %2062
    %v2065 = vmul.f32 %v2046, %v2063
    %2067 = vrot.lane.b32.xlu0 %v2065, 96
    %v2068 = vpop.permute.xlu0 %2067
    %2070 = vst.msk [vmem:[#allocation12 + $0x8] sm:$0xff] %vm1649, %v2068
    %2071 = vrot.lane.b32.xlu0 %v2065, 32
    %v2072 = vpop.permute.xlu0 %2071
    %v2073 = vsel %vm330, %v2072, 0
    %2075 = vmatprep.subr.mxu0 0.0
    %2076 = vmatpush1.msra.mxu0 0.0
    %2077 = vmatprep.subr.mxu0 0.0
    %2078 = vmatpush1.msra.mxu0 0.0
    %2079 = vmatprep.subr.mxu0 0.0
    %2080 = vmatpush1.msra.mxu0 0.0
    %2081 = vmatprep.subr.mxu0 0.0
    %2082 = vmatpush1.msra.mxu0 0.0
    %2083 = vmatprep.subr.mxu0 0.0
    %2084 = vmatpush1.msra.mxu0 0.0
    %2085 = vmatprep.subr.mxu0 0.0
    %2086 = vmatpush1.msra.mxu0 0.0
    %2087 = vmatprep.subr.mxu0 0.0
    %2088 = vmatpush1.msra.mxu0 0.0
    %2089 = vmatprep.subr.mxu0 0.0
    %2090 = vmatpush1.msra.mxu0 0.0
    %2091 = vmatprep.subr.mxu0 0.0
    %2092 = vmatpush1.msra.mxu0 0.0
    %2093 = vmatprep.subr.mxu0 0.0
    %2094 = vmatpush1.msra.mxu0 0.0
    %2095 = vmatprep.subr.mxu0 0.0
    %2096 = vmatpush1.msra.mxu0 0.0
    %2097 = vmatprep.subr.mxu0 0.0
    %2098 = vmatpush1.msra.mxu0 0.0
    %2099 = vmatprep.subr.mxu0 0.0
    %2100 = vmatpush1.msra.mxu0 %v1328
    %2101 = vmatprep.subr.mxu0 0.0
    %2102 = vmatpush1.msra.mxu0 %v1327
    %2103 = vmatprep.subr.mxu0 0.0
    %2104 = vmatpush1.msra.mxu0 %v1326
    %2105 = vmatprep.subr.mxu0 0.0
    %2106 = vmatpush1.msra.mxu0 %v1325
    %2107 = vmatprep.subr.mxu0 0.0
    %2108 = vmatpush2.msra.mxu0 0.0
    %2109 = vmatprep.subr.mxu0 0.0
    %2110 = vmatpush2.msra.mxu0 0.0
    %2111 = vmatprep.subr.mxu0 0.0
    %2112 = vmatpush2.msra.mxu0 0.0
    %2113 = vmatprep.subr.mxu0 0.0
    %2114 = vmatpush2.msra.mxu0 0.0
    %2115 = vmatprep.subr.mxu0 0.0
    %2116 = vmatpush2.msra.mxu0 0.0
    %2117 = vmatprep.subr.mxu0 0.0
    %2118 = vmatpush2.msra.mxu0 0.0
    %2119 = vmatprep.subr.mxu0 0.0
    %2120 = vmatpush2.msra.mxu0 0.0
    %2121 = vmatprep.subr.mxu0 0.0
    %2122 = vmatpush2.msra.mxu0 0.0
    %2123 = vmatprep.subr.mxu0 0.0
    %2124 = vmatpush2.msra.mxu0 0.0
    %2125 = vmatprep.subr.mxu0 0.0
    %2126 = vmatpush2.msra.mxu0 0.0
    %2127 = vmatprep.subr.mxu0 0.0
    %2128 = vmatpush2.msra.mxu0 0.0
    %2129 = vmatprep.subr.mxu0 0.0
    %2130 = vmatpush2.msra.mxu0 0.0
    %2131 = vmatprep.subr.mxu0 0.0
    %2132 = vmatpush2.msra.mxu0 0.0
    %2133 = vmatprep.subr.mxu0 0.0
    %2134 = vmatpush2.msra.mxu0 0.0
    %2135 = vmatprep.subr.mxu0 0.0
    %2136 = vmatpush2.msra.mxu0 0.0
    %2137 = vmatprep.subr.mxu0 0.0
    %2138 = vmatpush2.msra.mxu0 0.0
    %2139 = vmatprep.mubr.f32.mxu0 0.0
    %2140 = vmatmul.mubr.f32.gmra.mxu0 %v2073
    %v2141 = vpop.f32.mrf.mxu0
    %v2142 = vadd.f32 0.0, %v2141
    %v2143 = vpop.f32.mrf.mxu0
    %2144 = vdwg.mxu0
    %v2145 = vadd.f32 %v1321, %v2142
    %v2146 = vadd.f32 %v2145, %v1406
    %v2147 = vxor.u32 %v2146, 2147483648
    %v2148 = vmul.f32 %v2147, 1.442695
    %v2149 = vpow.pop %v2148
    %v2150 = vadd.f32 %v2149, 1.0
    %v2151 = vrcp.pop %v2150
    %v2152 = vmul.f32 1.0, %v2151
    %v2153 = vmul.f32 %v2152, 2.0
    %v2154 = vsub.f32 %v2153, 1.0
    %v2155 = vmul.f32 %v2152, %v2059
    %2157 = vrot.lane.b32.xlu0 %v2154, 64
    %v2158 = vpop.permute.xlu0 %2157
    %v2160 = vmul.f32 %v2152, %v2158
    %2162 = vrot.lane.b32.xlu0 %v2160, 32
    %v2163 = vpop.permute.xlu0 %2162
    %v2165 = vadd.f32 %v2155, %v2163
    %v2166 = vtanh.pop %v2165
    %2168 = vrot.lane.b32.xlu0 %v2166, 64
    %v2169 = vpop.permute.xlu0 %2168
    %v2171 = vmul.f32 %v2152, %v2169
    %2172 = vst.msk [vmem:[#allocation12 + $0x8] sm:$0xff] %vm1752, %v2171
    %2174 = vrot.lane.b32.xlu0 %v2171, 32
    %v2175 = vpop.permute.xlu0 %2174
    %s2177 = scalar_lea.vmem [#allocation13], 8
    %2178 = vst.msk [vmem:[%s2177] sm:$0xff] %vm330, %v2175
    %2180 = vrot.lane.b32.xlu0 %v2165, 96
    %v2181 = vpop.permute.xlu0 %2180
    %s2183 = scalar_lea.vmem [#allocation15], 8
    %2184 = vst.msk [vmem:[%s2183] sm:$0xff] %vm330, %v2181
    // Predicated region
    $region30: #{tpu_custom_call.1} parent=1 // pred_check
      _
    $region31: #{tpu_custom_call.1} parent=1 // pred_check_branch
      %2186 = sbr.rel (0) target = $region33
    $region32: #{tpu_custom_call.1} parent=1 // pred_region
      %s2188 = ssub.s32 256, 256
      %2189 = vsyncadd [#allocation8], %s2188
      %s2191 = sshll.u32 [#allocation12], 4
      %s2192 = int_to_ptr.vmem [resolvable:$true] %s2191
      %2194 = dma.vmem_to_hbm [thread:$0]  %s2192, 256, %s5, [#allocation8]
    $region33: #{tpu_custom_call.1} parent=1 // pred_fallthru
      _
    // Predicated region
    $region34: #{tpu_custom_call.1} parent=1 // pred_check
      _
    $region35: #{tpu_custom_call.1} parent=1 // pred_check_branch
      %2196 = sbr.rel (0) target = $region37
    $region36: #{tpu_custom_call.1} parent=1 // pred_region
      %s2198 = ssub.s32 256, 256
      %2199 = vsyncadd [#allocation14], %s2198
      %s2200 = sshll.u32 [#allocation13], 4
      %s2201 = int_to_ptr.vmem [resolvable:$true] %s2200
      %2206 = dma.vmem_to_hbm [thread:$0]  %s2201, 256, %s6, [#allocation14], 128, 128, 8
    $region37: #{tpu_custom_call.1} parent=1 // pred_fallthru
      _
    // Predicated region
    $region38: #{tpu_custom_call.1} parent=1 // pred_check
      _
    $region39: #{tpu_custom_call.1} parent=1 // pred_check_branch
      %2208 = sbr.rel (0) target = $region41
    $region40: #{tpu_custom_call.1} parent=1 // pred_region
      %s2210 = ssub.s32 256, 256
      %2211 = vsyncadd [#allocation14], %s2210
      %s2212 = sshll.u32 [#allocation15], 4
      %s2213 = int_to_ptr.vmem [resolvable:$true] %s2212
      %2218 = dma.vmem_to_hbm [thread:$0]  %s2213, 256, %s7, [#allocation14], 128, 128, 8
    $region41: #{tpu_custom_call.1} parent=1 // pred_fallthru
      _
    // Predicated region
    $region42: #{tpu_custom_call.1} parent=1 // pred_check
      _
    $region43: #{tpu_custom_call.1} parent=1 // pred_check_branch
      %2220 = sbr.rel (0) target = $region45
    $region44: #{tpu_custom_call.1} parent=1 // pred_region
      %2221 = dma.done [#allocation8], 256
    $region45: #{tpu_custom_call.1} parent=1 // pred_fallthru
      _
    // Predicated region
    $region46: #{tpu_custom_call.1} parent=1 // pred_check
      _
    $region47: #{tpu_custom_call.1} parent=1 // pred_check_branch
      %2223 = sbr.rel (0) target = $region49
    $region48: #{tpu_custom_call.1} parent=1 // pred_region
      %2224 = dma.done [#allocation14], 256
    $region49: #{tpu_custom_call.1} parent=1 // pred_fallthru
      _
    // Predicated region
    $region50: #{tpu_custom_call.1} parent=1 // pred_check
      _
    $region51: #{tpu_custom_call.1} parent=1 // pred_check_branch
      %2226 = sbr.rel (0) target = $region53
    $region52: #{tpu_custom_call.1} parent=1 // pred_region
      %2227 = dma.done [#allocation14], 256
    $region53: #{tpu_custom_call.1} parent=1 // pred_fallthru
      _
    %2228 = vsyncpa [#allocation7], 1
    %2229 = vsyncpa [#allocation10], 1
    %2230 = vsyncpa [#allocation8], 1
    %2231 = vsyncpa [#allocation14], 1

</llo_original>
